<compile_context>
chip_gen: v6e
topology: v6e:2x2x1
jax: 0.10.0
libtpu: 0.0.40
codegen_flags: <defaults>
</compile_context>

<pallas_src>
from functools import partial
import math

import jax
import jax.numpy as jnp
import numpy as np
from jax.experimental import pallas as pl
from jax.experimental.pallas import tpu as pltpu


# ----------------------------- Pallas kernels ------------------------------

def _upsample_rows(x, r):
    """Nearest row upsample (t, W, C) -> (t*r, W, C), out[h] = x[h // r].

    Only leading (untiled) dims are touched, so this is a cheap VMEM
    broadcast + layout-preserving reshape.
    """
    if r == 1:
        return x
    t, W, C = x.shape
    x = jnp.broadcast_to(x[:, None, :, :], (t, r, W, C))
    return x.reshape(t * r, W, C)


def _fuse_reduce_kernel(w_ref, x1_ref, x2_ref, x3_ref, wr_ref, br_ref, o_ref,
                        *, r1, r2):
    # w_ref:  SMEM (3,)            softmax fusion weights (sum to 1)
    # x1_ref: VMEM (TH//r1, W, C)  coarse level-1 rows (W already resized)
    # x2_ref: VMEM (TH//r2, W, C)  coarse level-2 rows (W already resized)
    # x3_ref: VMEM (TH, W, C)      full-resolution level-3 rows
    # wr_ref: VMEM (C, C)          1x1 reduce conv weight, (C_in, C_out)
    # br_ref: VMEM (1, C)          1x1 reduce conv bias (f32)
    # o_ref:  VMEM (TH*W, C)       fused + reduced rows (lane-dense on C)
    TH, W, C = x3_ref.shape
    w0, w1, w2 = w_ref[0], w_ref[1], w_ref[2]            # scalar reads first
    f32 = jnp.float32
    # Nearest H-upsample of the coarse levels, fused here (VMEM broadcast).
    x1u = _upsample_rows(x1_ref[...], r1).astype(f32)
    x2u = _upsample_rows(x2_ref[...], r2).astype(f32)
    # VPU fusion in f32 (v5e has no bf16 VALU path; the casts are free filler).
    xw = w0 * x1u + w1 * x2u + w2 * x3_ref[...].astype(f32)
    xw = xw.reshape(TH * W, C).astype(wr_ref.dtype)
    # One (TH*W, C) @ (C, C) MXU matmul with f32 accumulation.
    # NOTE: folding the 1x1-conv bias into a single post-fusion add is valid
    # only because the softmax fusion weights sum to 1.
    y = jnp.dot(xw, wr_ref[...], preferred_element_type=f32) + br_ref[...]
    o_ref[...] = y.astype(o_ref.dtype)


def _expand_kernel(xpad_ref, we_ref, be_ref, o_ref, *, TH, W):
    # xpad_ref: VMEM (H+2, W+2, C) zero-padded fused map (one batch image)
    # we_ref:   VMEM (9, C, tc)    3x3 expand conv taps, each (C_in, C_out-tile)
    # be_ref:   VMEM (1, tc)       expand conv bias tile (f32)
    # o_ref:    VMEM (TH*W, tc)    output rows (f32, lane-dense on C_out tile)
    C = xpad_ref.shape[-1]
    h0 = pl.multiple_of(pl.program_id(2) * TH, TH)
    # 9 per-tap slab matmuls, f32-accumulated directly into the output block.
    # Taps are indexed from the VMEM ref at the point of use (no hoisting of
    # all 9 taps into live registers -> no vreg spills in the inner loop).
    for t in range(9):
        kh, kw = divmod(t, 3)
        slab = xpad_ref[pl.ds(h0 + kh, TH), pl.ds(kw, W), :]      # (TH, W, C)
        p = jnp.dot(slab.reshape(TH * W, C), we_ref[t],
                    preferred_element_type=jnp.float32)           # MXU
        if t == 0:
            o_ref[...] = p + be_ref[...]
        else:
            o_ref[...] += p


# ------------------------------- glue / API ---------------------------------

def _prepare_level(x, H, W, dtype):
    """NCHW -> NHWC + nearest-resize handling for one pyramid level.

    Returns (arr, r) with arr of shape (N, H//r, W, C).  When the level is an
    integer factor r coarser in H (and integer in W), only the cheap
    W-direction resize is done here; the H-direction repeat (factor r) is
    fused into the Pallas fuse kernel.  Otherwise a full XLA nearest resize is
    used and r == 1.
    """
    N, C, h, w = x.shape
    xh = jnp.transpose(x, (0, 2, 3, 1))          # interface glue: NCHW -> NHWC
    if h == H and w == W:
        return xh.astype(dtype), 1
    if H % h == 0 and W % w == 0:
        wi = (jnp.arange(W) * w) // W            # F.interpolate 'nearest' cols
        return xh[:, :, wi, :].astype(dtype), H // h
    # TODO(synk): non-integer scale factors fall back to a full-resolution XLA
    # nearest resize (extra HBM pass); fuse via scalar-prefetch row maps.
    hi = (jnp.arange(H) * h) // H
    wi = (jnp.arange(W) * w) // W
    return xh[:, hi[:, None], wi[None, :], :].astype(dtype), 1


def _pick_fuse_rows(H, W, C, rs, itemsize, target_bytes=2 * 1024 * 1024):
    """Row tile for kernel A: a multiple of every upsample factor, divides H,
    keeps the flat output block sublane-aligned and the x3 block ~1-2 MiB."""
    L = 1
    for r in rs:
        L = L * r // math.gcd(L, r)
    cands = [d for d in range(L, H + 1, L)
             if H % d == 0 and ((d * W) % 8 == 0 or d == H)]
    if not cands:
        return H
    row_bytes = max(1, W * C * itemsize)
    within = [d for d in cands if d * row_bytes <= target_bytes]
    if not within:
        return min(cands)
    smaller = [d for d in within if d < H]       # prefer >1 H-tile (megacore)
    return max(smaller) if smaller else max(within)


def _pick_expand_rows(H, W, cap):
    """Largest divisor of H that is <= cap and keeps TH*W sublane-aligned."""
    best = None
    for d in range(1, min(H, cap) + 1):
        if H % d == 0 and (d * W) % 8 == 0:
            best = d
    return best if best is not None else H


def asff_forward(x1, x2, x3, params, *, act_dtype=jnp.bfloat16):
    N, C, H, W = x3.shape
    itemsize = jnp.dtype(act_dtype).itemsize
    f32 = jnp.float32

    # ---- parameter-side glue (a handful of scalars / tiny tensors) ----
    wsm = jax.nn.softmax(params["weight"].astype(f32))               # (3,)
    wr_t = params["reduce_w"][:, :, 0, 0].T.astype(act_dtype)        # (Cin, Cout)
    br = params["reduce_b"].reshape(1, C).astype(f32)
    we = params["expand_w"].transpose(2, 3, 1, 0).reshape(9, C, C).astype(act_dtype)
    be = params["expand_b"].reshape(1, C).astype(f32)

    # ---- activations: NCHW -> NHWC + (coarse-level) W-direction resize ----
    # TODO(synk): keep NHWC end-to-end if the surrounding model permits.
    x3f, _ = _prepare_level(x3, H, W, act_dtype)                     # (N, H, W, C)
    x1w, r1 = _prepare_level(x1, H, W, act_dtype)                    # (N, H//r1, W, C)
    x2w, r2 = _prepare_level(x2, H, W, act_dtype)                    # (N, H//r2, W, C)

    # ---------------- kernel A: softmax fusion + 1x1 reduce -----------------
    tha = _pick_fuse_rows(H, W, C, (r1, r2), itemsize)
    fused_flat = pl.pallas_call(
        partial(_fuse_reduce_kernel, r1=r1, r2=r2),
        out_shape=jax.ShapeDtypeStruct((N, H * W, C), act_dtype),
        grid=(N, H // tha),
        in_specs=[
            pl.BlockSpec(memory_space=pltpu.MemorySpace.SMEM),       # (3,) weights
            pl.BlockSpec((None, tha // r1, W, C), lambda n, t: (n, t, 0, 0)),
            pl.BlockSpec((None, tha // r2, W, C), lambda n, t: (n, t, 0, 0)),
            pl.BlockSpec((None, tha, W, C),       lambda n, t: (n, t, 0, 0)),
            pl.BlockSpec((C, C), lambda n, t: (0, 0)),
            pl.BlockSpec((1, C), lambda n, t: (0, 0)),
        ],
        out_specs=pl.BlockSpec((None, tha * W, C), lambda n, t: (n, t, 0)),
        compiler_params=pltpu.CompilerParams(
            dimension_semantics=("parallel", "parallel")),
    )(wsm, x1w, x2w, x3f, wr_t, br)

    # 1-px zero halo for the 3x3 conv.  The reshape is a free metadata change;
    # the pad is a single bf16 read+write pass over the fused map.
    # TODO(synk): fold the halo into kernel B (in-kernel window build with
    # pl.when boundary branches) to remove this last glue pass.
    fused_pad = jnp.pad(fused_flat.reshape(N, H, W, C),
                        ((0, 0), (1, 1), (1, 1), (0, 0)))

    # ---------------- kernel B: 3x3 expand conv (padding=1) -----------------
    # Output-channel tile: 256 matches the 256-wide v6e/v7x MXU (128 is fine
    # on v5e); fall back to full C when it does not divide.
    tc = 256 if C % 256 == 0 else (128 if C % 128 == 0 else C)
    thb = _pick_expand_rows(H, W, 16 if W >= 32 else 32)

    cparams = dict(dimension_semantics=("parallel", "parallel", "parallel"))
    vmem_need = 2 * ((H + 2) * (W + 2) * C * itemsize      # padded image (dbl-buf)
                     + 9 * C * tc * itemsize               # conv taps
                     + thb * W * tc * 4)                   # f32 output block
    if vmem_need > 24 * 1024 * 1024:
        # TODO(synk): H-halo tiling of the padded image (instead of a whole
        # image per block) for very large maps on v7x's 64 MiB VMEM.
        cparams["vmem_limit_bytes"] = int(min(vmem_need + (8 << 20), 64 << 20))

    out_flat = pl.pallas_call(
        partial(_expand_kernel, TH=thb, W=W),
        out_shape=jax.ShapeDtypeStruct((N, H * W, C), f32),
        grid=(N, C // tc, H // thb),
        in_specs=[
            pl.BlockSpec((None, H + 2, W + 2, C), lambda n, cj, ht: (n, 0, 0, 0)),
            pl.BlockSpec((9, C, tc),              lambda n, cj, ht: (0, 0, cj)),
            pl.BlockSpec((1, tc),                 lambda n, cj, ht: (0, cj)),
        ],
        out_specs=pl.BlockSpec((None, thb * W, tc), lambda n, cj, ht: (n, ht, cj)),
        compiler_params=pltpu.CompilerParams(**cparams),
    )(fused_pad, we, be)

    # Return in PyTorch's NCHW convention (interface glue).
    return jnp.transpose(out_flat.reshape(N, H, W, C), (0, 3, 1, 2))


# ---------------------------- pure-JAX reference ----------------------------

def _nearest_resize_nchw(x, out_h, out_w):
    """F.interpolate(mode='nearest') semantics: src = floor(dst * in/out)."""
    _, _, hin, win = x.shape
    hi = (jnp.arange(out_h) * hin) // out_h
    wi = (jnp.arange(out_w) * win) // out_w
    return x[:, :, hi[:, None], wi[None, :]]


def asff_reference(x1, x2, x3, params):
    N, C, H, W = x3.shape
    hp = jax.lax.Precision.HIGHEST
    reduce_w = params["reduce_w"][:, :, 0, 0]
    x1u = _nearest_resize_nchw(x1, H, W)
    x2u = _nearest_resize_nchw(x2, H, W)
    w = jax.nn.softmax(params["weight"])

    def red(x):
        return (jnp.einsum("nchw,oc->nohw", x, reduce_w, precision=hp)
                + params["reduce_b"][None, :, None, None])

    fused = w[0] * red(x1u) + w[1] * red(x2u) + w[2] * red(x3)
    fp = jnp.pad(fused, ((0, 0), (0, 0), (1, 1), (1, 1)))
    out = jnp.zeros((N, C, H, W), jnp.float32) + params["expand_b"][None, :, None, None]
    for kh in range(3):
        for kw in range(3):
            out = out + jnp.einsum("nchw,oc->nohw",
                                   fp[:, :, kh:kh + H, kw:kw + W],
                                   params["expand_w"][:, :, kh, kw], precision=hp)
    return out


# ----------------------------------- main -----------------------------------

if __name__ == "__main__":
    key = jax.random.PRNGKey(0)
    N, C = 2, 4
    k = jax.random.split(key, 8)
    # x3 sets the output spatial size; x1/x2 are coarser pyramid levels.
    x1 = jax.random.normal(k[0], (N, C, 4, 4), jnp.float32)
    x2 = jax.random.normal(k[1], (N, C, 8, 8), jnp.float32)
    x3 = jax.random.normal(k[2], (N, C, 16, 16), jnp.float32)

    params = {
        "reduce_w": 0.2 * jax.random.normal(k[3], (C, C, 1, 1), jnp.float32),
        "reduce_b": 0.1 * jax.random.normal(k[4], (C,), jnp.float32),
        "weight": jnp.ones((3,), jnp.float32),   # matches nn.Parameter(torch.ones(3))
        "expand_w": 0.2 * jax.random.normal(k[5], (C, C, 3, 3), jnp.float32),
        "expand_b": 0.1 * jax.random.normal(k[6], (C,), jnp.float32),
    }

    out = jax.block_until_ready(jax.jit(asff_forward)(x1, x2, x3, params))
    ref = asff_reference(x1, x2, x3, params)
    assert out.shape == (N, C, 16, 16)
    # bf16 activations/weights over HBM and into the MXU (f32 accumulation):
    # tolerance is correspondingly looser than a pure-f32 run (reference uses
    # Precision.HIGHEST f32 everywhere).
    np.testing.assert_allclose(np.asarray(out), np.asarray(ref), rtol=4e-2, atol=4e-2)
    print("KERNEL_OK")
</pallas_src>

<mosaic_0001>
module attributes {stable_mosaic.version = 11 : i64} {
  func.func @_fuse_reduce_kernel(%arg0: i32, %arg1: i32, %arg2: memref<3xf32, #tpu.memory_space<smem>>, %arg3: memref<1x2x16x4xbf16, #tpu.memory_space<vmem>>, %arg4: memref<1x4x16x4xbf16, #tpu.memory_space<vmem>>, %arg5: memref<1x8x16x4xbf16, #tpu.memory_space<vmem>>, %arg6: memref<4x4xbf16, #tpu.memory_space<vmem>>, %arg7: memref<1x4xf32, #tpu.memory_space<vmem>>, %arg8: memref<1x128x4xbf16, #tpu.memory_space<vmem>>) attributes {dimension_semantics = [#tpu.dimension_semantics<parallel>, #tpu.dimension_semantics<parallel>], iteration_bounds = array<i64: 2, 2>, scalar_prefetch = 0 : i64, scratch_operands = 0 : i64, tpu.core_type = #tpu.core_type<tc>, window_params = [{transform_indices = @transform_0, window_bounds = array<i64: 3>}, {transform_indices = @transform_1, window_bounds = array<i64: 1, 2, 16, 4>}, {transform_indices = @transform_2, window_bounds = array<i64: 1, 4, 16, 4>}, {transform_indices = @transform_3, window_bounds = array<i64: 1, 8, 16, 4>}, {pipeline_mode = #tpu.pipeline_mode<synchronous>, transform_indices = @transform_4, window_bounds = array<i64: 4, 4>}, {pipeline_mode = #tpu.pipeline_mode<synchronous>, transform_indices = @transform_5, window_bounds = array<i64: 1, 4>}, {transform_indices = @transform_6, window_bounds = array<i64: 1, 128, 4>}]} {
    %c0 = arith.constant 0 : index
    %0 = memref.load %arg2[%c0] : memref<3xf32, #tpu.memory_space<smem>>
    %c1 = arith.constant 1 : index
    %1 = memref.load %arg2[%c1] : memref<3xf32, #tpu.memory_space<smem>>
    %c2 = arith.constant 2 : index
    %2 = memref.load %arg2[%c2] : memref<3xf32, #tpu.memory_space<smem>>
    %c0_0 = arith.constant 0 : index
    %c0_1 = arith.constant 0 : index
    %c0_2 = arith.constant 0 : index
    %c0_3 = arith.constant 0 : index
    %3 = vector.load %arg3[%c0_0, %c0_1, %c0_2, %c0_3] : memref<1x2x16x4xbf16, #tpu.memory_space<vmem>>, vector<1x2x16x4xbf16>
    %4 = vector.shape_cast %3 : vector<1x2x16x4xbf16> to vector<2x16x4xbf16>
    %5 = vector.shape_cast %4 : vector<2x16x4xbf16> to vector<2x1x16x4xbf16>
    %6 = vector.shape_cast %5 : vector<2x1x16x4xbf16> to vector<2x1x16x4xbf16>
    %7 = vector.broadcast %6 : vector<2x1x16x4xbf16> to vector<2x4x16x4xbf16>
    %8 = vector.shape_cast %7 : vector<2x4x16x4xbf16> to vector<8x16x4xbf16>
    %9 = arith.extf %8 : vector<8x16x4xbf16> to vector<8x16x4xf32>
    %c0_4 = arith.constant 0 : index
    %c0_5 = arith.constant 0 : index
    %c0_6 = arith.constant 0 : index
    %c0_7 = arith.constant 0 : index
    %10 = vector.load %arg4[%c0_4, %c0_5, %c0_6, %c0_7] : memref<1x4x16x4xbf16, #tpu.memory_space<vmem>>, vector<1x4x16x4xbf16>
    %11 = vector.shape_cast %10 : vector<1x4x16x4xbf16> to vector<4x16x4xbf16>
    %12 = vector.shape_cast %11 : vector<4x16x4xbf16> to vector<4x1x16x4xbf16>
    %13 = vector.shape_cast %12 : vector<4x1x16x4xbf16> to vector<4x1x16x4xbf16>
    %14 = vector.broadcast %13 : vector<4x1x16x4xbf16> to vector<4x2x16x4xbf16>
    %15 = vector.shape_cast %14 : vector<4x2x16x4xbf16> to vector<8x16x4xbf16>
    %16 = arith.extf %15 : vector<8x16x4xbf16> to vector<8x16x4xf32>
    %17 = vector.broadcast %0 : f32 to vector<8x16x4xf32>
    %18 = arith.mulf %17, %9 : vector<8x16x4xf32>
    %19 = vector.broadcast %1 : f32 to vector<8x16x4xf32>
    %20 = arith.mulf %19, %16 : vector<8x16x4xf32>
    %21 = arith.addf %18, %20 : vector<8x16x4xf32>
    %c0_8 = arith.constant 0 : index
    %c0_9 = arith.constant 0 : index
    %c0_10 = arith.constant 0 : index
    %c0_11 = arith.constant 0 : index
    %22 = vector.load %arg5[%c0_8, %c0_9, %c0_10, %c0_11] : memref<1x8x16x4xbf16, #tpu.memory_space<vmem>>, vector<1x8x16x4xbf16>
    %23 = vector.shape_cast %22 : vector<1x8x16x4xbf16> to vector<8x16x4xbf16>
    %24 = arith.extf %23 : vector<8x16x4xbf16> to vector<8x16x4xf32>
    %25 = vector.broadcast %2 : f32 to vector<8x16x4xf32>
    %26 = arith.mulf %25, %24 : vector<8x16x4xf32>
    %27 = arith.addf %21, %26 : vector<8x16x4xf32>
    %28 = vector.shape_cast %27 : vector<8x16x4xf32> to vector<128x4xf32>
    %29 = arith.truncf %28 : vector<128x4xf32> to vector<128x4xbf16>
    %c0_12 = arith.constant 0 : index
    %c0_13 = arith.constant 0 : index
    %30 = vector.load %arg6[%c0_12, %c0_13] : memref<4x4xbf16, #tpu.memory_space<vmem>>, vector<4x4xbf16>
    %cst = arith.constant dense<0.000000e+00> : vector<128x4xf32>
    %31 = tpu.matmul %29, %30, %cst {dimension_numbers = #tpu.dot_dimension_numbers<[1], [0], [0], [1], [0, 0, 1, 1], [], []>} : vector<128x4xbf16>, vector<4x4xbf16>, vector<128x4xf32> -> vector<128x4xf32>
    %c0_14 = arith.constant 0 : index
    %c0_15 = arith.constant 0 : index
    %32 = vector.load %arg7[%c0_14, %c0_15] : memref<1x4xf32, #tpu.memory_space<vmem>>, vector<1x4xf32>
    %33 = vector.broadcast %32 : vector<1x4xf32> to vector<128x4xf32>
    %34 = arith.addf %31, %33 : vector<128x4xf32>
    %35 = arith.truncf %34 : vector<128x4xf32> to vector<128x4xbf16>
    %c0_16 = arith.constant 0 : index
    %c0_17 = arith.constant 0 : index
    %c0_18 = arith.constant 0 : index
    %36 = vector.load %arg8[%c0_16, %c0_17, %c0_18] : memref<1x128x4xbf16, #tpu.memory_space<vmem>>, vector<1x128x4xbf16>
    %37 = vector.shape_cast %36 : vector<1x128x4xbf16> to vector<128x4xbf16>
    %38 = vector.shape_cast %35 : vector<128x4xbf16> to vector<1x128x4xbf16>
    tpu.vector_store %arg8[%c0_16, %c0_17, %c0_18], %38 {strides = array<i32>} : memref<1x128x4xbf16, #tpu.memory_space<vmem>>, vector<1x128x4xbf16>,
    return
  }
  func.func @transform_0(%arg0: i32, %arg1: i32) -> i32 {
    %c0_i32 = arith.constant 0 : i32
    %c0_i32_0 = arith.constant 0 : i32
    return %c0_i32 : i32
  }
  func.func @transform_1(%arg0: i32, %arg1: i32) -> (i32, i32, i32, i32) {
    %c0_i32 = arith.constant 0 : i32
    %c0_i32_0 = arith.constant 0 : i32
    %c0_i32_1 = arith.constant 0 : i32
    return %arg0, %arg1, %c0_i32, %c0_i32_0 : i32, i32, i32, i32
  }
  func.func @transform_2(%arg0: i32, %arg1: i32) -> (i32, i32, i32, i32) {
    %c0_i32 = arith.constant 0 : i32
    %c0_i32_0 = arith.constant 0 : i32
    %c0_i32_1 = arith.constant 0 : i32
    return %arg0, %arg1, %c0_i32, %c0_i32_0 : i32, i32, i32, i32
  }
  func.func @transform_3(%arg0: i32, %arg1: i32) -> (i32, i32, i32, i32) {
    %c0_i32 = arith.constant 0 : i32
    %c0_i32_0 = arith.constant 0 : i32
    %c0_i32_1 = arith.constant 0 : i32
    return %arg0, %arg1, %c0_i32, %c0_i32_0 : i32, i32, i32, i32
  }
  func.func @transform_4(%arg0: i32, %arg1: i32) -> (i32, i32) {
    %c0_i32 = arith.constant 0 : i32
    %c0_i32_0 = arith.constant 0 : i32
    %c0_i32_1 = arith.constant 0 : i32
    return %c0_i32, %c0_i32_0 : i32, i32
  }
  func.func @transform_5(%arg0: i32, %arg1: i32) -> (i32, i32) {
    %c0_i32 = arith.constant 0 : i32
    %c0_i32_0 = arith.constant 0 : i32
    %c0_i32_1 = arith.constant 0 : i32
    return %c0_i32, %c0_i32_0 : i32, i32
  }
  func.func @transform_6(%arg0: i32, %arg1: i32) -> (i32, i32, i32) {
    %c0_i32 = arith.constant 0 : i32
    %c0_i32_0 = arith.constant 0 : i32
    return %arg0, %arg1, %c0_i32 : i32, i32, i32
  }
}

module attributes {stable_mosaic.version = 11 : i64} {
  func.func @_expand_kernel(%arg0: i32, %arg1: i32, %arg2: i32, %arg3: memref<1x18x18x4xbf16, #tpu.memory_space<vmem>>, %arg4: memref<9x4x4xbf16, #tpu.memory_space<vmem>>, %arg5: memref<1x4xf32, #tpu.memory_space<vmem>>, %arg6: memref<1x256x4xf32, #tpu.memory_space<vmem>>) attributes {dimension_semantics = [#tpu.dimension_semantics<parallel>, #tpu.dimension_semantics<parallel>, #tpu.dimension_semantics<parallel>], iteration_bounds = array<i64: 2, 1, 1>, scalar_prefetch = 0 : i64, scratch_operands = 0 : i64, tpu.core_type = #tpu.core_type<tc>, window_params = [{transform_indices = @transform_0, window_bounds = array<i64: 1, 18, 18, 4>}, {transform_indices = @transform_1, window_bounds = array<i64: 9, 4, 4>}, {transform_indices = @transform_2, window_bounds = array<i64: 1, 4>}, {transform_indices = @transform_3, window_bounds = array<i64: 1, 256, 4>}]} {
    %c16_i32 = arith.constant 16 : i32
    %0 = arith.muli %arg2, %c16_i32 : i32
    %1 = tpu.assume_multiple %0, 16 : i32
    %c0_i32 = arith.constant 0 : i32
    %2 = arith.addi %1, %c0_i32 : i32
    %c0 = arith.constant 0 : index
    %3 = arith.index_cast %2 : i32 to index
    %c0_0 = arith.constant 0 : index
    %c0_1 = arith.constant 0 : index
    %4 = vector.load %arg3[%c0, %3, %c0_0, %c0_1] : memref<1x18x18x4xbf16, #tpu.memory_space<vmem>>, vector<1x16x16x4xbf16>
    %5 = vector.shape_cast %4 : vector<1x16x16x4xbf16> to vector<16x16x4xbf16>
    %6 = vector.shape_cast %5 : vector<16x16x4xbf16> to vector<256x4xbf16>
    %c0_2 = arith.constant 0 : index
    %c0_3 = arith.constant 0 : index
    %c0_4 = arith.constant 0 : index
    %7 = vector.load %arg4[%c0_2, %c0_3, %c0_4] : memref<9x4x4xbf16, #tpu.memory_space<vmem>>, vector<1x4x4xbf16>
    %8 = vector.shape_cast %7 : vector<1x4x4xbf16> to vector<4x4xbf16>
    %cst = arith.constant dense<0.000000e+00> : vector<256x4xf32>
    %9 = tpu.matmul %6, %8, %cst {dimension_numbers = #tpu.dot_dimension_numbers<[1], [0], [0], [1], [0, 0, 1, 1], [], []>} : vector<256x4xbf16>, vector<4x4xbf16>, vector<256x4xf32> -> vector<256x4xf32>
    %c0_5 = arith.constant 0 : index
    %c0_6 = arith.constant 0 : index
    %10 = vector.load %arg5[%c0_5, %c0_6] : memref<1x4xf32, #tpu.memory_space<vmem>>, vector<1x4xf32>
    %11 = vector.broadcast %10 : vector<1x4xf32> to vector<256x4xf32>
    %12 = arith.addf %9, %11 : vector<256x4xf32>
    %c0_7 = arith.constant 0 : index
    %c0_8 = arith.constant 0 : index
    %c0_9 = arith.constant 0 : index
    %13 = vector.load %arg6[%c0_7, %c0_8, %c0_9] : memref<1x256x4xf32, #tpu.memory_space<vmem>>, vector<1x256x4xf32>
    %14 = vector.shape_cast %13 : vector<1x256x4xf32> to vector<256x4xf32>
    %15 = vector.shape_cast %12 : vector<256x4xf32> to vector<1x256x4xf32>
    tpu.vector_store %arg6[%c0_7, %c0_8, %c0_9], %15 {strides = array<i32>} : memref<1x256x4xf32, #tpu.memory_space<vmem>>, vector<1x256x4xf32>,
    %c0_i32_10 = arith.constant 0 : i32
    %16 = arith.addi %1, %c0_i32_10 : i32
    %c0_11 = arith.constant 0 : index
    %17 = arith.index_cast %16 : i32 to index
    %c1 = arith.constant 1 : index
    %c0_12 = arith.constant 0 : index
    %18 = vector.load %arg3[%c0_11, %17, %c1, %c0_12] : memref<1x18x18x4xbf16, #tpu.memory_space<vmem>>, vector<1x16x16x4xbf16>
    %19 = vector.shape_cast %18 : vector<1x16x16x4xbf16> to vector<16x16x4xbf16>
    %20 = vector.shape_cast %19 : vector<16x16x4xbf16> to vector<256x4xbf16>
    %c1_13 = arith.constant 1 : index
    %c0_14 = arith.constant 0 : index
    %c0_15 = arith.constant 0 : index
    %21 = vector.load %arg4[%c1_13, %c0_14, %c0_15] : memref<9x4x4xbf16, #tpu.memory_space<vmem>>, vector<1x4x4xbf16>
    %22 = vector.shape_cast %21 : vector<1x4x4xbf16> to vector<4x4xbf16>
    %cst_16 = arith.constant dense<0.000000e+00> : vector<256x4xf32>
    %23 = tpu.matmul %20, %22, %cst_16 {dimension_numbers = #tpu.dot_dimension_numbers<[1], [0], [0], [1], [0, 0, 1, 1], [], []>} : vector<256x4xbf16>, vector<4x4xbf16>, vector<256x4xf32> -> vector<256x4xf32>
    %c0_17 = arith.constant 0 : index
    %c0_18 = arith.constant 0 : index
    %c0_19 = arith.constant 0 : index
    %24 = vector.load %arg6[%c0_17, %c0_18, %c0_19] : memref<1x256x4xf32, #tpu.memory_space<vmem>>, vector<1x256x4xf32>
    %25 = vector.shape_cast %24 : vector<1x256x4xf32> to vector<256x4xf32>
    %26 = arith.addf %25, %23 : vector<256x4xf32>
    %c0_20 = arith.constant 0 : index
    %c0_21 = arith.constant 0 : index
    %c0_22 = arith.constant 0 : index
    %27 = vector.load %arg6[%c0_20, %c0_21, %c0_22] : memref<1x256x4xf32, #tpu.memory_space<vmem>>, vector<1x256x4xf32>
    %28 = vector.shape_cast %27 : vector<1x256x4xf32> to vector<256x4xf32>
    %29 = vector.shape_cast %26 : vector<256x4xf32> to vector<1x256x4xf32>
    tpu.vector_store %arg6[%c0_20, %c0_21, %c0_22], %29 {strides = array<i32>} : memref<1x256x4xf32, #tpu.memory_space<vmem>>, vector<1x256x4xf32>,
    %c0_i32_23 = arith.constant 0 : i32
    %30 = arith.addi %1, %c0_i32_23 : i32
    %c0_24 = arith.constant 0 : index
    %31 = arith.index_cast %30 : i32 to index
    %c2 = arith.constant 2 : index
    %c0_25 = arith.constant 0 : index
    %32 = vector.load %arg3[%c0_24, %31, %c2, %c0_25] : memref<1x18x18x4xbf16, #tpu.memory_space<vmem>>, vector<1x16x16x4xbf16>
    %33 = vector.shape_cast %32 : vector<1x16x16x4xbf16> to vector<16x16x4xbf16>
    %34 = vector.shape_cast %33 : vector<16x16x4xbf16> to vector<256x4xbf16>
    %c2_26 = arith.constant 2 : index
    %c0_27 = arith.constant 0 : index
    %c0_28 = arith.constant 0 : index
    %35 = vector.load %arg4[%c2_26, %c0_27, %c0_28] : memref<9x4x4xbf16, #tpu.memory_space<vmem>>, vector<1x4x4xbf16>
    %36 = vector.shape_cast %35 : vector<1x4x4xbf16> to vector<4x4xbf16>
    %cst_29 = arith.constant dense<0.000000e+00> : vector<256x4xf32>
    %37 = tpu.matmul %34, %36, %cst_29 {dimension_numbers = #tpu.dot_dimension_numbers<[1], [0], [0], [1], [0, 0, 1, 1], [], []>} : vector<256x4xbf16>, vector<4x4xbf16>, vector<256x4xf32> -> vector<256x4xf32>
    %c0_30 = arith.constant 0 : index
    %c0_31 = arith.constant 0 : index
    %c0_32 = arith.constant 0 : index
    %38 = vector.load %arg6[%c0_30, %c0_31, %c0_32] : memref<1x256x4xf32, #tpu.memory_space<vmem>>, vector<1x256x4xf32>
    %39 = vector.shape_cast %38 : vector<1x256x4xf32> to vector<256x4xf32>
    %40 = arith.addf %39, %37 : vector<256x4xf32>
    %c0_33 = arith.constant 0 : index
    %c0_34 = arith.constant 0 : index
    %c0_35 = arith.constant 0 : index
    %41 = vector.load %arg6[%c0_33, %c0_34, %c0_35] : memref<1x256x4xf32, #tpu.memory_space<vmem>>, vector<1x256x4xf32>
    %42 = vector.shape_cast %41 : vector<1x256x4xf32> to vector<256x4xf32>
    %43 = vector.shape_cast %40 : vector<256x4xf32> to vector<1x256x4xf32>
    tpu.vector_store %arg6[%c0_33, %c0_34, %c0_35], %43 {strides = array<i32>} : memref<1x256x4xf32, #tpu.memory_space<vmem>>, vector<1x256x4xf32>,
    %c1_i32 = arith.constant 1 : i32
    %44 = arith.addi %1, %c1_i32 : i32
    %c0_36 = arith.constant 0 : index
    %45 = arith.index_cast %44 : i32 to index
    %c0_37 = arith.constant 0 : index
    %c0_38 = arith.constant 0 : index
    %46 = vector.load %arg3[%c0_36, %45, %c0_37, %c0_38] : memref<1x18x18x4xbf16, #tpu.memory_space<vmem>>, vector<1x16x16x4xbf16>
    %47 = vector.shape_cast %46 : vector<1x16x16x4xbf16> to vector<16x16x4xbf16>
    %48 = vector.shape_cast %47 : vector<16x16x4xbf16> to vector<256x4xbf16>
    %c3 = arith.constant 3 : index
    %c0_39 = arith.constant 0 : index
    %c0_40 = arith.constant 0 : index
    %49 = vector.load %arg4[%c3, %c0_39, %c0_40] : memref<9x4x4xbf16, #tpu.memory_space<vmem>>, vector<1x4x4xbf16>
    %50 = vector.shape_cast %49 : vector<1x4x4xbf16> to vector<4x4xbf16>
    %cst_41 = arith.constant dense<0.000000e+00> : vector<256x4xf32>
    %51 = tpu.matmul %48, %50, %cst_41 {dimension_numbers = #tpu.dot_dimension_numbers<[1], [0], [0], [1], [0, 0, 1, 1], [], []>} : vector<256x4xbf16>, vector<4x4xbf16>, vector<256x4xf32> -> vector<256x4xf32>
    %c0_42 = arith.constant 0 : index
    %c0_43 = arith.constant 0 : index
    %c0_44 = arith.constant 0 : index
    %52 = vector.load %arg6[%c0_42, %c0_43, %c0_44] : memref<1x256x4xf32, #tpu.memory_space<vmem>>, vector<1x256x4xf32>
    %53 = vector.shape_cast %52 : vector<1x256x4xf32> to vector<256x4xf32>
    %54 = arith.addf %53, %51 : vector<256x4xf32>
    %c0_45 = arith.constant 0 : index
    %c0_46 = arith.constant 0 : index
    %c0_47 = arith.constant 0 : index
    %55 = vector.load %arg6[%c0_45, %c0_46, %c0_47] : memref<1x256x4xf32, #tpu.memory_space<vmem>>, vector<1x256x4xf32>
    %56 = vector.shape_cast %55 : vector<1x256x4xf32> to vector<256x4xf32>
    %57 = vector.shape_cast %54 : vector<256x4xf32> to vector<1x256x4xf32>
    tpu.vector_store %arg6[%c0_45, %c0_46, %c0_47], %57 {strides = array<i32>} : memref<1x256x4xf32, #tpu.memory_space<vmem>>, vector<1x256x4xf32>,
    %c1_i32_48 = arith.constant 1 : i32
    %58 = arith.addi %1, %c1_i32_48 : i32
    %c0_49 = arith.constant 0 : index
    %59 = arith.index_cast %58 : i32 to index
    %c1_50 = arith.constant 1 : index
    %c0_51 = arith.constant 0 : index
    %60 = vector.load %arg3[%c0_49, %59, %c1_50, %c0_51] : memref<1x18x18x4xbf16, #tpu.memory_space<vmem>>, vector<1x16x16x4xbf16>
    %61 = vector.shape_cast %60 : vector<1x16x16x4xbf16> to vector<16x16x4xbf16>
    %62 = vector.shape_cast %61 : vector<16x16x4xbf16> to vector<256x4xbf16>
    %c4 = arith.constant 4 : index
    %c0_52 = arith.constant 0 : index
    %c0_53 = arith.constant 0 : index
    %63 = vector.load %arg4[%c4, %c0_52, %c0_53] : memref<9x4x4xbf16, #tpu.memory_space<vmem>>, vector<1x4x4xbf16>
    %64 = vector.shape_cast %63 : vector<1x4x4xbf16> to vector<4x4xbf16>
    %cst_54 = arith.constant dense<0.000000e+00> : vector<256x4xf32>
    %65 = tpu.matmul %62, %64, %cst_54 {dimension_numbers = #tpu.dot_dimension_numbers<[1], [0], [0], [1], [0, 0, 1, 1], [], []>} : vector<256x4xbf16>, vector<4x4xbf16>, vector<256x4xf32> -> vector<256x4xf32>
    %c0_55 = arith.constant 0 : index
    %c0_56 = arith.constant 0 : index
    %c0_57 = arith.constant 0 : index
    %66 = vector.load %arg6[%c0_55, %c0_56, %c0_57] : memref<1x256x4xf32, #tpu.memory_space<vmem>>, vector<1x256x4xf32>
    %67 = vector.shape_cast %66 : vector<1x256x4xf32> to vector<256x4xf32>
    %68 = arith.addf %67, %65 : vector<256x4xf32>
    %c0_58 = arith.constant 0 : index
    %c0_59 = arith.constant 0 : index
    %c0_60 = arith.constant 0 : index
    %69 = vector.load %arg6[%c0_58, %c0_59, %c0_60] : memref<1x256x4xf32, #tpu.memory_space<vmem>>, vector<1x256x4xf32>
    %70 = vector.shape_cast %69 : vector<1x256x4xf32> to vector<256x4xf32>
    %71 = vector.shape_cast %68 : vector<256x4xf32> to vector<1x256x4xf32>
    tpu.vector_store %arg6[%c0_58, %c0_59, %c0_60], %71 {strides = array<i32>} : memref<1x256x4xf32, #tpu.memory_space<vmem>>, vector<1x256x4xf32>,
    %c1_i32_61 = arith.constant 1 : i32
    %72 = arith.addi %1, %c1_i32_61 : i32
    %c0_62 = arith.constant 0 : index
    %73 = arith.index_cast %72 : i32 to index
    %c2_63 = arith.constant 2 : index
    %c0_64 = arith.constant 0 : index
    %74 = vector.load %arg3[%c0_62, %73, %c2_63, %c0_64] : memref<1x18x18x4xbf16, #tpu.memory_space<vmem>>, vector<1x16x16x4xbf16>
    %75 = vector.shape_cast %74 : vector<1x16x16x4xbf16> to vector<16x16x4xbf16>
    %76 = vector.shape_cast %75 : vector<16x16x4xbf16> to vector<256x4xbf16>
    %c5 = arith.constant 5 : index
    %c0_65 = arith.constant 0 : index
    %c0_66 = arith.constant 0 : index
    %77 = vector.load %arg4[%c5, %c0_65, %c0_66] : memref<9x4x4xbf16, #tpu.memory_space<vmem>>, vector<1x4x4xbf16>
    %78 = vector.shape_cast %77 : vector<1x4x4xbf16> to vector<4x4xbf16>
    %cst_67 = arith.constant dense<0.000000e+00> : vector<256x4xf32>
    %79 = tpu.matmul %76, %78, %cst_67 {dimension_numbers = #tpu.dot_dimension_numbers<[1], [0], [0], [1], [0, 0, 1, 1], [], []>} : vector<256x4xbf16>, vector<4x4xbf16>, vector<256x4xf32> -> vector<256x4xf32>
    %c0_68 = arith.constant 0 : index
    %c0_69 = arith.constant 0 : index
    %c0_70 = arith.constant 0 : index
    %80 = vector.load %arg6[%c0_68, %c0_69, %c0_70] : memref<1x256x4xf32, #tpu.memory_space<vmem>>, vector<1x256x4xf32>
    %81 = vector.shape_cast %80 : vector<1x256x4xf32> to vector<256x4xf32>
    %82 = arith.addf %81, %79 : vector<256x4xf32>
    %c0_71 = arith.constant 0 : index
    %c0_72 = arith.constant 0 : index
    %c0_73 = arith.constant 0 : index
    %83 = vector.load %arg6[%c0_71, %c0_72, %c0_73] : memref<1x256x4xf32, #tpu.memory_space<vmem>>, vector<1x256x4xf32>
    %84 = vector.shape_cast %83 : vector<1x256x4xf32> to vector<256x4xf32>
    %85 = vector.shape_cast %82 : vector<256x4xf32> to vector<1x256x4xf32>
    tpu.vector_store %arg6[%c0_71, %c0_72, %c0_73], %85 {strides = array<i32>} : memref<1x256x4xf32, #tpu.memory_space<vmem>>, vector<1x256x4xf32>,
    %c2_i32 = arith.constant 2 : i32
    %86 = arith.addi %1, %c2_i32 : i32
    %c0_74 = arith.constant 0 : index
    %87 = arith.index_cast %86 : i32 to index
    %c0_75 = arith.constant 0 : index
    %c0_76 = arith.constant 0 : index
    %88 = vector.load %arg3[%c0_74, %87, %c0_75, %c0_76] : memref<1x18x18x4xbf16, #tpu.memory_space<vmem>>, vector<1x16x16x4xbf16>
    %89 = vector.shape_cast %88 : vector<1x16x16x4xbf16> to vector<16x16x4xbf16>
    %90 = vector.shape_cast %89 : vector<16x16x4xbf16> to vector<256x4xbf16>
    %c6 = arith.constant 6 : index
    %c0_77 = arith.constant 0 : index
    %c0_78 = arith.constant 0 : index
    %91 = vector.load %arg4[%c6, %c0_77, %c0_78] : memref<9x4x4xbf16, #tpu.memory_space<vmem>>, vector<1x4x4xbf16>
    %92 = vector.shape_cast %91 : vector<1x4x4xbf16> to vector<4x4xbf16>
    %cst_79 = arith.constant dense<0.000000e+00> : vector<256x4xf32>
    %93 = tpu.matmul %90, %92, %cst_79 {dimension_numbers = #tpu.dot_dimension_numbers<[1], [0], [0], [1], [0, 0, 1, 1], [], []>} : vector<256x4xbf16>, vector<4x4xbf16>, vector<256x4xf32> -> vector<256x4xf32>
    %c0_80 = arith.constant 0 : index
    %c0_81 = arith.constant 0 : index
    %c0_82 = arith.constant 0 : index
    %94 = vector.load %arg6[%c0_80, %c0_81, %c0_82] : memref<1x256x4xf32, #tpu.memory_space<vmem>>, vector<1x256x4xf32>
    %95 = vector.shape_cast %94 : vector<1x256x4xf32> to vector<256x4xf32>
    %96 = arith.addf %95, %93 : vector<256x4xf32>
    %c0_83 = arith.constant 0 : index
    %c0_84 = arith.constant 0 : index
    %c0_85 = arith.constant 0 : index
    %97 = vector.load %arg6[%c0_83, %c0_84, %c0_85] : memref<1x256x4xf32, #tpu.memory_space<vmem>>, vector<1x256x4xf32>
    %98 = vector.shape_cast %97 : vector<1x256x4xf32> to vector<256x4xf32>
    %99 = vector.shape_cast %96 : vector<256x4xf32> to vector<1x256x4xf32>
    tpu.vector_store %arg6[%c0_83, %c0_84, %c0_85], %99 {strides = array<i32>} : memref<1x256x4xf32, #tpu.memory_space<vmem>>, vector<1x256x4xf32>,
    %c2_i32_86 = arith.constant 2 : i32
    %100 = arith.addi %1, %c2_i32_86 : i32
    %c0_87 = arith.constant 0 : index
    %101 = arith.index_cast %100 : i32 to index
    %c1_88 = arith.constant 1 : index
    %c0_89 = arith.constant 0 : index
    %102 = vector.load %arg3[%c0_87, %101, %c1_88, %c0_89] : memref<1x18x18x4xbf16, #tpu.memory_space<vmem>>, vector<1x16x16x4xbf16>
    %103 = vector.shape_cast %102 : vector<1x16x16x4xbf16> to vector<16x16x4xbf16>
    %104 = vector.shape_cast %103 : vector<16x16x4xbf16> to vector<256x4xbf16>
    %c7 = arith.constant 7 : index
    %c0_90 = arith.constant 0 : index
    %c0_91 = arith.constant 0 : index
    %105 = vector.load %arg4[%c7, %c0_90, %c0_91] : memref<9x4x4xbf16, #tpu.memory_space<vmem>>, vector<1x4x4xbf16>
    %106 = vector.shape_cast %105 : vector<1x4x4xbf16> to vector<4x4xbf16>
    %cst_92 = arith.constant dense<0.000000e+00> : vector<256x4xf32>
    %107 = tpu.matmul %104, %106, %cst_92 {dimension_numbers = #tpu.dot_dimension_numbers<[1], [0], [0], [1], [0, 0, 1, 1], [], []>} : vector<256x4xbf16>, vector<4x4xbf16>, vector<256x4xf32> -> vector<256x4xf32>
    %c0_93 = arith.constant 0 : index
    %c0_94 = arith.constant 0 : index
    %c0_95 = arith.constant 0 : index
    %108 = vector.load %arg6[%c0_93, %c0_94, %c0_95] : memref<1x256x4xf32, #tpu.memory_space<vmem>>, vector<1x256x4xf32>
    %109 = vector.shape_cast %108 : vector<1x256x4xf32> to vector<256x4xf32>
    %110 = arith.addf %109, %107 : vector<256x4xf32>
    %c0_96 = arith.constant 0 : index
    %c0_97 = arith.constant 0 : index
    %c0_98 = arith.constant 0 : index
    %111 = vector.load %arg6[%c0_96, %c0_97, %c0_98] : memref<1x256x4xf32, #tpu.memory_space<vmem>>, vector<1x256x4xf32>
    %112 = vector.shape_cast %111 : vector<1x256x4xf32> to vector<256x4xf32>
    %113 = vector.shape_cast %110 : vector<256x4xf32> to vector<1x256x4xf32>
    tpu.vector_store %arg6[%c0_96, %c0_97, %c0_98], %113 {strides = array<i32>} : memref<1x256x4xf32, #tpu.memory_space<vmem>>, vector<1x256x4xf32>,
    %c2_i32_99 = arith.constant 2 : i32
    %114 = arith.addi %1, %c2_i32_99 : i32
    %c0_100 = arith.constant 0 : index
    %115 = arith.index_cast %114 : i32 to index
    %c2_101 = arith.constant 2 : index
    %c0_102 = arith.constant 0 : index
    %116 = vector.load %arg3[%c0_100, %115, %c2_101, %c0_102] : memref<1x18x18x4xbf16, #tpu.memory_space<vmem>>, vector<1x16x16x4xbf16>
    %117 = vector.shape_cast %116 : vector<1x16x16x4xbf16> to vector<16x16x4xbf16>
    %118 = vector.shape_cast %117 : vector<16x16x4xbf16> to vector<256x4xbf16>
    %c8 = arith.constant 8 : index
    %c0_103 = arith.constant 0 : index
    %c0_104 = arith.constant 0 : index
    %119 = vector.load %arg4[%c8, %c0_103, %c0_104] : memref<9x4x4xbf16, #tpu.memory_space<vmem>>, vector<1x4x4xbf16>
    %120 = vector.shape_cast %119 : vector<1x4x4xbf16> to vector<4x4xbf16>
    %cst_105 = arith.constant dense<0.000000e+00> : vector<256x4xf32>
    %121 = tpu.matmul %118, %120, %cst_105 {dimension_numbers = #tpu.dot_dimension_numbers<[1], [0], [0], [1], [0, 0, 1, 1], [], []>} : vector<256x4xbf16>, vector<4x4xbf16>, vector<256x4xf32> -> vector<256x4xf32>
    %c0_106 = arith.constant 0 : index
    %c0_107 = arith.constant 0 : index
    %c0_108 = arith.constant 0 : index
    %122 = vector.load %arg6[%c0_106, %c0_107, %c0_108] : memref<1x256x4xf32, #tpu.memory_space<vmem>>, vector<1x256x4xf32>
    %123 = vector.shape_cast %122 : vector<1x256x4xf32> to vector<256x4xf32>
    %124 = arith.addf %123, %121 : vector<256x4xf32>
    %c0_109 = arith.constant 0 : index
    %c0_110 = arith.constant 0 : index
    %c0_111 = arith.constant 0 : index
    %125 = vector.load %arg6[%c0_109, %c0_110, %c0_111] : memref<1x256x4xf32, #tpu.memory_space<vmem>>, vector<1x256x4xf32>
    %126 = vector.shape_cast %125 : vector<1x256x4xf32> to vector<256x4xf32>
    %127 = vector.shape_cast %124 : vector<256x4xf32> to vector<1x256x4xf32>
    tpu.vector_store %arg6[%c0_109, %c0_110, %c0_111], %127 {strides = array<i32>} : memref<1x256x4xf32, #tpu.memory_space<vmem>>, vector<1x256x4xf32>,
    return
  }
  func.func @transform_0(%arg0: i32, %arg1: i32, %arg2: i32) -> (i32, i32, i32, i32) {
    %c0_i32 = arith.constant 0 : i32
    %c0_i32_0 = arith.constant 0 : i32
    %c0_i32_1 = arith.constant 0 : i32
    %c0_i32_2 = arith.constant 0 : i32
    return %arg0, %c0_i32, %c0_i32_0, %c0_i32_1 : i32, i32, i32, i32
  }
  func.func @transform_1(%arg0: i32, %arg1: i32, %arg2: i32) -> (i32, i32, i32) {
    %c0_i32 = arith.constant 0 : i32
    %c0_i32_0 = arith.constant 0 : i32
    %c0_i32_1 = arith.constant 0 : i32
    return %c0_i32, %c0_i32_0, %arg1 : i32, i32, i32
  }
  func.func @transform_2(%arg0: i32, %arg1: i32, %arg2: i32) -> (i32, i32) {
    %c0_i32 = arith.constant 0 : i32
    %c0_i32_0 = arith.constant 0 : i32
    return %c0_i32, %arg1 : i32, i32
  }
  func.func @transform_3(%arg0: i32, %arg1: i32, %arg2: i32) -> (i32, i32, i32) {
    %c0_i32 = arith.constant 0 : i32
    return %arg0, %arg2, %arg1 : i32, i32, i32
  }
}

</mosaic_0001>

<llo_original>
// kernel: asff_forward.2
$region0: #{asff_forward.2}
  #allocation0 [shape = 'u32[]', space=smem, size = 0x4, offset = 0x4, fixed_abs, tag = 'smem constant byte address 0x4 - core index']
  #allocation1 [shape = 'u32[144,128]{1,0:T(1,128)}', space=vmem, size = 0x12000, scoped, tag = 'internal scratch']
  %s0 = inlined_call_operand.vmem [shape: f32[3], index: 0, kind: input, shape index: {}]
  %s1 = inlined_call_operand.vmem [shape: bf16[2,4,16,4], index: 1, kind: input, shape index: {}]
  %s2 = inlined_call_operand.vmem [shape: bf16[2,8,16,4], index: 2, kind: input, shape index: {}]
  %s3 = inlined_call_operand.vmem [shape: bf16[2,16,16,4], index: 3, kind: input, shape index: {}]
  %s4 = inlined_call_operand.vmem [shape: bf16[4,4], index: 4, kind: input, shape index: {}]
  %s5 = inlined_call_operand.vmem [shape: f32[1,4], index: 5, kind: input, shape index: {}]
  %s6 = inlined_call_operand.vmem [shape: bf16[2,256,4], index: 6, kind: output, shape index: {}]
  %s7 = sld [smem:[#allocation0]]
  $region61: #{asff_forward.2} parent=0
    _
  %s9 = ssub.s32 1, %s7
  %s10 = scalar_select 0, %s9, %s7
  $region1: #{asff_forward.2} parent=0
    #allocation2 [shape = 'u8[512]{0}', space=smem, size = 0x200, scoped, tag = 'input window, operand 0, single buffered']
    #allocation3 [shape = 's32[2]{0}', space=sflag, size = 0x8, scoped, tag = 'scoped memory for asff_forward.2']
    %11 = vsyncpa [#allocation3], 0
    loop: start=0, step=1, limit=6
    $region2: #{asff_forward.2} parent=1 // loop_pre_header
      _
    $region3: #{asff_forward.2} parent=1 // loop_header
      %s13 = sphi 0, %s17
      %p14 = scmp.ge.s32.totalorder %s13, 6
      %s20 = sphi 0, %s32
      %s21 = sphi 0, %s28
      %s22 = sphi 0, %s20
      %s23 = sphi 0, %s21
      %s24 = sphi 0, %s22
      %s25 = sphi 0, %s23
      %s33 = sphi 0, %s33
      %s35 = sphi 0, %s33
      %s36 = sphi 0, %s35
      %s50 = sphi 0, %s36
      %s58 = sphi 0, %s60
      %s61 = sphi 0, %s58
      %s62 = sphi 0, %s61
      %s78 = sphi 0, %s62
      %s86 = sphi 0, %s88
      %s89 = sphi 0, %s86
      %s90 = sphi 0, %s89
      %s106 = sphi 0, %s90
      %s114 = sphi 0, %s116
      %s117 = sphi 0, %s114
      %s118 = sphi 0, %s117
      %s134 = sphi 0, %s118
      %s138 = sphi 0, %s138
      %s140 = sphi 0, %s138
      %s141 = sphi 0, %s140
      %s155 = sphi 0, %s141
      %s159 = sphi 0, %s159
      %s161 = sphi 0, %s159
      %s162 = sphi 0, %s161
      %s176 = sphi 0, %s162
      %s184 = sphi 0, %s186
      %s187 = sphi 0, %s184
      %s188 = sphi 0, %s187
      %s204 = sphi 0, %s188
    $region4: #{asff_forward.2} parent=1 // loop_header_branch
      %16 = sbr.rel (%p14) target = $region8
    $region5: #{asff_forward.2} parent=1 // loop_body
      %s18 = ssub.s32 %s13, 1
      %s19 = ssub.s32 %s13, 2
      %s26 = sadd.s32 1, %s21
      %p27 = scmp.ge.s32.totalorder %s26, 2
      %s28 = scalar_select %p27, 0, %s26
      %s29 = sadd.s32 1, %s20
      %s30 = scalar_select %p27, %s29, %s20
      %p31 = scmp.ge.s32.totalorder %s30, 2
      %s32 = scalar_select %p31, 0, %s30
      %s34 = sadd.s32 %s33, 1
      %p37 = scmp.eq.s32.totalorder %s13, 3
      %p38 = scmp.ne.s32.totalorder %s33, %s35
      %p39 = scmp.eq.s32.totalorder %s13, 0
      %p40 = por %p38, %p39
      %p41 = scmp.ne.s32.totalorder %s33, %s35
      %p42 = scmp.eq.s32.totalorder %s18, 3
      %p43 = por %p41, %p42
      %p44 = scmp.ne.s32.totalorder %s35, %s36
      %p45 = scmp.eq.s32.totalorder %s18, 0
      %p46 = por %p44, %p45
      %p47 = scmp.ne.s32.totalorder %s35, %s36
      %p48 = scmp.eq.s32.totalorder %s19, 3
      %p49 = por %p47, %p48
      %p51 = scmp.ne.s32.totalorder %s36, %s50
      %p52 = scmp.eq.s32.totalorder %s19, 0
      %p53 = por %p51, %p52
      %s54 = ssub.s32 %s20, %s32
      %s55 = ssub.s32 %s21, %s28
      %s56 = sor.u32 %s54, %s55
      %p57 = scmp.eq.s32.totalorder %s56, 0
      %s59 = sadd.s32 %s58, 1
      %s60 = scalar_select %p57, %s58, %s59
      %p63 = pneg %p57
      %p64 = scmp.eq.s32.totalorder %s13, 3
      %p65 = por %p63, %p64
      %p66 = scmp.ne.s32.totalorder %s58, %s61
      %p67 = scmp.eq.s32.totalorder %s13, 0
      %p68 = por %p66, %p67
      %p69 = scmp.ne.s32.totalorder %s58, %s61
      %p70 = scmp.eq.s32.totalorder %s18, 3
      %p71 = por %p69, %p70
      %p72 = scmp.ne.s32.totalorder %s61, %s62
      %p73 = scmp.eq.s32.totalorder %s18, 0
      %p74 = por %p72, %p73
      %p75 = scmp.ne.s32.totalorder %s61, %s62
      %p76 = scmp.eq.s32.totalorder %s19, 3
      %p77 = por %p75, %p76
      %p79 = scmp.ne.s32.totalorder %s62, %s78
      %p80 = scmp.eq.s32.totalorder %s19, 0
      %p81 = por %p79, %p80
      %s82 = ssub.s32 %s20, %s32
      %s83 = ssub.s32 %s21, %s28
      %s84 = sor.u32 %s82, %s83
      %p85 = scmp.eq.s32.totalorder %s84, 0
      %s87 = sadd.s32 %s86, 1
      %s88 = scalar_select %p85, %s86, %s87
      %p91 = pneg %p85
      %p92 = scmp.eq.s32.totalorder %s13, 3
      %p93 = por %p91, %p92
      %p94 = scmp.ne.s32.totalorder %s86, %s89
      %p95 = scmp.eq.s32.totalorder %s13, 0
      %p96 = por %p94, %p95
      %p97 = scmp.ne.s32.totalorder %s86, %s89
      %p98 = scmp.eq.s32.totalorder %s18, 3
      %p99 = por %p97, %p98
      %p100 = scmp.ne.s32.totalorder %s89, %s90
      %p101 = scmp.eq.s32.totalorder %s18, 0
      %p102 = por %p100, %p101
      %p103 = scmp.ne.s32.totalorder %s89, %s90
      %p104 = scmp.eq.s32.totalorder %s19, 3
      %p105 = por %p103, %p104
      %p107 = scmp.ne.s32.totalorder %s90, %s106
      %p108 = scmp.eq.s32.totalorder %s19, 0
      %p109 = por %p107, %p108
      %s110 = ssub.s32 %s20, %s32
      %s111 = ssub.s32 %s21, %s28
      %s112 = sor.u32 %s110, %s111
      %p113 = scmp.eq.s32.totalorder %s112, 0
      %s115 = sadd.s32 %s114, 1
      %s116 = scalar_select %p113, %s114, %s115
      %p119 = pneg %p113
      %p120 = scmp.eq.s32.totalorder %s13, 3
      %p121 = por %p119, %p120
      %p122 = scmp.ne.s32.totalorder %s114, %s117
      %p123 = scmp.eq.s32.totalorder %s13, 0
      %p124 = por %p122, %p123
      %p125 = scmp.ne.s32.totalorder %s114, %s117
      %p126 = scmp.eq.s32.totalorder %s18, 3
      %p127 = por %p125, %p126
      %p128 = scmp.ne.s32.totalorder %s117, %s118
      %p129 = scmp.eq.s32.totalorder %s18, 0
      %p130 = por %p128, %p129
      %p131 = scmp.ne.s32.totalorder %s117, %s118
      %p132 = scmp.eq.s32.totalorder %s19, 3
      %p133 = por %p131, %p132
      %p135 = scmp.ne.s32.totalorder %s118, %s134
      %p136 = scmp.eq.s32.totalorder %s19, 0
      %p137 = por %p135, %p136
      %s139 = sadd.s32 %s138, 1
      %p142 = scmp.eq.s32.totalorder %s13, 3
      %p143 = scmp.ne.s32.totalorder %s138, %s140
      %p144 = scmp.eq.s32.totalorder %s13, 0
      %p145 = por %p143, %p144
      %p146 = scmp.ne.s32.totalorder %s138, %s140
      %p147 = scmp.eq.s32.totalorder %s18, 3
      %p148 = por %p146, %p147
      %p149 = scmp.ne.s32.totalorder %s140, %s141
      %p150 = scmp.eq.s32.totalorder %s18, 0
      %p151 = por %p149, %p150
      %p152 = scmp.ne.s32.totalorder %s140, %s141
      %p153 = scmp.eq.s32.totalorder %s19, 3
      %p154 = por %p152, %p153
      %p156 = scmp.ne.s32.totalorder %s141, %s155
      %p157 = scmp.eq.s32.totalorder %s19, 0
      %p158 = por %p156, %p157
      %s160 = sadd.s32 %s159, 1
      %p163 = scmp.eq.s32.totalorder %s13, 3
      %p164 = scmp.ne.s32.totalorder %s159, %s161
      %p165 = scmp.eq.s32.totalorder %s13, 0
      %p166 = por %p164, %p165
      %p167 = scmp.ne.s32.totalorder %s159, %s161
      %p168 = scmp.eq.s32.totalorder %s18, 3
      %p169 = por %p167, %p168
      %p170 = scmp.ne.s32.totalorder %s161, %s162
      %p171 = scmp.eq.s32.totalorder %s18, 0
      %p172 = por %p170, %p171
      %p173 = scmp.ne.s32.totalorder %s161, %s162
      %p174 = scmp.eq.s32.totalorder %s19, 3
      %p175 = por %p173, %p174
      %p177 = scmp.ne.s32.totalorder %s162, %s176
      %p178 = scmp.eq.s32.totalorder %s19, 0
      %p179 = por %p177, %p178
      %s180 = ssub.s32 %s20, %s32
      %s181 = ssub.s32 %s21, %s28
      %s182 = sor.u32 %s180, %s181
      %p183 = scmp.eq.s32.totalorder %s182, 0
      %s185 = sadd.s32 %s184, 1
      %s186 = scalar_select %p183, %s184, %s185
      %p189 = pneg %p183
      %p190 = scmp.eq.s32.totalorder %s13, 3
      %p191 = por %p189, %p190
      %p192 = scmp.ne.s32.totalorder %s184, %s187
      %p193 = scmp.eq.s32.totalorder %s13, 0
      %p194 = por %p192, %p193
      %p195 = scmp.ne.s32.totalorder %s184, %s187
      %p196 = scmp.eq.s32.totalorder %s18, 3
      %p197 = por %p195, %p196
      %p198 = scmp.ne.s32.totalorder %s187, %s188
      %p199 = scmp.eq.s32.totalorder %s18, 0
      %p200 = por %p198, %p199
      %p201 = scmp.ne.s32.totalorder %s187, %s188
      %p202 = scmp.eq.s32.totalorder %s19, 3
      %p203 = por %p201, %p202
      %p205 = scmp.ne.s32.totalorder %s188, %s204
      %p206 = scmp.eq.s32.totalorder %s19, 0
      %p207 = por %p205, %p206
      %p208 = scmp.le.s32.totalorder 1, %s13
      %p209 = scmp.lt.s32.totalorder %s13, 5
      %p210 = pnand %p208, %p209
      %p211 = pneg %p210
      // Predicated region
      $region9: #{asff_forward.2} parent=5 // pred_check
        _
      $region10: #{asff_forward.2} parent=5 // pred_check_branch
        %213 = sbr.rel (%p210) target = $region12
      $region11: #{asff_forward.2} parent=5 // pred_region
        %s214 = ssub.s32 %s13, 1
        // Predicated region
        $region13: #{asff_forward.2} parent=11 // pred_check
          %p215 = pneg %p46
        $region14: #{asff_forward.2} parent=11 // pred_check_branch
          %217 = sbr.rel (%p215) target = $region16
        $region15: #{asff_forward.2} parent=11 // pred_region
          %s219 = ssub.s32 16, 16
          %220 = vsyncadd [#allocation3], %s219
          %s222 = sshll.u32 %s0, 4
          %s223 = int_to_ptr.vmem [resolvable:$true] %s222
          %225 = dma.vmem_to_smem %s223, 16, [#allocation2], [#allocation3]
        $region16: #{asff_forward.2} parent=11 // pred_fallthru
          _
        // Predicated region
        $region17: #{asff_forward.2} parent=11 // pred_check
          %p226 = pneg %p151
        $region18: #{asff_forward.2} parent=11 // pred_check_branch
          %228 = sbr.rel (%p226) target = $region20
        $region19: #{asff_forward.2} parent=11 // pred_region
          _
        $region20: #{asff_forward.2} parent=11 // pred_fallthru
          _
        // Predicated region
        $region21: #{asff_forward.2} parent=11 // pred_check
          %p229 = pneg %p172
        $region22: #{asff_forward.2} parent=11 // pred_check_branch
          %231 = sbr.rel (%p229) target = $region24
        $region23: #{asff_forward.2} parent=11 // pred_region
          _
        $region24: #{asff_forward.2} parent=11 // pred_fallthru
          _
      $region12: #{asff_forward.2} parent=5 // pred_fallthru
        _
      %p232 = scmp.lt.s32.totalorder %s13, 4
      // Predicated region
      $region25: #{asff_forward.2} parent=5 // pred_check
        %p233 = pneg %p232
      $region26: #{asff_forward.2} parent=5 // pred_check_branch
        %235 = sbr.rel (%p233) target = $region28
      $region27: #{asff_forward.2} parent=5 // pred_region
        // Predicated region
        $region29: #{asff_forward.2} parent=27 // pred_check
          %p236 = pneg %p68
        $region30: #{asff_forward.2} parent=27 // pred_check_branch
          %238 = sbr.rel (%p236) target = $region32
        $region31: #{asff_forward.2} parent=27 // pred_region
          %s239 = smul.u32 2, %s21
          %p240 = scmp.lt.s32.totalorder %s20, 1
          %s241 = scalar_select %p240, %s20, 1
          %p242 = scmp.lt.s32.totalorder %s239, 3
          %s243 = scalar_select %p242, %s239, 3
          %s244 = smul.addr %s243, 2
          %s245 = smul.addr %s241, 8
          %s246 = sadd.s32 %s244, %s245
          %s247 = smul.addr %s246, 4
          %s248 = scalar_lea.vmem %s1, %s247
          %s249 = smul.u32 2, %s21
        $region32: #{asff_forward.2} parent=27 // pred_fallthru
          _
        // Predicated region
        $region33: #{asff_forward.2} parent=27 // pred_check
          %p250 = pneg %p96
        $region34: #{asff_forward.2} parent=27 // pred_check_branch
          %252 = sbr.rel (%p250) target = $region36
        $region35: #{asff_forward.2} parent=27 // pred_region
          %s253 = smul.u32 4, %s21
          %p254 = scmp.lt.s32.totalorder %s20, 1
          %s255 = scalar_select %p254, %s20, 1
          %p256 = scmp.lt.s32.totalorder %s253, 7
          %s257 = scalar_select %p256, %s253, 7
          %s258 = smul.addr %s257, 2
          %s259 = smul.addr %s255, 16
          %s260 = sadd.s32 %s258, %s259
          %s261 = smul.addr %s260, 4
          %s262 = scalar_lea.vmem %s2, %s261
          %s263 = smul.u32 4, %s21
        $region36: #{asff_forward.2} parent=27 // pred_fallthru
          _
        // Predicated region
        $region37: #{asff_forward.2} parent=27 // pred_check
          %p264 = pneg %p124
        $region38: #{asff_forward.2} parent=27 // pred_check_branch
          %266 = sbr.rel (%p264) target = $region40
        $region39: #{asff_forward.2} parent=27 // pred_region
          %s267 = smul.u32 8, %s21
          %p268 = scmp.lt.s32.totalorder %s20, 1
          %s269 = scalar_select %p268, %s20, 1
          %p270 = scmp.lt.s32.totalorder %s267, 15
          %s271 = scalar_select %p270, %s267, 15
          %s272 = smul.addr %s271, 2
          %s273 = smul.addr %s269, 32
          %s274 = sadd.s32 %s272, %s273
          %s275 = smul.addr %s274, 4
          %s276 = scalar_lea.vmem %s3, %s275
          %s277 = smul.u32 8, %s21
        $region40: #{asff_forward.2} parent=27 // pred_fallthru
          _
      $region28: #{asff_forward.2} parent=5 // pred_fallthru
        _
      %p278 = scmp.le.s32.totalorder 1, %s13
      %p279 = scmp.lt.s32.totalorder %s13, 5
      %p280 = pnand %p278, %p279
      %p281 = pneg %p280
      // Predicated region
      $region41: #{asff_forward.2} parent=5 // pred_check
        _
      $region42: #{asff_forward.2} parent=5 // pred_check_branch
        %283 = sbr.rel (%p280) target = $region44
      $region43: #{asff_forward.2} parent=5 // pred_region
        %s284 = ssub.s32 %s13, 1
        // Predicated region
        $region45: #{asff_forward.2} parent=43 // pred_check
          %p285 = pneg %p46
        $region46: #{asff_forward.2} parent=43 // pred_check_branch
          %287 = sbr.rel (%p285) target = $region48
        $region47: #{asff_forward.2} parent=43 // pred_region
          %288 = dma.done [#allocation3], 16
        $region48: #{asff_forward.2} parent=43 // pred_fallthru
          _
        %289 = sfence
        %p290 = pneg %p46
        %p291 = pneg %p43
        %s292 = smul.u32 2, %s23
        %p293 = scmp.lt.s32.totalorder %s22, 1
        %s294 = scalar_select %p293, %s22, 1
        %p295 = scmp.lt.s32.totalorder %s292, 3
        %s296 = scalar_select %p295, %s292, 3
        %s297 = smul.addr %s296, 2
        %s298 = smul.addr %s294, 8
        %s299 = sadd.s32 %s297, %s298
        %s300 = smul.addr %s299, 4
        %s301 = scalar_lea.vmem %s1, %s300
        %p302 = pneg %p74
        %p303 = pneg %p71
        %s304 = smul.u32 4, %s23
        %p305 = scmp.lt.s32.totalorder %s22, 1
        %s306 = scalar_select %p305, %s22, 1
        %p307 = scmp.lt.s32.totalorder %s304, 7
        %s308 = scalar_select %p307, %s304, 7
        %s309 = smul.addr %s308, 2
        %s310 = smul.addr %s306, 16
        %s311 = sadd.s32 %s309, %s310
        %s312 = smul.addr %s311, 4
        %s313 = scalar_lea.vmem %s2, %s312
        %p314 = pneg %p102
        %p315 = pneg %p99
        %s316 = smul.u32 8, %s23
        %p317 = scmp.lt.s32.totalorder %s22, 1
        %s318 = scalar_select %p317, %s22, 1
        %p319 = scmp.lt.s32.totalorder %s316, 15
        %s320 = scalar_select %p319, %s316, 15
        %s321 = smul.addr %s320, 2
        %s322 = smul.addr %s318, 32
        %s323 = sadd.s32 %s321, %s322
        %s324 = smul.addr %s323, 4
        %s325 = scalar_lea.vmem %s3, %s324
        %p326 = pneg %p130
        %p327 = pneg %p127
        %p328 = pneg %p151
        %p329 = pneg %p148
        %p330 = pneg %p172
        %p331 = pneg %p169
        %p332 = pneg %p200
        %p333 = pneg %p197
        %s334 = smul.u32 16, %s23
        %p335 = scmp.lt.s32.totalorder %s22, 1
        %s336 = scalar_select %p335, %s22, 1
        %p337 = scmp.lt.s32.totalorder %s334, 31
        %s338 = scalar_select %p337, %s334, 31
        %s339 = smul.addr %s336, 32
        %s340 = sadd.s32 %s338, %s339
        %s341 = smul.addr %s340, 4
        %s342 = scalar_lea.vmem %s6, %s341
        %s343 = smul.u32 2, %s23
        %p344 = scmp.lt.s32.totalorder %s22, 1
        %s345 = scalar_select %p344, %s22, 1
        %p346 = scmp.lt.s32.totalorder %s343, 3
        %s347 = scalar_select %p346, %s343, 3
        %s348 = smul.addr %s347, 2
        %s349 = smul.addr %s345, 8
        %s350 = sadd.s32 %s348, %s349
        %s351 = smul.addr %s350, 4
        %s352 = scalar_lea.vmem %s1, %s351
        %s353 = smul.u32 2, %s23
        %s354 = smul.u32 4, %s23
        %p355 = scmp.lt.s32.totalorder %s22, 1
        %s356 = scalar_select %p355, %s22, 1
        %p357 = scmp.lt.s32.totalorder %s354, 7
        %s358 = scalar_select %p357, %s354, 7
        %s359 = smul.addr %s358, 2
        %s360 = smul.addr %s356, 16
        %s361 = sadd.s32 %s359, %s360
        %s362 = smul.addr %s361, 4
        %s363 = scalar_lea.vmem %s2, %s362
        %s364 = smul.u32 4, %s23
        %s365 = smul.u32 8, %s23
        %p366 = scmp.lt.s32.totalorder %s22, 1
        %s367 = scalar_select %p366, %s22, 1
        %p368 = scmp.lt.s32.totalorder %s365, 15
        %s369 = scalar_select %p368, %s365, 15
        %s370 = smul.addr %s369, 2
        %s371 = smul.addr %s367, 32
        %s372 = sadd.s32 %s370, %s371
        %s373 = smul.addr %s372, 4
        %s374 = scalar_lea.vmem %s3, %s373
        %s375 = smul.u32 8, %s23
        %s376 = smul.u32 16, %s23
        %p377 = scmp.lt.s32.totalorder %s22, 1
        %s378 = scalar_select %p377, %s22, 1
        %p379 = scmp.lt.s32.totalorder %s376, 31
        %s380 = scalar_select %p379, %s376, 31
        %s381 = smul.addr %s378, 32
        %s382 = sadd.s32 %s380, %s381
        %s383 = smul.addr %s382, 4
        %s384 = scalar_lea.vmem %s6, %s383
        %s385 = smul.u32 16, %s23
        %s387 = sld [smem:[#allocation2]]
        %s388 = sld [smem:[#allocation2 + $0x1]]
        %s389 = sld [smem:[#allocation2 + $0x2]]
        %v390 = vld [vmem:[%s352] sm:$0xf]
        %v391 = vld [vmem:[%s352 + $0x4] sm:$0xf]
        %v392 = vld [vmem:[%s352 + $0x8] sm:$0xf]
        %v393 = vld [vmem:[%s352 + $0xc] sm:$0xf]
        %v394 = vunpack.c.l.bf16 %v390
        %v395 = vunpack.c.l.bf16 %v391
        %v396 = vunpack.c.l.bf16 %v392
        %v397 = vunpack.c.l.bf16 %v393
        %v398 = vld [vmem:[%s363] sm:$0xf]
        %v399 = vld [vmem:[%s363 + $0x4] sm:$0xf]
        %v400 = vld [vmem:[%s363 + $0x8] sm:$0xf]
        %v401 = vld [vmem:[%s363 + $0xc] sm:$0xf]
        %v402 = vld [vmem:[%s363 + $0x10] sm:$0xf]
        %v403 = vld [vmem:[%s363 + $0x14] sm:$0xf]
        %v404 = vld [vmem:[%s363 + $0x18] sm:$0xf]
        %v405 = vld [vmem:[%s363 + $0x1c] sm:$0xf]
        %v406 = vunpack.c.l.bf16 %v398
        %v407 = vunpack.c.l.bf16 %v399
        %v408 = vunpack.c.l.bf16 %v400
        %v409 = vunpack.c.l.bf16 %v401
        %v410 = vunpack.c.l.bf16 %v402
        %v411 = vunpack.c.l.bf16 %v403
        %v412 = vunpack.c.l.bf16 %v404
        %v413 = vunpack.c.l.bf16 %v405
        %v414 = vstv %s387
        %v415 = vmul.f32 %v414, %v394
        %v416 = vmul.f32 %v414, %v395
        %v417 = vmul.f32 %v414, %v396
        %v418 = vmul.f32 %v414, %v397
        %v419 = vstv %s388
        %v420 = vmul.f32 %v419, %v406
        %v421 = vmul.f32 %v419, %v407
        %v422 = vmul.f32 %v419, %v408
        %v423 = vmul.f32 %v419, %v409
        %v424 = vmul.f32 %v419, %v410
        %v425 = vmul.f32 %v419, %v411
        %v426 = vmul.f32 %v419, %v412
        %v427 = vmul.f32 %v419, %v413
        %v428 = vadd.f32 %v415, %v420
        %v429 = vadd.f32 %v416, %v421
        %v430 = vadd.f32 %v415, %v422
        %v431 = vadd.f32 %v416, %v423
        %v432 = vadd.f32 %v417, %v424
        %v433 = vadd.f32 %v418, %v425
        %v434 = vadd.f32 %v417, %v426
        %v435 = vadd.f32 %v418, %v427
        %v436 = vld [vmem:[%s374] sm:$0xf]
        %v437 = vld [vmem:[%s374 + $0x4] sm:$0xf]
        %v438 = vld [vmem:[%s374 + $0x8] sm:$0xf]
        %v439 = vld [vmem:[%s374 + $0xc] sm:$0xf]
        %v440 = vld [vmem:[%s374 + $0x10] sm:$0xf]
        %v441 = vld [vmem:[%s374 + $0x14] sm:$0xf]
        %v442 = vld [vmem:[%s374 + $0x18] sm:$0xf]
        %v443 = vld [vmem:[%s374 + $0x1c] sm:$0xf]
        %v444 = vld [vmem:[%s374 + $0x20] sm:$0xf]
        %v445 = vld [vmem:[%s374 + $0x24] sm:$0xf]
        %v446 = vld [vmem:[%s374 + $0x28] sm:$0xf]
        %v447 = vld [vmem:[%s374 + $0x2c] sm:$0xf]
        %v448 = vld [vmem:[%s374 + $0x30] sm:$0xf]
        %v449 = vld [vmem:[%s374 + $0x34] sm:$0xf]
        %v450 = vld [vmem:[%s374 + $0x38] sm:$0xf]
        %v451 = vld [vmem:[%s374 + $0x3c] sm:$0xf]
        %v452 = vunpack.c.l.bf16 %v436
        %v453 = vunpack.c.l.bf16 %v437
        %v454 = vunpack.c.l.bf16 %v438
        %v455 = vunpack.c.l.bf16 %v439
        %v456 = vunpack.c.l.bf16 %v440
        %v457 = vunpack.c.l.bf16 %v441
        %v458 = vunpack.c.l.bf16 %v442
        %v459 = vunpack.c.l.bf16 %v443
        %v460 = vunpack.c.l.bf16 %v444
        %v461 = vunpack.c.l.bf16 %v445
        %v462 = vunpack.c.l.bf16 %v446
        %v463 = vunpack.c.l.bf16 %v447
        %v464 = vunpack.c.l.bf16 %v448
        %v465 = vunpack.c.l.bf16 %v449
        %v466 = vunpack.c.l.bf16 %v450
        %v467 = vunpack.c.l.bf16 %v451
        %v468 = vstv %s389
        %v469 = vmul.f32 %v468, %v452
        %v470 = vmul.f32 %v468, %v453
        %v471 = vmul.f32 %v468, %v454
        %v472 = vmul.f32 %v468, %v455
        %v473 = vmul.f32 %v468, %v456
        %v474 = vmul.f32 %v468, %v457
        %v475 = vmul.f32 %v468, %v458
        %v476 = vmul.f32 %v468, %v459
        %v477 = vmul.f32 %v468, %v460
        %v478 = vmul.f32 %v468, %v461
        %v479 = vmul.f32 %v468, %v462
        %v480 = vmul.f32 %v468, %v463
        %v481 = vmul.f32 %v468, %v464
        %v482 = vmul.f32 %v468, %v465
        %v483 = vmul.f32 %v468, %v466
        %v484 = vmul.f32 %v468, %v467
        %v485 = vadd.f32 %v428, %v469
        %v486 = vadd.f32 %v429, %v470
        %v487 = vadd.f32 %v428, %v471
        %v488 = vadd.f32 %v429, %v472
        %v489 = vadd.f32 %v430, %v473
        %v490 = vadd.f32 %v431, %v474
        %v491 = vadd.f32 %v430, %v475
        %v492 = vadd.f32 %v431, %v476
        %v493 = vadd.f32 %v432, %v477
        %v494 = vadd.f32 %v433, %v478
        %v495 = vadd.f32 %v432, %v479
        %v496 = vadd.f32 %v433, %v480
        %v497 = vadd.f32 %v434, %v481
        %v498 = vadd.f32 %v435, %v482
        %v499 = vadd.f32 %v434, %v483
        %v500 = vadd.f32 %v435, %v484
        %v501 = vpack.c.bf16 %v486, %v485
        %v502 = vpack.c.bf16 %v488, %v487
        %v503 = vpack.c.bf16 %v490, %v489
        %v504 = vpack.c.bf16 %v492, %v491
        %v505 = vpack.c.bf16 %v494, %v493
        %v506 = vpack.c.bf16 %v496, %v495
        %v507 = vpack.c.bf16 %v498, %v497
        %v508 = vpack.c.bf16 %v500, %v499
        %v509 = vld [vmem:[%s4] sm:$0x3]
        %v510 = vld [vmem:[%s5] sm:$0x1]
        %v512 = vlaneseq
        %v513 = vshrl.u32 %v512, 7
        %v514 = vsub.s32 0, %v513
        %v515 = vrot.slane %v510, %v514
        %vm517 = vcmask 31744
        %v519 = vsel %vm517, %v501, 0
        %v522 = vsel %vm517, %v502, 0
        %v525 = vsel %vm517, %v503, 0
        %v528 = vsel %vm517, %v504, 0
        %v531 = vsel %vm517, %v505, 0
        %v534 = vsel %vm517, %v506, 0
        %v537 = vsel %vm517, %v507, 0
        %v540 = vsel %vm517, %v508, 0
        %vm542 = vcmask 1041408
        %v544 = vsel %vm542, %v509, 0
        %546 = vmatprep.subr.bf16.mxu0 0
        %547 = vmatpush1.bf16.msra.mxu0 0
        %548 = vmatprep.subr.bf16.mxu0 0
        %549 = vmatpush1.bf16.msra.mxu0 0
        %550 = vmatprep.subr.bf16.mxu0 0
        %551 = vmatpush1.bf16.msra.mxu0 0
        %552 = vmatprep.subr.bf16.mxu0 0
        %553 = vmatpush1.bf16.msra.mxu0 0
        %554 = vmatprep.subr.bf16.mxu0 0
        %555 = vmatpush1.bf16.msra.mxu0 0
        %556 = vmatprep.subr.bf16.mxu0 0
        %557 = vmatpush1.bf16.msra.mxu0 0
        %558 = vmatprep.subr.bf16.mxu0 0
        %559 = vmatpush1.bf16.msra.mxu0 0
        %560 = vmatprep.subr.bf16.mxu0 0
        %561 = vmatpush1.bf16.msra.mxu0 %v544
        %562 = vmatprep.subr.bf16.mxu0 0
        %563 = vmatpush2.bf16.msra.mxu0 0
        %564 = vmatprep.subr.bf16.mxu0 0
        %565 = vmatpush2.bf16.msra.mxu0 0
        %566 = vmatprep.subr.bf16.mxu0 0
        %567 = vmatpush2.bf16.msra.mxu0 0
        %568 = vmatprep.subr.bf16.mxu0 0
        %569 = vmatpush2.bf16.msra.mxu0 0
        %570 = vmatprep.subr.bf16.mxu0 0
        %571 = vmatpush2.bf16.msra.mxu0 0
        %572 = vmatprep.subr.bf16.mxu0 0
        %573 = vmatpush2.bf16.msra.mxu0 0
        %574 = vmatprep.subr.bf16.mxu0 0
        %575 = vmatpush2.bf16.msra.mxu0 0
        %576 = vmatprep.subr.bf16.mxu0 0
        %577 = vmatpush2.bf16.msra.mxu0 0
        %578 = vmatprep.mubr.bf16.mxu0 0
        %579 = vmatmul.mubr.bf16.gmra.mxu0 %v519
        %v580 = vpop.f32.mrf.mxu0
        %v581 = vadd.f32 %v515, %v580
        %v582 = vpop.f32.mrf.mxu0
        %v583 = vpop.f32.mrf.mxu0
        %v584 = vadd.f32 %v515, %v583
        %v585 = vpop.f32.mrf.mxu0
        %586 = vmatprep.mubr.bf16.mxu0 0
        %587 = vmatmul.mubr.bf16.gmra.mxu0 %v522
        %v588 = vpop.f32.mrf.mxu0
        %v589 = vadd.f32 %v515, %v588
        %v590 = vpop.f32.mrf.mxu0
        %v591 = vpop.f32.mrf.mxu0
        %v592 = vadd.f32 %v515, %v591
        %v593 = vpop.f32.mrf.mxu0
        %594 = vmatprep.mubr.bf16.mxu0 0
        %595 = vmatmul.mubr.bf16.gmra.mxu0 %v525
        %v596 = vpop.f32.mrf.mxu0
        %v597 = vadd.f32 %v515, %v596
        %v598 = vpop.f32.mrf.mxu0
        %v599 = vpop.f32.mrf.mxu0
        %v600 = vadd.f32 %v515, %v599
        %v601 = vpop.f32.mrf.mxu0
        %602 = vmatprep.mubr.bf16.mxu0 0
        %603 = vmatmul.mubr.bf16.gmra.mxu0 %v528
        %v604 = vpop.f32.mrf.mxu0
        %v605 = vadd.f32 %v515, %v604
        %v606 = vpop.f32.mrf.mxu0
        %v607 = vpop.f32.mrf.mxu0
        %v608 = vadd.f32 %v515, %v607
        %v609 = vpop.f32.mrf.mxu0
        %610 = vmatprep.mubr.bf16.mxu0 0
        %611 = vmatmul.mubr.bf16.gmra.mxu0 %v531
        %v612 = vpop.f32.mrf.mxu0
        %v613 = vadd.f32 %v515, %v612
        %v614 = vpop.f32.mrf.mxu0
        %v615 = vpop.f32.mrf.mxu0
        %v616 = vadd.f32 %v515, %v615
        %v617 = vpop.f32.mrf.mxu0
        %618 = vmatprep.mubr.bf16.mxu0 0
        %619 = vmatmul.mubr.bf16.gmra.mxu0 %v534
        %v620 = vpop.f32.mrf.mxu0
        %v621 = vadd.f32 %v515, %v620
        %v622 = vpop.f32.mrf.mxu0
        %v623 = vpop.f32.mrf.mxu0
        %v624 = vadd.f32 %v515, %v623
        %v625 = vpop.f32.mrf.mxu0
        %626 = vmatprep.mubr.bf16.mxu0 0
        %627 = vmatmul.mubr.bf16.gmra.mxu0 %v537
        %v628 = vpop.f32.mrf.mxu0
        %v629 = vadd.f32 %v515, %v628
        %v630 = vpop.f32.mrf.mxu0
        %v631 = vpop.f32.mrf.mxu0
        %v632 = vadd.f32 %v515, %v631
        %v633 = vpop.f32.mrf.mxu0
        %634 = vmatprep.mubr.bf16.mxu0 0
        %635 = vmatmul.mubr.bf16.gmra.mxu0 %v540
        %v636 = vpop.f32.mrf.mxu0
        %v637 = vadd.f32 %v515, %v636
        %v638 = vpop.f32.mrf.mxu0
        %v639 = vpop.f32.mrf.mxu0
        %v640 = vadd.f32 %v515, %v639
        %v641 = vpop.f32.mrf.mxu0
        %642 = vdwg.mxu0
        %v643 = vpack.c.bf16 %v584, %v581
        %v644 = vpack.c.bf16 %v592, %v589
        %v645 = vpack.c.bf16 %v600, %v597
        %v646 = vpack.c.bf16 %v608, %v605
        %v647 = vpack.c.bf16 %v616, %v613
        %v648 = vpack.c.bf16 %v624, %v621
        %v649 = vpack.c.bf16 %v632, %v629
        %v650 = vpack.c.bf16 %v640, %v637
        %v659 = vunpack.c.l.b16 %v643
        %v660 = vunpack.c.h.b16 %v643
        %v661 = vunpack.c.l.b16 %v644
        %v662 = vunpack.c.h.b16 %v644
        %v663 = vunpack.c.l.b16 %v645
        %v664 = vunpack.c.h.b16 %v645
        %v665 = vunpack.c.l.b16 %v646
        %v666 = vunpack.c.h.b16 %v646
        %v667 = vunpack.c.l.b16 %v647
        %v668 = vunpack.c.h.b16 %v647
        %v669 = vunpack.c.l.b16 %v648
        %v670 = vunpack.c.h.b16 %v648
        %v671 = vunpack.c.l.b16 %v649
        %v672 = vunpack.c.h.b16 %v649
        %v673 = vunpack.c.l.b16 %v650
        %v674 = vunpack.c.h.b16 %v650
        %v675 = vpack.c.b16 %v659, %v659
        %v676 = vpack.c.b16 %v660, %v660
        %v677 = vpack.c.b16 %v661, %v661
        %v678 = vpack.c.b16 %v662, %v662
        %v679 = vpack.c.b16 %v663, %v663
        %v680 = vpack.c.b16 %v664, %v664
        %v681 = vpack.c.b16 %v665, %v665
        %v682 = vpack.c.b16 %v666, %v666
        %v683 = vpack.c.b16 %v667, %v667
        %v684 = vpack.c.b16 %v668, %v668
        %v685 = vpack.c.b16 %v669, %v669
        %v686 = vpack.c.b16 %v670, %v670
        %v687 = vpack.c.b16 %v671, %v671
        %v688 = vpack.c.b16 %v672, %v672
        %v689 = vpack.c.b16 %v673, %v673
        %v690 = vpack.c.b16 %v674, %v674
        %vm707 = vcmask 27648
        %708 = vst.msk [vmem:[%s384] sm:$0xf] %vm707, %v675
        %709 = vst.msk [vmem:[%s384 + $0x4] sm:$0xf] %vm707, %v676
        %710 = vst.msk [vmem:[%s384 + $0x8] sm:$0xf] %vm707, %v677
        %711 = vst.msk [vmem:[%s384 + $0xc] sm:$0xf] %vm707, %v678
        %712 = vst.msk [vmem:[%s384 + $0x10] sm:$0xf] %vm707, %v679
        %713 = vst.msk [vmem:[%s384 + $0x14] sm:$0xf] %vm707, %v680
        %714 = vst.msk [vmem:[%s384 + $0x18] sm:$0xf] %vm707, %v681
        %715 = vst.msk [vmem:[%s384 + $0x1c] sm:$0xf] %vm707, %v682
        %716 = vst.msk [vmem:[%s384 + $0x20] sm:$0xf] %vm707, %v683
        %717 = vst.msk [vmem:[%s384 + $0x24] sm:$0xf] %vm707, %v684
        %718 = vst.msk [vmem:[%s384 + $0x28] sm:$0xf] %vm707, %v685
        %719 = vst.msk [vmem:[%s384 + $0x2c] sm:$0xf] %vm707, %v686
        %720 = vst.msk [vmem:[%s384 + $0x30] sm:$0xf] %vm707, %v687
        %721 = vst.msk [vmem:[%s384 + $0x34] sm:$0xf] %vm707, %v688
        %722 = vst.msk [vmem:[%s384 + $0x38] sm:$0xf] %vm707, %v689
        %723 = vst.msk [vmem:[%s384 + $0x3c] sm:$0xf] %vm707, %v690
        %s724 = smul.u32 16, %s23
        %p725 = scmp.lt.s32.totalorder %s22, 1
        %s726 = scalar_select %p725, %s22, 1
        %p727 = scmp.lt.s32.totalorder %s724, 31
        %s728 = scalar_select %p727, %s724, 31
        %s729 = smul.addr %s726, 32
        %s730 = sadd.s32 %s728, %s729
        %s731 = smul.addr %s730, 4
        %s732 = scalar_lea.vmem %s6, %s731
        // Predicated region
        $region49: #{asff_forward.2} parent=43 // pred_check
          %p733 = pneg %p197
        $region50: #{asff_forward.2} parent=43 // pred_check_branch
          %735 = sbr.rel (%p733) target = $region52
        $region51: #{asff_forward.2} parent=43 // pred_region
          %s736 = smul.u32 16, %s23
        $region52: #{asff_forward.2} parent=43 // pred_fallthru
          _
      $region44: #{asff_forward.2} parent=5 // pred_fallthru
        _
      %p737 = scmp.le.s32.totalorder 2, %s13
      // Predicated region
      $region53: #{asff_forward.2} parent=5 // pred_check
        %p738 = pneg %p737
      $region54: #{asff_forward.2} parent=5 // pred_check_branch
        %740 = sbr.rel (%p738) target = $region56
      $region55: #{asff_forward.2} parent=5 // pred_region
        %s741 = ssub.s32 %s13, 2
        // Predicated region
        $region57: #{asff_forward.2} parent=55 // pred_check
          %p742 = pneg %p203
        $region58: #{asff_forward.2} parent=55 // pred_check_branch
          %744 = sbr.rel (%p742) target = $region60
        $region59: #{asff_forward.2} parent=55 // pred_region
          %s745 = smul.u32 16, %s25
          %p746 = scmp.lt.s32.totalorder %s24, 1
          %s747 = scalar_select %p746, %s24, 1
          %p748 = scmp.lt.s32.totalorder %s745, 31
          %s749 = scalar_select %p748, %s745, 31
          %s750 = smul.addr %s747, 32
          %s751 = sadd.s32 %s749, %s750
          %s752 = smul.addr %s751, 4
          %s753 = scalar_lea.vmem %s6, %s752
        $region60: #{asff_forward.2} parent=55 // pred_fallthru
          _
      $region56: #{asff_forward.2} parent=5 // pred_fallthru
        _
    $region6: #{asff_forward.2} parent=1 // loop_footer
      %s17 = sadd.s32 1, %s13
    $region7: #{asff_forward.2} parent=1 // loop_footer_branch
      %12 = sbr.rel target = $region3
    $region8: #{asff_forward.2} parent=1 // loop_exit
      _
    %754 = vsyncpa [#allocation3], 1
    %s755 = scalar_lea.sflag [#allocation3], 1
    %756 = vsyncpa %s755, 1

// kernel: asff_forward.3
$region0: #{asff_forward.3}
  #allocation0 [shape = 'u32[]', space=smem, size = 0x4, offset = 0x4, fixed_abs, tag = 'smem constant byte address 0x4 - core index']
  #allocation1 [shape = 'u32[144,128]{1,0:T(1,128)}', space=vmem, size = 0x12000, scoped, tag = 'internal scratch']
  %s0 = inlined_call_operand.vmem [shape: bf16[2,18,18,4], index: 0, kind: input, shape index: {}]
  %s1 = inlined_call_operand.vmem [shape: bf16[9,4,4], index: 1, kind: input, shape index: {}]
  %s2 = inlined_call_operand.vmem [shape: f32[1,4], index: 2, kind: input, shape index: {}]
  %s3 = inlined_call_operand.vmem [shape: f32[2,256,4], index: 3, kind: output, shape index: {}]
  %s4 = sld [smem:[#allocation0]]
  $region45: #{asff_forward.3} parent=0
    _
  %s6 = ssub.s32 1, %s4
  %s7 = scalar_select 0, %s6, %s4
  loop: start=0, step=1, limit=4
  $region2: #{asff_forward.3} parent=0 // loop_pre_header
    _
  $region3: #{asff_forward.3} parent=0 // loop_header
    %s9 = sphi 0, %s13
    %p10 = scmp.ge.s32.totalorder %s9, 4
    %s16 = sphi 0, %s35
    %s17 = sphi 0, %s31
    %s18 = sphi 0, %s27
    %s19 = sphi 0, %s16
    %s20 = sphi 0, %s17
    %s21 = sphi 0, %s18
    %s22 = sphi 0, %s19
    %s23 = sphi 0, %s20
    %s24 = sphi 0, %s21
    %s38 = sphi 0, %s40
    %s41 = sphi 0, %s38
    %s42 = sphi 0, %s41
    %s58 = sphi 0, %s42
    %s64 = sphi 0, %s66
    %s67 = sphi 0, %s64
    %s68 = sphi 0, %s67
    %s84 = sphi 0, %s68
    %s90 = sphi 0, %s92
    %s93 = sphi 0, %s90
    %s94 = sphi 0, %s93
    %s110 = sphi 0, %s94
    %s120 = sphi 0, %s122
    %s123 = sphi 0, %s120
    %s124 = sphi 0, %s123
    %s140 = sphi 0, %s124
  $region4: #{asff_forward.3} parent=0 // loop_header_branch
    %12 = sbr.rel (%p10) target = $region8
  $region5: #{asff_forward.3} parent=0 // loop_body
    %s14 = ssub.s32 %s9, 1
    %s15 = ssub.s32 %s9, 2
    %s25 = sadd.s32 1, %s18
    %p26 = scmp.ge.s32.totalorder %s25, 1
    %s27 = scalar_select %p26, 0, %s25
    %s28 = sadd.s32 1, %s17
    %s29 = scalar_select %p26, %s28, %s17
    %p30 = scmp.ge.s32.totalorder %s29, 1
    %s31 = scalar_select %p30, 0, %s29
    %s32 = sadd.s32 1, %s16
    %s33 = scalar_select %p30, %s32, %s16
    %p34 = scmp.ge.s32.totalorder %s33, 2
    %s35 = scalar_select %p34, 0, %s33
    %s36 = ssub.s32 %s16, %s35
    %p37 = scmp.eq.s32.totalorder %s36, 0
    %s39 = sadd.s32 %s38, 1
    %s40 = scalar_select %p37, %s38, %s39
    %p43 = pneg %p37
    %p44 = scmp.eq.s32.totalorder %s9, 1
    %p45 = por %p43, %p44
    %p46 = scmp.ne.s32.totalorder %s38, %s41
    %p47 = scmp.eq.s32.totalorder %s9, 0
    %p48 = por %p46, %p47
    %p49 = scmp.ne.s32.totalorder %s38, %s41
    %p50 = scmp.eq.s32.totalorder %s14, 1
    %p51 = por %p49, %p50
    %p52 = scmp.ne.s32.totalorder %s41, %s42
    %p53 = scmp.eq.s32.totalorder %s14, 0
    %p54 = por %p52, %p53
    %p55 = scmp.ne.s32.totalorder %s41, %s42
    %p56 = scmp.eq.s32.totalorder %s15, 1
    %p57 = por %p55, %p56
    %p59 = scmp.ne.s32.totalorder %s42, %s58
    %p60 = scmp.eq.s32.totalorder %s15, 0
    %p61 = por %p59, %p60
    %s62 = ssub.s32 %s17, %s31
    %p63 = scmp.eq.s32.totalorder %s62, 0
    %s65 = sadd.s32 %s64, 1
    %s66 = scalar_select %p63, %s64, %s65
    %p69 = pneg %p63
    %p70 = scmp.eq.s32.totalorder %s9, 1
    %p71 = por %p69, %p70
    %p72 = scmp.ne.s32.totalorder %s64, %s67
    %p73 = scmp.eq.s32.totalorder %s9, 0
    %p74 = por %p72, %p73
    %p75 = scmp.ne.s32.totalorder %s64, %s67
    %p76 = scmp.eq.s32.totalorder %s14, 1
    %p77 = por %p75, %p76
    %p78 = scmp.ne.s32.totalorder %s67, %s68
    %p79 = scmp.eq.s32.totalorder %s14, 0
    %p80 = por %p78, %p79
    %p81 = scmp.ne.s32.totalorder %s67, %s68
    %p82 = scmp.eq.s32.totalorder %s15, 1
    %p83 = por %p81, %p82
    %p85 = scmp.ne.s32.totalorder %s68, %s84
    %p86 = scmp.eq.s32.totalorder %s15, 0
    %p87 = por %p85, %p86
    %s88 = ssub.s32 %s17, %s31
    %p89 = scmp.eq.s32.totalorder %s88, 0
    %s91 = sadd.s32 %s90, 1
    %s92 = scalar_select %p89, %s90, %s91
    %p95 = pneg %p89
    %p96 = scmp.eq.s32.totalorder %s9, 1
    %p97 = por %p95, %p96
    %p98 = scmp.ne.s32.totalorder %s90, %s93
    %p99 = scmp.eq.s32.totalorder %s9, 0
    %p100 = por %p98, %p99
    %p101 = scmp.ne.s32.totalorder %s90, %s93
    %p102 = scmp.eq.s32.totalorder %s14, 1
    %p103 = por %p101, %p102
    %p104 = scmp.ne.s32.totalorder %s93, %s94
    %p105 = scmp.eq.s32.totalorder %s14, 0
    %p106 = por %p104, %p105
    %p107 = scmp.ne.s32.totalorder %s93, %s94
    %p108 = scmp.eq.s32.totalorder %s15, 1
    %p109 = por %p107, %p108
    %p111 = scmp.ne.s32.totalorder %s94, %s110
    %p112 = scmp.eq.s32.totalorder %s15, 0
    %p113 = por %p111, %p112
    %s114 = ssub.s32 %s16, %s35
    %s115 = ssub.s32 %s18, %s27
    %s116 = sor.u32 %s114, %s115
    %s117 = ssub.s32 %s17, %s31
    %s118 = sor.u32 %s116, %s117
    %p119 = scmp.eq.s32.totalorder %s118, 0
    %s121 = sadd.s32 %s120, 1
    %s122 = scalar_select %p119, %s120, %s121
    %p125 = pneg %p119
    %p126 = scmp.eq.s32.totalorder %s9, 1
    %p127 = por %p125, %p126
    %p128 = scmp.ne.s32.totalorder %s120, %s123
    %p129 = scmp.eq.s32.totalorder %s9, 0
    %p130 = por %p128, %p129
    %p131 = scmp.ne.s32.totalorder %s120, %s123
    %p132 = scmp.eq.s32.totalorder %s14, 1
    %p133 = por %p131, %p132
    %p134 = scmp.ne.s32.totalorder %s123, %s124
    %p135 = scmp.eq.s32.totalorder %s14, 0
    %p136 = por %p134, %p135
    %p137 = scmp.ne.s32.totalorder %s123, %s124
    %p138 = scmp.eq.s32.totalorder %s15, 1
    %p139 = por %p137, %p138
    %p141 = scmp.ne.s32.totalorder %s124, %s140
    %p142 = scmp.eq.s32.totalorder %s15, 0
    %p143 = por %p141, %p142
    %p144 = scmp.le.s32.totalorder 1, %s9
    %p145 = scmp.lt.s32.totalorder %s9, 3
    %p146 = pnand %p144, %p145
    %p147 = pneg %p146
    // Predicated region
    $region9: #{asff_forward.3} parent=5 // pred_check
      _
    $region10: #{asff_forward.3} parent=5 // pred_check_branch
      %149 = sbr.rel (%p146) target = $region12
    $region11: #{asff_forward.3} parent=5 // pred_region
      %s150 = ssub.s32 %s9, 1
      // Predicated region
      $region13: #{asff_forward.3} parent=11 // pred_check
        %p151 = pneg %p80
      $region14: #{asff_forward.3} parent=11 // pred_check_branch
        %153 = sbr.rel (%p151) target = $region16
      $region15: #{asff_forward.3} parent=11 // pred_region
        %p154 = scmp.lt.s32.totalorder %s20, 0
        %s155 = scalar_select %p154, %s20, 0
        %s156 = smul.addr %s155, 2
        %s157 = scalar_lea.vmem %s1, %s156
      $region16: #{asff_forward.3} parent=11 // pred_fallthru
        _
      // Predicated region
      $region17: #{asff_forward.3} parent=11 // pred_check
        %p158 = pneg %p106
      $region18: #{asff_forward.3} parent=11 // pred_check_branch
        %160 = sbr.rel (%p158) target = $region20
      $region19: #{asff_forward.3} parent=11 // pred_region
        %p161 = scmp.lt.s32.totalorder %s20, 0
        %s162 = scalar_select %p161, %s20, 0
        %s163 = scalar_lea.vmem %s2, %s162
      $region20: #{asff_forward.3} parent=11 // pred_fallthru
        _
    $region12: #{asff_forward.3} parent=5 // pred_fallthru
      _
    %p164 = scmp.lt.s32.totalorder %s9, 2
    // Predicated region
    $region21: #{asff_forward.3} parent=5 // pred_check
      %p165 = pneg %p164
    $region22: #{asff_forward.3} parent=5 // pred_check_branch
      %167 = sbr.rel (%p165) target = $region24
    $region23: #{asff_forward.3} parent=5 // pred_region
      // Predicated region
      $region25: #{asff_forward.3} parent=23 // pred_check
        %p168 = pneg %p48
      $region26: #{asff_forward.3} parent=23 // pred_check_branch
        %170 = sbr.rel (%p168) target = $region28
      $region27: #{asff_forward.3} parent=23 // pred_region
        %p171 = scmp.lt.s32.totalorder %s16, 1
        %s172 = scalar_select %p171, %s16, 1
        %s173 = smul.addr %s172, 54
        %s174 = smul.addr %s173, 4
        %s175 = scalar_lea.vmem %s0, %s174
      $region28: #{asff_forward.3} parent=23 // pred_fallthru
        _
    $region24: #{asff_forward.3} parent=5 // pred_fallthru
      _
    %p176 = scmp.le.s32.totalorder 1, %s9
    %p177 = scmp.lt.s32.totalorder %s9, 3
    %p178 = pnand %p176, %p177
    %p179 = pneg %p178
    // Predicated region
    $region29: #{asff_forward.3} parent=5 // pred_check
      _
    $region30: #{asff_forward.3} parent=5 // pred_check_branch
      %181 = sbr.rel (%p178) target = $region32
    $region31: #{asff_forward.3} parent=5 // pred_region
      %s182 = ssub.s32 %s9, 1
      %p183 = scmp.lt.s32.totalorder %s19, 1
      %s184 = scalar_select %p183, %s19, 1
      %s185 = smul.addr %s184, 54
      %s186 = smul.addr %s185, 4
      %s187 = scalar_lea.vmem %s0, %s186
      %p188 = pneg %p54
      %p189 = pneg %p51
      %p190 = scmp.lt.s32.totalorder %s20, 0
      %s191 = scalar_select %p190, %s20, 0
      %s192 = smul.addr %s191, 2
      %s193 = scalar_lea.vmem %s1, %s192
      %p194 = pneg %p80
      %p195 = pneg %p77
      %p196 = scmp.lt.s32.totalorder %s20, 0
      %s197 = scalar_select %p196, %s20, 0
      %s198 = scalar_lea.vmem %s2, %s197
      %p199 = pneg %p106
      %p200 = pneg %p103
      %p201 = pneg %p136
      %p202 = pneg %p133
      %s203 = smul.u32 32, %s21
      %p204 = scmp.lt.s32.totalorder %s19, 1
      %s205 = scalar_select %p204, %s19, 1
      %p206 = scmp.lt.s32.totalorder %s203, 31
      %s207 = scalar_select %p206, %s203, 31
      %p208 = scmp.lt.s32.totalorder %s20, 0
      %s209 = scalar_select %p208, %s20, 0
      %s210 = sadd.s32 %s209, %s207
      %s211 = smul.addr %s205, 32
      %s212 = sadd.s32 %s210, %s211
      %s213 = smul.addr %s212, 8
      %s214 = scalar_lea.vmem %s3, %s213
      %p215 = scmp.lt.s32.totalorder %s19, 1
      %s216 = scalar_select %p215, %s19, 1
      %s217 = smul.addr %s216, 54
      %s218 = smul.addr %s217, 4
      %s219 = scalar_lea.vmem %s0, %s218
      %p220 = scmp.lt.s32.totalorder %s20, 0
      %s221 = scalar_select %p220, %s20, 0
      %s222 = smul.addr %s221, 2
      %s223 = scalar_lea.vmem %s1, %s222
      %p224 = scmp.lt.s32.totalorder %s20, 0
      %s225 = scalar_select %p224, %s20, 0
      %s226 = scalar_lea.vmem %s2, %s225
      %s227 = smul.u32 32, %s21
      %p228 = scmp.lt.s32.totalorder %s19, 1
      %s229 = scalar_select %p228, %s19, 1
      %p230 = scmp.lt.s32.totalorder %s227, 31
      %s231 = scalar_select %p230, %s227, 31
      %p232 = scmp.lt.s32.totalorder %s20, 0
      %s233 = scalar_select %p232, %s20, 0
      %s234 = sadd.s32 %s233, %s231
      %s235 = smul.addr %s229, 32
      %s236 = sadd.s32 %s234, %s235
      %s237 = smul.addr %s236, 8
      %s238 = scalar_lea.vmem %s3, %s237
      %s239 = smul.u32 32, %s21
      %s241 = smul.u32 %s21, 16
      %s242 = smul.u32 %s241, 3
      %s243 = smul.addr %s242, 4
      %s244 = scalar_lea.vmem %s219, %s243
      %v245 = vld [vmem:[%s244] sm:$0xf]
      %v246 = vld [vmem:[%s244 + $0x4] sm:$0xf]
      %v247 = vld [vmem:[%s244 + $0xc] sm:$0xf]
      %v248 = vld [vmem:[%s244 + $0x10] sm:$0xf]
      %v249 = vld [vmem:[%s244 + $0x18] sm:$0xf]
      %v250 = vld [vmem:[%s244 + $0x1c] sm:$0xf]
      %v251 = vld [vmem:[%s244 + $0x24] sm:$0xf]
      %v252 = vld [vmem:[%s244 + $0x28] sm:$0xf]
      %v253 = vld [vmem:[%s244 + $0x30] sm:$0xf]
      %v254 = vld [vmem:[%s244 + $0x34] sm:$0xf]
      %v255 = vld [vmem:[%s244 + $0x3c] sm:$0xf]
      %v256 = vld [vmem:[%s244 + $0x40] sm:$0xf]
      %v257 = vld [vmem:[%s244 + $0x48] sm:$0xf]
      %v258 = vld [vmem:[%s244 + $0x4c] sm:$0xf]
      %v259 = vld [vmem:[%s244 + $0x54] sm:$0xf]
      %v260 = vld [vmem:[%s244 + $0x58] sm:$0xf]
      %v261 = vld [vmem:[%s244 + $0x60] sm:$0xf]
      %v262 = vld [vmem:[%s244 + $0x64] sm:$0xf]
      %v263 = vld [vmem:[%s244 + $0x6c] sm:$0xf]
      %v264 = vld [vmem:[%s244 + $0x70] sm:$0xf]
      %v265 = vld [vmem:[%s244 + $0x78] sm:$0xf]
      %v266 = vld [vmem:[%s244 + $0x7c] sm:$0xf]
      %v267 = vld [vmem:[%s244 + $0x84] sm:$0xf]
      %v268 = vld [vmem:[%s244 + $0x88] sm:$0xf]
      %v269 = vld [vmem:[%s244 + $0x90] sm:$0xf]
      %v270 = vld [vmem:[%s244 + $0x94] sm:$0xf]
      %v271 = vld [vmem:[%s244 + $0x9c] sm:$0xf]
      %v272 = vld [vmem:[%s244 + $0xa0] sm:$0xf]
      %v273 = vld [vmem:[%s244 + $0xa8] sm:$0xf]
      %v274 = vld [vmem:[%s244 + $0xac] sm:$0xf]
      %v275 = vld [vmem:[%s244 + $0xb4] sm:$0xf]
      %v276 = vld [vmem:[%s244 + $0xb8] sm:$0xf]
      %v277 = vld [vmem:[%s223] sm:$0x3]
      %v278 = vld [vmem:[%s226] sm:$0x1]
      %v280 = vlaneseq
      %v281 = vshrl.u32 %v280, 7
      %v282 = vsub.s32 0, %v281
      %v283 = vrot.slane %v278, %v282
      %v317 = vunpack.c.l.b16 %v245
      %v318 = vunpack.c.l.b16 %v246
      %v319 = vunpack.c.l.b16 %v247
      %v320 = vunpack.c.l.b16 %v248
      %v321 = vunpack.c.l.b16 %v249
      %v322 = vunpack.c.l.b16 %v250
      %v323 = vunpack.c.l.b16 %v251
      %v324 = vunpack.c.l.b16 %v252
      %v325 = vunpack.c.l.b16 %v253
      %v326 = vunpack.c.l.b16 %v254
      %v327 = vunpack.c.l.b16 %v255
      %v328 = vunpack.c.l.b16 %v256
      %v329 = vunpack.c.l.b16 %v257
      %v330 = vunpack.c.l.b16 %v258
      %v331 = vunpack.c.l.b16 %v259
      %v332 = vunpack.c.l.b16 %v260
      %v333 = vunpack.c.l.b16 %v261
      %v334 = vunpack.c.l.b16 %v262
      %v335 = vunpack.c.l.b16 %v263
      %v336 = vunpack.c.l.b16 %v264
      %v337 = vunpack.c.l.b16 %v265
      %v338 = vunpack.c.l.b16 %v266
      %v339 = vunpack.c.l.b16 %v267
      %v340 = vunpack.c.l.b16 %v268
      %v341 = vunpack.c.l.b16 %v269
      %v342 = vunpack.c.l.b16 %v270
      %v343 = vunpack.c.l.b16 %v271
      %v344 = vunpack.c.l.b16 %v272
      %v345 = vunpack.c.l.b16 %v273
      %v346 = vunpack.c.l.b16 %v274
      %v347 = vunpack.c.l.b16 %v275
      %v348 = vunpack.c.l.b16 %v276
      %v349 = vpack.c.b16 %v318, %v317
      %v350 = vpack.c.b16 %v320, %v319
      %v351 = vpack.c.b16 %v322, %v321
      %v352 = vpack.c.b16 %v324, %v323
      %v353 = vpack.c.b16 %v326, %v325
      %v354 = vpack.c.b16 %v328, %v327
      %v355 = vpack.c.b16 %v330, %v329
      %v356 = vpack.c.b16 %v332, %v331
      %v357 = vpack.c.b16 %v334, %v333
      %v358 = vpack.c.b16 %v336, %v335
      %v359 = vpack.c.b16 %v338, %v337
      %v360 = vpack.c.b16 %v340, %v339
      %v361 = vpack.c.b16 %v342, %v341
      %v362 = vpack.c.b16 %v344, %v343
      %v363 = vpack.c.b16 %v346, %v345
      %v364 = vpack.c.b16 %v348, %v347
      %vm365 = vcmask 31744
      %v367 = vsel %vm365, %v349, 0
      %v370 = vsel %vm365, %v350, 0
      %v373 = vsel %vm365, %v351, 0
      %v376 = vsel %vm365, %v352, 0
      %v379 = vsel %vm365, %v353, 0
      %v382 = vsel %vm365, %v354, 0
      %v385 = vsel %vm365, %v355, 0
      %v388 = vsel %vm365, %v356, 0
      %v391 = vsel %vm365, %v357, 0
      %v394 = vsel %vm365, %v358, 0
      %v397 = vsel %vm365, %v359, 0
      %v400 = vsel %vm365, %v360, 0
      %v403 = vsel %vm365, %v361, 0
      %v406 = vsel %vm365, %v362, 0
      %v409 = vsel %vm365, %v363, 0
      %v412 = vsel %vm365, %v364, 0
      %vm414 = vcmask 1041408
      %v416 = vsel %vm414, %v277, 0
      %418 = vmatprep.subr.bf16.mxu0 0
      %419 = vmatpush1.bf16.msra.mxu0 0
      %420 = vmatprep.subr.bf16.mxu0 0
      %421 = vmatpush1.bf16.msra.mxu0 0
      %422 = vmatprep.subr.bf16.mxu0 0
      %423 = vmatpush1.bf16.msra.mxu0 0
      %424 = vmatprep.subr.bf16.mxu0 0
      %425 = vmatpush1.bf16.msra.mxu0 0
      %426 = vmatprep.subr.bf16.mxu0 0
      %427 = vmatpush1.bf16.msra.mxu0 0
      %428 = vmatprep.subr.bf16.mxu0 0
      %429 = vmatpush1.bf16.msra.mxu0 0
      %430 = vmatprep.subr.bf16.mxu0 0
      %431 = vmatpush1.bf16.msra.mxu0 0
      %432 = vmatprep.subr.bf16.mxu0 0
      %433 = vmatpush1.bf16.msra.mxu0 %v416
      %434 = vmatprep.subr.bf16.mxu0 0
      %435 = vmatpush2.bf16.msra.mxu0 0
      %436 = vmatprep.subr.bf16.mxu0 0
      %437 = vmatpush2.bf16.msra.mxu0 0
      %438 = vmatprep.subr.bf16.mxu0 0
      %439 = vmatpush2.bf16.msra.mxu0 0
      %440 = vmatprep.subr.bf16.mxu0 0
      %441 = vmatpush2.bf16.msra.mxu0 0
      %442 = vmatprep.subr.bf16.mxu0 0
      %443 = vmatpush2.bf16.msra.mxu0 0
      %444 = vmatprep.subr.bf16.mxu0 0
      %445 = vmatpush2.bf16.msra.mxu0 0
      %446 = vmatprep.subr.bf16.mxu0 0
      %447 = vmatpush2.bf16.msra.mxu0 0
      %448 = vmatprep.subr.bf16.mxu0 0
      %449 = vmatpush2.bf16.msra.mxu0 0
      %450 = vmatprep.mubr.bf16.mxu0 0
      %451 = vmatmul.mubr.bf16.gmra.mxu0 %v367
      %v452 = vpop.f32.mrf.mxu0
      %v453 = vadd.f32 %v283, %v452
      %v454 = vpop.f32.mrf.mxu0
      %v455 = vpop.f32.mrf.mxu0
      %v456 = vadd.f32 %v283, %v455
      %v457 = vpop.f32.mrf.mxu0
      %458 = vmatprep.mubr.bf16.mxu0 0
      %459 = vmatmul.mubr.bf16.gmra.mxu0 %v370
      %v460 = vpop.f32.mrf.mxu0
      %v461 = vadd.f32 %v283, %v460
      %v462 = vpop.f32.mrf.mxu0
      %v463 = vpop.f32.mrf.mxu0
      %v464 = vadd.f32 %v283, %v463
      %v465 = vpop.f32.mrf.mxu0
      %466 = vmatprep.mubr.bf16.mxu0 0
      %467 = vmatmul.mubr.bf16.gmra.mxu0 %v373
      %v468 = vpop.f32.mrf.mxu0
      %v469 = vadd.f32 %v283, %v468
      %v470 = vpop.f32.mrf.mxu0
      %v471 = vpop.f32.mrf.mxu0
      %v472 = vadd.f32 %v283, %v471
      %v473 = vpop.f32.mrf.mxu0
      %474 = vmatprep.mubr.bf16.mxu0 0
      %475 = vmatmul.mubr.bf16.gmra.mxu0 %v376
      %v476 = vpop.f32.mrf.mxu0
      %v477 = vadd.f32 %v283, %v476
      %v478 = vpop.f32.mrf.mxu0
      %v479 = vpop.f32.mrf.mxu0
      %v480 = vadd.f32 %v283, %v479
      %v481 = vpop.f32.mrf.mxu0
      %482 = vmatprep.mubr.bf16.mxu0 0
      %483 = vmatmul.mubr.bf16.gmra.mxu0 %v379
      %v484 = vpop.f32.mrf.mxu0
      %v485 = vadd.f32 %v283, %v484
      %v486 = vpop.f32.mrf.mxu0
      %v487 = vpop.f32.mrf.mxu0
      %v488 = vadd.f32 %v283, %v487
      %v489 = vpop.f32.mrf.mxu0
      %490 = vmatprep.mubr.bf16.mxu0 0
      %491 = vmatmul.mubr.bf16.gmra.mxu0 %v382
      %v492 = vpop.f32.mrf.mxu0
      %v493 = vadd.f32 %v283, %v492
      %v494 = vpop.f32.mrf.mxu0
      %v495 = vpop.f32.mrf.mxu0
      %v496 = vadd.f32 %v283, %v495
      %v497 = vpop.f32.mrf.mxu0
      %498 = vmatprep.mubr.bf16.mxu0 0
      %499 = vmatmul.mubr.bf16.gmra.mxu0 %v385
      %v500 = vpop.f32.mrf.mxu0
      %v501 = vadd.f32 %v283, %v500
      %v502 = vpop.f32.mrf.mxu0
      %v503 = vpop.f32.mrf.mxu0
      %v504 = vadd.f32 %v283, %v503
      %v505 = vpop.f32.mrf.mxu0
      %506 = vmatprep.mubr.bf16.mxu0 0
      %507 = vmatmul.mubr.bf16.gmra.mxu0 %v388
      %v508 = vpop.f32.mrf.mxu0
      %v509 = vadd.f32 %v283, %v508
      %v510 = vpop.f32.mrf.mxu0
      %v511 = vpop.f32.mrf.mxu0
      %v512 = vadd.f32 %v283, %v511
      %v513 = vpop.f32.mrf.mxu0
      %514 = vmatprep.mubr.bf16.mxu0 0
      %515 = vmatmul.mubr.bf16.gmra.mxu0 %v391
      %v516 = vpop.f32.mrf.mxu0
      %v517 = vadd.f32 %v283, %v516
      %v518 = vpop.f32.mrf.mxu0
      %v519 = vpop.f32.mrf.mxu0
      %v520 = vadd.f32 %v283, %v519
      %v521 = vpop.f32.mrf.mxu0
      %522 = vmatprep.mubr.bf16.mxu0 0
      %523 = vmatmul.mubr.bf16.gmra.mxu0 %v394
      %v524 = vpop.f32.mrf.mxu0
      %v525 = vadd.f32 %v283, %v524
      %v526 = vpop.f32.mrf.mxu0
      %v527 = vpop.f32.mrf.mxu0
      %v528 = vadd.f32 %v283, %v527
      %v529 = vpop.f32.mrf.mxu0
      %530 = vmatprep.mubr.bf16.mxu0 0
      %531 = vmatmul.mubr.bf16.gmra.mxu0 %v397
      %v532 = vpop.f32.mrf.mxu0
      %v533 = vadd.f32 %v283, %v532
      %v534 = vpop.f32.mrf.mxu0
      %v535 = vpop.f32.mrf.mxu0
      %v536 = vadd.f32 %v283, %v535
      %v537 = vpop.f32.mrf.mxu0
      %538 = vmatprep.mubr.bf16.mxu0 0
      %539 = vmatmul.mubr.bf16.gmra.mxu0 %v400
      %v540 = vpop.f32.mrf.mxu0
      %v541 = vadd.f32 %v283, %v540
      %v542 = vpop.f32.mrf.mxu0
      %v543 = vpop.f32.mrf.mxu0
      %v544 = vadd.f32 %v283, %v543
      %v545 = vpop.f32.mrf.mxu0
      %546 = vmatprep.mubr.bf16.mxu0 0
      %547 = vmatmul.mubr.bf16.gmra.mxu0 %v403
      %v548 = vpop.f32.mrf.mxu0
      %v549 = vadd.f32 %v283, %v548
      %v550 = vpop.f32.mrf.mxu0
      %v551 = vpop.f32.mrf.mxu0
      %v552 = vadd.f32 %v283, %v551
      %v553 = vpop.f32.mrf.mxu0
      %554 = vmatprep.mubr.bf16.mxu0 0
      %555 = vmatmul.mubr.bf16.gmra.mxu0 %v406
      %v556 = vpop.f32.mrf.mxu0
      %v557 = vadd.f32 %v283, %v556
      %v558 = vpop.f32.mrf.mxu0
      %v559 = vpop.f32.mrf.mxu0
      %v560 = vadd.f32 %v283, %v559
      %v561 = vpop.f32.mrf.mxu0
      %562 = vmatprep.mubr.bf16.mxu0 0
      %563 = vmatmul.mubr.bf16.gmra.mxu0 %v409
      %v564 = vpop.f32.mrf.mxu0
      %v565 = vadd.f32 %v283, %v564
      %v566 = vpop.f32.mrf.mxu0
      %v567 = vpop.f32.mrf.mxu0
      %v568 = vadd.f32 %v283, %v567
      %v569 = vpop.f32.mrf.mxu0
      %570 = vmatprep.mubr.bf16.mxu0 0
      %571 = vmatmul.mubr.bf16.gmra.mxu0 %v412
      %v572 = vpop.f32.mrf.mxu0
      %v573 = vadd.f32 %v283, %v572
      %v574 = vpop.f32.mrf.mxu0
      %v575 = vpop.f32.mrf.mxu0
      %v576 = vadd.f32 %v283, %v575
      %v577 = vpop.f32.mrf.mxu0
      %578 = vdwg.mxu0
      %579 = vst.msk [vmem:[%s238] sm:$0xff] %vm365, %v453
      %580 = vst.msk [vmem:[%s238 + $0x8] sm:$0xff] %vm365, %v456
      %581 = vst.msk [vmem:[%s238 + $0x10] sm:$0xff] %vm365, %v461
      %582 = vst.msk [vmem:[%s238 + $0x18] sm:$0xff] %vm365, %v464
      %583 = vst.msk [vmem:[%s238 + $0x20] sm:$0xff] %vm365, %v469
      %584 = vst.msk [vmem:[%s238 + $0x28] sm:$0xff] %vm365, %v472
      %585 = vst.msk [vmem:[%s238 + $0x30] sm:$0xff] %vm365, %v477
      %586 = vst.msk [vmem:[%s238 + $0x38] sm:$0xff] %vm365, %v480
      %587 = vst.msk [vmem:[%s238 + $0x40] sm:$0xff] %vm365, %v485
      %588 = vst.msk [vmem:[%s238 + $0x48] sm:$0xff] %vm365, %v488
      %589 = vst.msk [vmem:[%s238 + $0x50] sm:$0xff] %vm365, %v493
      %590 = vst.msk [vmem:[%s238 + $0x58] sm:$0xff] %vm365, %v496
      %591 = vst.msk [vmem:[%s238 + $0x60] sm:$0xff] %vm365, %v501
      %592 = vst.msk [vmem:[%s238 + $0x68] sm:$0xff] %vm365, %v504
      %593 = vst.msk [vmem:[%s238 + $0x70] sm:$0xff] %vm365, %v509
      %594 = vst.msk [vmem:[%s238 + $0x78] sm:$0xff] %vm365, %v512
      %595 = vst.msk [vmem:[%s238 + $0x80] sm:$0xff] %vm365, %v517
      %596 = vst.msk [vmem:[%s238 + $0x88] sm:$0xff] %vm365, %v520
      %597 = vst.msk [vmem:[%s238 + $0x90] sm:$0xff] %vm365, %v525
      %598 = vst.msk [vmem:[%s238 + $0x98] sm:$0xff] %vm365, %v528
      %599 = vst.msk [vmem:[%s238 + $0xa0] sm:$0xff] %vm365, %v533
      %600 = vst.msk [vmem:[%s238 + $0xa8] sm:$0xff] %vm365, %v536
      %601 = vst.msk [vmem:[%s238 + $0xb0] sm:$0xff] %vm365, %v541
      %602 = vst.msk [vmem:[%s238 + $0xb8] sm:$0xff] %vm365, %v544
      %603 = vst.msk [vmem:[%s238 + $0xc0] sm:$0xff] %vm365, %v549
      %604 = vst.msk [vmem:[%s238 + $0xc8] sm:$0xff] %vm365, %v552
      %605 = vst.msk [vmem:[%s238 + $0xd0] sm:$0xff] %vm365, %v557
      %606 = vst.msk [vmem:[%s238 + $0xd8] sm:$0xff] %vm365, %v560
      %607 = vst.msk [vmem:[%s238 + $0xe0] sm:$0xff] %vm365, %v565
      %608 = vst.msk [vmem:[%s238 + $0xe8] sm:$0xff] %vm365, %v568
      %609 = vst.msk [vmem:[%s238 + $0xf0] sm:$0xff] %vm365, %v573
      %610 = vst.msk [vmem:[%s238 + $0xf8] sm:$0xff] %vm365, %v576
      %v611 = vld [vmem:[%s244] sm:$0xf]
      %v612 = vld [vmem:[%s244 + $0x4] sm:$0xf]
      %v613 = vld [vmem:[%s244 + $0x8] sm:$0x1]
      %v614 = vld [vmem:[%s244 + $0xc] sm:$0xf]
      %v615 = vld [vmem:[%s244 + $0x10] sm:$0xf]
      %v616 = vld [vmem:[%s244 + $0x14] sm:$0x1]
      %v617 = vld [vmem:[%s244 + $0x18] sm:$0xf]
      %v618 = vld [vmem:[%s244 + $0x1c] sm:$0xf]
      %v619 = vld [vmem:[%s244 + $0x20] sm:$0x1]
      %v620 = vld [vmem:[%s244 + $0x24] sm:$0xf]
      %v621 = vld [vmem:[%s244 + $0x28] sm:$0xf]
      %v622 = vld [vmem:[%s244 + $0x2c] sm:$0x1]
      %v623 = vld [vmem:[%s244 + $0x30] sm:$0xf]
      %v624 = vld [vmem:[%s244 + $0x34] sm:$0xf]
      %v625 = vld [vmem:[%s244 + $0x38] sm:$0x1]
      %v626 = vld [vmem:[%s244 + $0x3c] sm:$0xf]
      %v627 = vld [vmem:[%s244 + $0x40] sm:$0xf]
      %v628 = vld [vmem:[%s244 + $0x44] sm:$0x1]
      %v629 = vld [vmem:[%s244 + $0x48] sm:$0xf]
      %v630 = vld [vmem:[%s244 + $0x4c] sm:$0xf]
      %v631 = vld [vmem:[%s244 + $0x50] sm:$0x1]
      %v632 = vld [vmem:[%s244 + $0x54] sm:$0xf]
      %v633 = vld [vmem:[%s244 + $0x58] sm:$0xf]
      %v634 = vld [vmem:[%s244 + $0x5c] sm:$0x1]
      %v635 = vld [vmem:[%s244 + $0x60] sm:$0xf]
      %v636 = vld [vmem:[%s244 + $0x64] sm:$0xf]
      %v637 = vld [vmem:[%s244 + $0x68] sm:$0x1]
      %v638 = vld [vmem:[%s244 + $0x6c] sm:$0xf]
      %v639 = vld [vmem:[%s244 + $0x70] sm:$0xf]
      %v640 = vld [vmem:[%s244 + $0x74] sm:$0x1]
      %v641 = vld [vmem:[%s244 + $0x78] sm:$0xf]
      %v642 = vld [vmem:[%s244 + $0x7c] sm:$0xf]
      %v643 = vld [vmem:[%s244 + $0x80] sm:$0x1]
      %v644 = vld [vmem:[%s244 + $0x84] sm:$0xf]
      %v645 = vld [vmem:[%s244 + $0x88] sm:$0xf]
      %v646 = vld [vmem:[%s244 + $0x8c] sm:$0x1]
      %v647 = vld [vmem:[%s244 + $0x90] sm:$0xf]
      %v648 = vld [vmem:[%s244 + $0x94] sm:$0xf]
      %v649 = vld [vmem:[%s244 + $0x98] sm:$0x1]
      %v650 = vld [vmem:[%s244 + $0x9c] sm:$0xf]
      %v651 = vld [vmem:[%s244 + $0xa0] sm:$0xf]
      %v652 = vld [vmem:[%s244 + $0xa4] sm:$0x1]
      %v653 = vld [vmem:[%s244 + $0xa8] sm:$0xf]
      %v654 = vld [vmem:[%s244 + $0xac] sm:$0xf]
      %v655 = vld [vmem:[%s244 + $0xb0] sm:$0x1]
      %v656 = vld [vmem:[%s244 + $0xb4] sm:$0xf]
      %v657 = vld [vmem:[%s244 + $0xb8] sm:$0xf]
      %v658 = vld [vmem:[%s244 + $0xbc] sm:$0x1]
      %vm659 = vsmask.f32 3328
      %vm660 = vsmask.f32 7440
      %vm661 = vmor %vm659, %vm660
      %v663 = vshrl.u32 %v611, 16
      %v665 = vrot.slane %v663, 4
      %v666 = vshll.u32 %v611, 16
      %v668 = vrot.slane %v666, 5
      %v669 = vor.u32 %v665, %v668
      %v670 = vrot.slane %v669, 4
      %v672 = vshll.u32 %v612, 16
      %v674 = vrot.slane %v672, 5
      %v675 = vsel %vm661, %v670, %v674
      %v676 = vshrl.u32 %v612, 16
      %v678 = vrot.slane %v676, 4
      %v679 = vor.u32 %v678, %v674
      %v680 = vrot.slane %v679, 4
      %v682 = vshll.u32 %v613, 16
      %v684 = vrot.slane %v682, 5
      %v685 = vsel %vm661, %v680, %v684
      %v687 = vshrl.u32 %v614, 16
      %v689 = vrot.slane %v687, 4
      %v690 = vshll.u32 %v614, 16
      %v692 = vrot.slane %v690, 5
      %v693 = vor.u32 %v689, %v692
      %v694 = vrot.slane %v693, 4
      %v696 = vshll.u32 %v615, 16
      %v698 = vrot.slane %v696, 5
      %v699 = vsel %vm661, %v694, %v698
      %v700 = vshrl.u32 %v615, 16
      %v702 = vrot.slane %v700, 4
      %v703 = vor.u32 %v702, %v698
      %v704 = vrot.slane %v703, 4
      %v706 = vshll.u32 %v616, 16
      %v708 = vrot.slane %v706, 5
      %v709 = vsel %vm661, %v704, %v708
      %v711 = vshrl.u32 %v617, 16
      %v713 = vrot.slane %v711, 4
      %v714 = vshll.u32 %v617, 16
      %v716 = vrot.slane %v714, 5
      %v717 = vor.u32 %v713, %v716
      %v718 = vrot.slane %v717, 4
      %v720 = vshll.u32 %v618, 16
      %v722 = vrot.slane %v720, 5
      %v723 = vsel %vm661, %v718, %v722
      %v724 = vshrl.u32 %v618, 16
      %v726 = vrot.slane %v724, 4
      %v727 = vor.u32 %v726, %v722
      %v728 = vrot.slane %v727, 4
      %v730 = vshll.u32 %v619, 16
      %v732 = vrot.slane %v730, 5
      %v733 = vsel %vm661, %v728, %v732
      %v735 = vshrl.u32 %v620, 16
      %v737 = vrot.slane %v735, 4
      %v738 = vshll.u32 %v620, 16
      %v740 = vrot.slane %v738, 5
      %v741 = vor.u32 %v737, %v740
      %v742 = vrot.slane %v741, 4
      %v744 = vshll.u32 %v621, 16
      %v746 = vrot.slane %v744, 5
      %v747 = vsel %vm661, %v742, %v746
      %v748 = vshrl.u32 %v621, 16
      %v750 = vrot.slane %v748, 4
      %v751 = vor.u32 %v750, %v746
      %v752 = vrot.slane %v751, 4
      %v754 = vshll.u32 %v622, 16
      %v756 = vrot.slane %v754, 5
      %v757 = vsel %vm661, %v752, %v756
      %v759 = vshrl.u32 %v623, 16
      %v761 = vrot.slane %v759, 4
      %v762 = vshll.u32 %v623, 16
      %v764 = vrot.slane %v762, 5
      %v765 = vor.u32 %v761, %v764
      %v766 = vrot.slane %v765, 4
      %v768 = vshll.u32 %v624, 16
      %v770 = vrot.slane %v768, 5
      %v771 = vsel %vm661, %v766, %v770
      %v772 = vshrl.u32 %v624, 16
      %v774 = vrot.slane %v772, 4
      %v775 = vor.u32 %v774, %v770
      %v776 = vrot.slane %v775, 4
      %v778 = vshll.u32 %v625, 16
      %v780 = vrot.slane %v778, 5
      %v781 = vsel %vm661, %v776, %v780
      %v783 = vshrl.u32 %v626, 16
      %v785 = vrot.slane %v783, 4
      %v786 = vshll.u32 %v626, 16
      %v788 = vrot.slane %v786, 5
      %v789 = vor.u32 %v785, %v788
      %v790 = vrot.slane %v789, 4
      %v792 = vshll.u32 %v627, 16
      %v794 = vrot.slane %v792, 5
      %v795 = vsel %vm661, %v790, %v794
      %v796 = vshrl.u32 %v627, 16
      %v798 = vrot.slane %v796, 4
      %v799 = vor.u32 %v798, %v794
      %v800 = vrot.slane %v799, 4
      %v802 = vshll.u32 %v628, 16
      %v804 = vrot.slane %v802, 5
      %v805 = vsel %vm661, %v800, %v804
      %v807 = vshrl.u32 %v629, 16
      %v809 = vrot.slane %v807, 4
      %v810 = vshll.u32 %v629, 16
      %v812 = vrot.slane %v810, 5
      %v813 = vor.u32 %v809, %v812
      %v814 = vrot.slane %v813, 4
      %v816 = vshll.u32 %v630, 16
      %v818 = vrot.slane %v816, 5
      %v819 = vsel %vm661, %v814, %v818
      %v820 = vshrl.u32 %v630, 16
      %v822 = vrot.slane %v820, 4
      %v823 = vor.u32 %v822, %v818
      %v824 = vrot.slane %v823, 4
      %v826 = vshll.u32 %v631, 16
      %v828 = vrot.slane %v826, 5
      %v829 = vsel %vm661, %v824, %v828
      %v831 = vshrl.u32 %v632, 16
      %v833 = vrot.slane %v831, 4
      %v834 = vshll.u32 %v632, 16
      %v836 = vrot.slane %v834, 5
      %v837 = vor.u32 %v833, %v836
      %v838 = vrot.slane %v837, 4
      %v840 = vshll.u32 %v633, 16
      %v842 = vrot.slane %v840, 5
      %v843 = vsel %vm661, %v838, %v842
      %v844 = vshrl.u32 %v633, 16
      %v846 = vrot.slane %v844, 4
      %v847 = vor.u32 %v846, %v842
      %v848 = vrot.slane %v847, 4
      %v850 = vshll.u32 %v634, 16
      %v852 = vrot.slane %v850, 5
      %v853 = vsel %vm661, %v848, %v852
      %v855 = vshrl.u32 %v635, 16
      %v857 = vrot.slane %v855, 4
      %v858 = vshll.u32 %v635, 16
      %v860 = vrot.slane %v858, 5
      %v861 = vor.u32 %v857, %v860
      %v862 = vrot.slane %v861, 4
      %v864 = vshll.u32 %v636, 16
      %v866 = vrot.slane %v864, 5
      %v867 = vsel %vm661, %v862, %v866
      %v868 = vshrl.u32 %v636, 16
      %v870 = vrot.slane %v868, 4
      %v871 = vor.u32 %v870, %v866
      %v872 = vrot.slane %v871, 4
      %v874 = vshll.u32 %v637, 16
      %v876 = vrot.slane %v874, 5
      %v877 = vsel %vm661, %v872, %v876
      %v879 = vshrl.u32 %v638, 16
      %v881 = vrot.slane %v879, 4
      %v882 = vshll.u32 %v638, 16
      %v884 = vrot.slane %v882, 5
      %v885 = vor.u32 %v881, %v884
      %v886 = vrot.slane %v885, 4
      %v888 = vshll.u32 %v639, 16
      %v890 = vrot.slane %v888, 5
      %v891 = vsel %vm661, %v886, %v890
      %v892 = vshrl.u32 %v639, 16
      %v894 = vrot.slane %v892, 4
      %v895 = vor.u32 %v894, %v890
      %v896 = vrot.slane %v895, 4
      %v898 = vshll.u32 %v640, 16
      %v900 = vrot.slane %v898, 5
      %v901 = vsel %vm661, %v896, %v900
      %v903 = vshrl.u32 %v641, 16
      %v905 = vrot.slane %v903, 4
      %v906 = vshll.u32 %v641, 16
      %v908 = vrot.slane %v906, 5
      %v909 = vor.u32 %v905, %v908
      %v910 = vrot.slane %v909, 4
      %v912 = vshll.u32 %v642, 16
      %v914 = vrot.slane %v912, 5
      %v915 = vsel %vm661, %v910, %v914
      %v916 = vshrl.u32 %v642, 16
      %v918 = vrot.slane %v916, 4
      %v919 = vor.u32 %v918, %v914
      %v920 = vrot.slane %v919, 4
      %v922 = vshll.u32 %v643, 16
      %v924 = vrot.slane %v922, 5
      %v925 = vsel %vm661, %v920, %v924
      %v927 = vshrl.u32 %v644, 16
      %v929 = vrot.slane %v927, 4
      %v930 = vshll.u32 %v644, 16
      %v932 = vrot.slane %v930, 5
      %v933 = vor.u32 %v929, %v932
      %v934 = vrot.slane %v933, 4
      %v936 = vshll.u32 %v645, 16
      %v938 = vrot.slane %v936, 5
      %v939 = vsel %vm661, %v934, %v938
      %v940 = vshrl.u32 %v645, 16
      %v942 = vrot.slane %v940, 4
      %v943 = vor.u32 %v942, %v938
      %v944 = vrot.slane %v943, 4
      %v946 = vshll.u32 %v646, 16
      %v948 = vrot.slane %v946, 5
      %v949 = vsel %vm661, %v944, %v948
      %v951 = vshrl.u32 %v647, 16
      %v953 = vrot.slane %v951, 4
      %v954 = vshll.u32 %v647, 16
      %v956 = vrot.slane %v954, 5
      %v957 = vor.u32 %v953, %v956
      %v958 = vrot.slane %v957, 4
      %v960 = vshll.u32 %v648, 16
      %v962 = vrot.slane %v960, 5
      %v963 = vsel %vm661, %v958, %v962
      %v964 = vshrl.u32 %v648, 16
      %v966 = vrot.slane %v964, 4
      %v967 = vor.u32 %v966, %v962
      %v968 = vrot.slane %v967, 4
      %v970 = vshll.u32 %v649, 16
      %v972 = vrot.slane %v970, 5
      %v973 = vsel %vm661, %v968, %v972
      %v975 = vshrl.u32 %v650, 16
      %v977 = vrot.slane %v975, 4
      %v978 = vshll.u32 %v650, 16
      %v980 = vrot.slane %v978, 5
      %v981 = vor.u32 %v977, %v980
      %v982 = vrot.slane %v981, 4
      %v984 = vshll.u32 %v651, 16
      %v986 = vrot.slane %v984, 5
      %v987 = vsel %vm661, %v982, %v986
      %v988 = vshrl.u32 %v651, 16
      %v990 = vrot.slane %v988, 4
      %v991 = vor.u32 %v990, %v986
      %v992 = vrot.slane %v991, 4
      %v994 = vshll.u32 %v652, 16
      %v996 = vrot.slane %v994, 5
      %v997 = vsel %vm661, %v992, %v996
      %v999 = vshrl.u32 %v653, 16
      %v1001 = vrot.slane %v999, 4
      %v1002 = vshll.u32 %v653, 16
      %v1004 = vrot.slane %v1002, 5
      %v1005 = vor.u32 %v1001, %v1004
      %v1006 = vrot.slane %v1005, 4
      %v1008 = vshll.u32 %v654, 16
      %v1010 = vrot.slane %v1008, 5
      %v1011 = vsel %vm661, %v1006, %v1010
      %v1012 = vshrl.u32 %v654, 16
      %v1014 = vrot.slane %v1012, 4
      %v1015 = vor.u32 %v1014, %v1010
      %v1016 = vrot.slane %v1015, 4
      %v1018 = vshll.u32 %v655, 16
      %v1020 = vrot.slane %v1018, 5
      %v1021 = vsel %vm661, %v1016, %v1020
      %v1023 = vshrl.u32 %v656, 16
      %v1025 = vrot.slane %v1023, 4
      %v1026 = vshll.u32 %v656, 16
      %v1028 = vrot.slane %v1026, 5
      %v1029 = vor.u32 %v1025, %v1028
      %v1030 = vrot.slane %v1029, 4
      %v1032 = vshll.u32 %v657, 16
      %v1034 = vrot.slane %v1032, 5
      %v1035 = vsel %vm661, %v1030, %v1034
      %v1036 = vshrl.u32 %v657, 16
      %v1038 = vrot.slane %v1036, 4
      %v1039 = vor.u32 %v1038, %v1034
      %v1040 = vrot.slane %v1039, 4
      %v1042 = vshll.u32 %v658, 16
      %v1044 = vrot.slane %v1042, 5
      %v1045 = vsel %vm661, %v1040, %v1044
      %s1046 = scalar_lea.vmem %s223, 2
      %v1047 = vld [vmem:[%s1046] sm:$0x3]
      %v1048 = vunpack.c.l.b16 %v675
      %v1049 = vunpack.c.l.b16 %v685
      %v1050 = vunpack.c.l.b16 %v699
      %v1051 = vunpack.c.l.b16 %v709
      %v1052 = vunpack.c.l.b16 %v723
      %v1053 = vunpack.c.l.b16 %v733
      %v1054 = vunpack.c.l.b16 %v747
      %v1055 = vunpack.c.l.b16 %v757
      %v1056 = vunpack.c.l.b16 %v771
      %v1057 = vunpack.c.l.b16 %v781
      %v1058 = vunpack.c.l.b16 %v795
      %v1059 = vunpack.c.l.b16 %v805
      %v1060 = vunpack.c.l.b16 %v819
      %v1061 = vunpack.c.l.b16 %v829
      %v1062 = vunpack.c.l.b16 %v843
      %v1063 = vunpack.c.l.b16 %v853
      %v1064 = vunpack.c.l.b16 %v867
      %v1065 = vunpack.c.l.b16 %v877
      %v1066 = vunpack.c.l.b16 %v891
      %v1067 = vunpack.c.l.b16 %v901
      %v1068 = vunpack.c.l.b16 %v915
      %v1069 = vunpack.c.l.b16 %v925
      %v1070 = vunpack.c.l.b16 %v939
      %v1071 = vunpack.c.l.b16 %v949
      %v1072 = vunpack.c.l.b16 %v963
      %v1073 = vunpack.c.l.b16 %v973
      %v1074 = vunpack.c.l.b16 %v987
      %v1075 = vunpack.c.l.b16 %v997
      %v1076 = vunpack.c.l.b16 %v1011
      %v1077 = vunpack.c.l.b16 %v1021
      %v1078 = vunpack.c.l.b16 %v1035
      %v1079 = vunpack.c.l.b16 %v1045
      %v1080 = vpack.c.b16 %v1049, %v1048
      %v1081 = vpack.c.b16 %v1051, %v1050
      %v1082 = vpack.c.b16 %v1053, %v1052
      %v1083 = vpack.c.b16 %v1055, %v1054
      %v1084 = vpack.c.b16 %v1057, %v1056
      %v1085 = vpack.c.b16 %v1059, %v1058
      %v1086 = vpack.c.b16 %v1061, %v1060
      %v1087 = vpack.c.b16 %v1063, %v1062
      %v1088 = vpack.c.b16 %v1065, %v1064
      %v1089 = vpack.c.b16 %v1067, %v1066
      %v1090 = vpack.c.b16 %v1069, %v1068
      %v1091 = vpack.c.b16 %v1071, %v1070
      %v1092 = vpack.c.b16 %v1073, %v1072
      %v1093 = vpack.c.b16 %v1075, %v1074
      %v1094 = vpack.c.b16 %v1077, %v1076
      %v1095 = vpack.c.b16 %v1079, %v1078
      %v1097 = vsel %vm365, %v1080, 0
      %v1100 = vsel %vm365, %v1081, 0
      %v1103 = vsel %vm365, %v1082, 0
      %v1106 = vsel %vm365, %v1083, 0
      %v1109 = vsel %vm365, %v1084, 0
      %v1112 = vsel %vm365, %v1085, 0
      %v1115 = vsel %vm365, %v1086, 0
      %v1118 = vsel %vm365, %v1087, 0
      %v1121 = vsel %vm365, %v1088, 0
      %v1124 = vsel %vm365, %v1089, 0
      %v1127 = vsel %vm365, %v1090, 0
      %v1130 = vsel %vm365, %v1091, 0
      %v1133 = vsel %vm365, %v1092, 0
      %v1136 = vsel %vm365, %v1093, 0
      %v1139 = vsel %vm365, %v1094, 0
      %v1142 = vsel %vm365, %v1095, 0
      %v1145 = vsel %vm414, %v1047, 0
      %1147 = vmatprep.subr.bf16.mxu0 0
      %1148 = vmatpush1.bf16.msra.mxu0 0
      %1149 = vmatprep.subr.bf16.mxu0 0
      %1150 = vmatpush1.bf16.msra.mxu0 0
      %1151 = vmatprep.subr.bf16.mxu0 0
      %1152 = vmatpush1.bf16.msra.mxu0 0
      %1153 = vmatprep.subr.bf16.mxu0 0
      %1154 = vmatpush1.bf16.msra.mxu0 0
      %1155 = vmatprep.subr.bf16.mxu0 0
      %1156 = vmatpush1.bf16.msra.mxu0 0
      %1157 = vmatprep.subr.bf16.mxu0 0
      %1158 = vmatpush1.bf16.msra.mxu0 0
      %1159 = vmatprep.subr.bf16.mxu0 0
      %1160 = vmatpush1.bf16.msra.mxu0 0
      %1161 = vmatprep.subr.bf16.mxu0 0
      %1162 = vmatpush1.bf16.msra.mxu0 %v1145
      %1163 = vmatprep.subr.bf16.mxu0 0
      %1164 = vmatpush2.bf16.msra.mxu0 0
      %1165 = vmatprep.subr.bf16.mxu0 0
      %1166 = vmatpush2.bf16.msra.mxu0 0
      %1167 = vmatprep.subr.bf16.mxu0 0
      %1168 = vmatpush2.bf16.msra.mxu0 0
      %1169 = vmatprep.subr.bf16.mxu0 0
      %1170 = vmatpush2.bf16.msra.mxu0 0
      %1171 = vmatprep.subr.bf16.mxu0 0
      %1172 = vmatpush2.bf16.msra.mxu0 0
      %1173 = vmatprep.subr.bf16.mxu0 0
      %1174 = vmatpush2.bf16.msra.mxu0 0
      %1175 = vmatprep.subr.bf16.mxu0 0
      %1176 = vmatpush2.bf16.msra.mxu0 0
      %1177 = vmatprep.subr.bf16.mxu0 0
      %1178 = vmatpush2.bf16.msra.mxu0 0
      %1179 = vmatprep.mubr.bf16.mxu0 0
      %1180 = vmatmul.mubr.bf16.gmra.mxu0 %v1097
      %v1181 = vpop.f32.mrf.mxu0
      %v1182 = vadd.f32 0.0, %v1181
      %v1183 = vpop.f32.mrf.mxu0
      %v1184 = vpop.f32.mrf.mxu0
      %v1185 = vadd.f32 0.0, %v1184
      %v1186 = vpop.f32.mrf.mxu0
      %1187 = vmatprep.mubr.bf16.mxu0 0
      %1188 = vmatmul.mubr.bf16.gmra.mxu0 %v1100
      %v1189 = vpop.f32.mrf.mxu0
      %v1190 = vadd.f32 0.0, %v1189
      %v1191 = vpop.f32.mrf.mxu0
      %v1192 = vpop.f32.mrf.mxu0
      %v1193 = vadd.f32 0.0, %v1192
      %v1194 = vpop.f32.mrf.mxu0
      %1195 = vmatprep.mubr.bf16.mxu0 0
      %1196 = vmatmul.mubr.bf16.gmra.mxu0 %v1103
      %v1197 = vpop.f32.mrf.mxu0
      %v1198 = vadd.f32 0.0, %v1197
      %v1199 = vpop.f32.mrf.mxu0
      %v1200 = vpop.f32.mrf.mxu0
      %v1201 = vadd.f32 0.0, %v1200
      %v1202 = vpop.f32.mrf.mxu0
      %1203 = vmatprep.mubr.bf16.mxu0 0
      %1204 = vmatmul.mubr.bf16.gmra.mxu0 %v1106
      %v1205 = vpop.f32.mrf.mxu0
      %v1206 = vadd.f32 0.0, %v1205
      %v1207 = vpop.f32.mrf.mxu0
      %v1208 = vpop.f32.mrf.mxu0
      %v1209 = vadd.f32 0.0, %v1208
      %v1210 = vpop.f32.mrf.mxu0
      %1211 = vmatprep.mubr.bf16.mxu0 0
      %1212 = vmatmul.mubr.bf16.gmra.mxu0 %v1109
      %v1213 = vpop.f32.mrf.mxu0
      %v1214 = vadd.f32 0.0, %v1213
      %v1215 = vpop.f32.mrf.mxu0
      %v1216 = vpop.f32.mrf.mxu0
      %v1217 = vadd.f32 0.0, %v1216
      %v1218 = vpop.f32.mrf.mxu0
      %1219 = vmatprep.mubr.bf16.mxu0 0
      %1220 = vmatmul.mubr.bf16.gmra.mxu0 %v1112
      %v1221 = vpop.f32.mrf.mxu0
      %v1222 = vadd.f32 0.0, %v1221
      %v1223 = vpop.f32.mrf.mxu0
      %v1224 = vpop.f32.mrf.mxu0
      %v1225 = vadd.f32 0.0, %v1224
      %v1226 = vpop.f32.mrf.mxu0
      %1227 = vmatprep.mubr.bf16.mxu0 0
      %1228 = vmatmul.mubr.bf16.gmra.mxu0 %v1115
      %v1229 = vpop.f32.mrf.mxu0
      %v1230 = vadd.f32 0.0, %v1229
      %v1231 = vpop.f32.mrf.mxu0
      %v1232 = vpop.f32.mrf.mxu0
      %v1233 = vadd.f32 0.0, %v1232
      %v1234 = vpop.f32.mrf.mxu0
      %1235 = vmatprep.mubr.bf16.mxu0 0
      %1236 = vmatmul.mubr.bf16.gmra.mxu0 %v1118
      %v1237 = vpop.f32.mrf.mxu0
      %v1238 = vadd.f32 0.0, %v1237
      %v1239 = vpop.f32.mrf.mxu0
      %v1240 = vpop.f32.mrf.mxu0
      %v1241 = vadd.f32 0.0, %v1240
      %v1242 = vpop.f32.mrf.mxu0
      %1243 = vmatprep.mubr.bf16.mxu0 0
      %1244 = vmatmul.mubr.bf16.gmra.mxu0 %v1121
      %v1245 = vpop.f32.mrf.mxu0
      %v1246 = vadd.f32 0.0, %v1245
      %v1247 = vpop.f32.mrf.mxu0
      %v1248 = vpop.f32.mrf.mxu0
      %v1249 = vadd.f32 0.0, %v1248
      %v1250 = vpop.f32.mrf.mxu0
      %1251 = vmatprep.mubr.bf16.mxu0 0
      %1252 = vmatmul.mubr.bf16.gmra.mxu0 %v1124
      %v1253 = vpop.f32.mrf.mxu0
      %v1254 = vadd.f32 0.0, %v1253
      %v1255 = vpop.f32.mrf.mxu0
      %v1256 = vpop.f32.mrf.mxu0
      %v1257 = vadd.f32 0.0, %v1256
      %v1258 = vpop.f32.mrf.mxu0
      %1259 = vmatprep.mubr.bf16.mxu0 0
      %1260 = vmatmul.mubr.bf16.gmra.mxu0 %v1127
      %v1261 = vpop.f32.mrf.mxu0
      %v1262 = vadd.f32 0.0, %v1261
      %v1263 = vpop.f32.mrf.mxu0
      %v1264 = vpop.f32.mrf.mxu0
      %v1265 = vadd.f32 0.0, %v1264
      %v1266 = vpop.f32.mrf.mxu0
      %1267 = vmatprep.mubr.bf16.mxu0 0
      %1268 = vmatmul.mubr.bf16.gmra.mxu0 %v1130
      %v1269 = vpop.f32.mrf.mxu0
      %v1270 = vadd.f32 0.0, %v1269
      %v1271 = vpop.f32.mrf.mxu0
      %v1272 = vpop.f32.mrf.mxu0
      %v1273 = vadd.f32 0.0, %v1272
      %v1274 = vpop.f32.mrf.mxu0
      %1275 = vmatprep.mubr.bf16.mxu0 0
      %1276 = vmatmul.mubr.bf16.gmra.mxu0 %v1133
      %v1277 = vpop.f32.mrf.mxu0
      %v1278 = vadd.f32 0.0, %v1277
      %v1279 = vpop.f32.mrf.mxu0
      %v1280 = vpop.f32.mrf.mxu0
      %v1281 = vadd.f32 0.0, %v1280
      %v1282 = vpop.f32.mrf.mxu0
      %1283 = vmatprep.mubr.bf16.mxu0 0
      %1284 = vmatmul.mubr.bf16.gmra.mxu0 %v1136
      %v1285 = vpop.f32.mrf.mxu0
      %v1286 = vadd.f32 0.0, %v1285
      %v1287 = vpop.f32.mrf.mxu0
      %v1288 = vpop.f32.mrf.mxu0
      %v1289 = vadd.f32 0.0, %v1288
      %v1290 = vpop.f32.mrf.mxu0
      %1291 = vmatprep.mubr.bf16.mxu0 0
      %1292 = vmatmul.mubr.bf16.gmra.mxu0 %v1139
      %v1293 = vpop.f32.mrf.mxu0
      %v1294 = vadd.f32 0.0, %v1293
      %v1295 = vpop.f32.mrf.mxu0
      %v1296 = vpop.f32.mrf.mxu0
      %v1297 = vadd.f32 0.0, %v1296
      %v1298 = vpop.f32.mrf.mxu0
      %1299 = vmatprep.mubr.bf16.mxu0 0
      %1300 = vmatmul.mubr.bf16.gmra.mxu0 %v1142
      %v1301 = vpop.f32.mrf.mxu0
      %v1302 = vadd.f32 0.0, %v1301
      %v1303 = vpop.f32.mrf.mxu0
      %v1304 = vpop.f32.mrf.mxu0
      %v1305 = vadd.f32 0.0, %v1304
      %v1306 = vpop.f32.mrf.mxu0
      %1307 = vdwg.mxu0
      %v1308 = vld [vmem:[%s238] sm:$0xff]
      %v1309 = vld [vmem:[%s238 + $0x8] sm:$0xff]
      %v1310 = vld [vmem:[%s238 + $0x10] sm:$0xff]
      %v1311 = vld [vmem:[%s238 + $0x18] sm:$0xff]
      %v1312 = vld [vmem:[%s238 + $0x20] sm:$0xff]
      %v1313 = vld [vmem:[%s238 + $0x28] sm:$0xff]
      %v1314 = vld [vmem:[%s238 + $0x30] sm:$0xff]
      %v1315 = vld [vmem:[%s238 + $0x38] sm:$0xff]
      %v1316 = vld [vmem:[%s238 + $0x40] sm:$0xff]
      %v1317 = vld [vmem:[%s238 + $0x48] sm:$0xff]
      %v1318 = vld [vmem:[%s238 + $0x50] sm:$0xff]
      %v1319 = vld [vmem:[%s238 + $0x58] sm:$0xff]
      %v1320 = vld [vmem:[%s238 + $0x60] sm:$0xff]
      %v1321 = vld [vmem:[%s238 + $0x68] sm:$0xff]
      %v1322 = vld [vmem:[%s238 + $0x70] sm:$0xff]
      %v1323 = vld [vmem:[%s238 + $0x78] sm:$0xff]
      %v1324 = vld [vmem:[%s238 + $0x80] sm:$0xff]
      %v1325 = vld [vmem:[%s238 + $0x88] sm:$0xff]
      %v1326 = vld [vmem:[%s238 + $0x90] sm:$0xff]
      %v1327 = vld [vmem:[%s238 + $0x98] sm:$0xff]
      %v1328 = vld [vmem:[%s238 + $0xa0] sm:$0xff]
      %v1329 = vld [vmem:[%s238 + $0xa8] sm:$0xff]
      %v1330 = vld [vmem:[%s238 + $0xb0] sm:$0xff]
      %v1331 = vld [vmem:[%s238 + $0xb8] sm:$0xff]
      %v1332 = vld [vmem:[%s238 + $0xc0] sm:$0xff]
      %v1333 = vld [vmem:[%s238 + $0xc8] sm:$0xff]
      %v1334 = vld [vmem:[%s238 + $0xd0] sm:$0xff]
      %v1335 = vld [vmem:[%s238 + $0xd8] sm:$0xff]
      %v1336 = vld [vmem:[%s238 + $0xe0] sm:$0xff]
      %v1337 = vld [vmem:[%s238 + $0xe8] sm:$0xff]
      %v1338 = vld [vmem:[%s238 + $0xf0] sm:$0xff]
      %v1339 = vld [vmem:[%s238 + $0xf8] sm:$0xff]
      %v1340 = vadd.f32 %v1308, %v1182
      %v1341 = vadd.f32 %v1309, %v1185
      %v1342 = vadd.f32 %v1310, %v1190
      %v1343 = vadd.f32 %v1311, %v1193
      %v1344 = vadd.f32 %v1312, %v1198
      %v1345 = vadd.f32 %v1313, %v1201
      %v1346 = vadd.f32 %v1314, %v1206
      %v1347 = vadd.f32 %v1315, %v1209
      %v1348 = vadd.f32 %v1316, %v1214
      %v1349 = vadd.f32 %v1317, %v1217
      %v1350 = vadd.f32 %v1318, %v1222
      %v1351 = vadd.f32 %v1319, %v1225
      %v1352 = vadd.f32 %v1320, %v1230
      %v1353 = vadd.f32 %v1321, %v1233
      %v1354 = vadd.f32 %v1322, %v1238
      %v1355 = vadd.f32 %v1323, %v1241
      %v1356 = vadd.f32 %v1324, %v1246
      %v1357 = vadd.f32 %v1325, %v1249
      %v1358 = vadd.f32 %v1326, %v1254
      %v1359 = vadd.f32 %v1327, %v1257
      %v1360 = vadd.f32 %v1328, %v1262
      %v1361 = vadd.f32 %v1329, %v1265
      %v1362 = vadd.f32 %v1330, %v1270
      %v1363 = vadd.f32 %v1331, %v1273
      %v1364 = vadd.f32 %v1332, %v1278
      %v1365 = vadd.f32 %v1333, %v1281
      %v1366 = vadd.f32 %v1334, %v1286
      %v1367 = vadd.f32 %v1335, %v1289
      %v1368 = vadd.f32 %v1336, %v1294
      %v1369 = vadd.f32 %v1337, %v1297
      %v1370 = vadd.f32 %v1338, %v1302
      %v1371 = vadd.f32 %v1339, %v1305
      %1372 = vst.msk [vmem:[%s238] sm:$0xff] %vm365, %v1340
      %1373 = vst.msk [vmem:[%s238 + $0x8] sm:$0xff] %vm365, %v1341
      %1374 = vst.msk [vmem:[%s238 + $0x10] sm:$0xff] %vm365, %v1342
      %1375 = vst.msk [vmem:[%s238 + $0x18] sm:$0xff] %vm365, %v1343
      %1376 = vst.msk [vmem:[%s238 + $0x20] sm:$0xff] %vm365, %v1344
      %1377 = vst.msk [vmem:[%s238 + $0x28] sm:$0xff] %vm365, %v1345
      %1378 = vst.msk [vmem:[%s238 + $0x30] sm:$0xff] %vm365, %v1346
      %1379 = vst.msk [vmem:[%s238 + $0x38] sm:$0xff] %vm365, %v1347
      %1380 = vst.msk [vmem:[%s238 + $0x40] sm:$0xff] %vm365, %v1348
      %1381 = vst.msk [vmem:[%s238 + $0x48] sm:$0xff] %vm365, %v1349
      %1382 = vst.msk [vmem:[%s238 + $0x50] sm:$0xff] %vm365, %v1350
      %1383 = vst.msk [vmem:[%s238 + $0x58] sm:$0xff] %vm365, %v1351
      %1384 = vst.msk [vmem:[%s238 + $0x60] sm:$0xff] %vm365, %v1352
      %1385 = vst.msk [vmem:[%s238 + $0x68] sm:$0xff] %vm365, %v1353
      %1386 = vst.msk [vmem:[%s238 + $0x70] sm:$0xff] %vm365, %v1354
      %1387 = vst.msk [vmem:[%s238 + $0x78] sm:$0xff] %vm365, %v1355
      %1388 = vst.msk [vmem:[%s238 + $0x80] sm:$0xff] %vm365, %v1356
      %1389 = vst.msk [vmem:[%s238 + $0x88] sm:$0xff] %vm365, %v1357
      %1390 = vst.msk [vmem:[%s238 + $0x90] sm:$0xff] %vm365, %v1358
      %1391 = vst.msk [vmem:[%s238 + $0x98] sm:$0xff] %vm365, %v1359
      %1392 = vst.msk [vmem:[%s238 + $0xa0] sm:$0xff] %vm365, %v1360
      %1393 = vst.msk [vmem:[%s238 + $0xa8] sm:$0xff] %vm365, %v1361
      %1394 = vst.msk [vmem:[%s238 + $0xb0] sm:$0xff] %vm365, %v1362
      %1395 = vst.msk [vmem:[%s238 + $0xb8] sm:$0xff] %vm365, %v1363
      %1396 = vst.msk [vmem:[%s238 + $0xc0] sm:$0xff] %vm365, %v1364
      %1397 = vst.msk [vmem:[%s238 + $0xc8] sm:$0xff] %vm365, %v1365
      %1398 = vst.msk [vmem:[%s238 + $0xd0] sm:$0xff] %vm365, %v1366
      %1399 = vst.msk [vmem:[%s238 + $0xd8] sm:$0xff] %vm365, %v1367
      %1400 = vst.msk [vmem:[%s238 + $0xe0] sm:$0xff] %vm365, %v1368
      %1401 = vst.msk [vmem:[%s238 + $0xe8] sm:$0xff] %vm365, %v1369
      %1402 = vst.msk [vmem:[%s238 + $0xf0] sm:$0xff] %vm365, %v1370
      %1403 = vst.msk [vmem:[%s238 + $0xf8] sm:$0xff] %vm365, %v1371
      %v1404 = vld [vmem:[%s244] sm:$0xe]
      %v1405 = vld [vmem:[%s244 + $0x4] sm:$0xf]
      %v1406 = vld [vmem:[%s244 + $0x8] sm:$0x1]
      %v1407 = vld [vmem:[%s244 + $0xc] sm:$0xe]
      %v1408 = vld [vmem:[%s244 + $0x10] sm:$0xf]
      %v1409 = vld [vmem:[%s244 + $0x14] sm:$0x1]
      %v1410 = vld [vmem:[%s244 + $0x18] sm:$0xe]
      %v1411 = vld [vmem:[%s244 + $0x1c] sm:$0xf]
      %v1412 = vld [vmem:[%s244 + $0x20] sm:$0x1]
      %v1413 = vld [vmem:[%s244 + $0x24] sm:$0xe]
      %v1414 = vld [vmem:[%s244 + $0x28] sm:$0xf]
      %v1415 = vld [vmem:[%s244 + $0x2c] sm:$0x1]
      %v1416 = vld [vmem:[%s244 + $0x30] sm:$0xe]
      %v1417 = vld [vmem:[%s244 + $0x34] sm:$0xf]
      %v1418 = vld [vmem:[%s244 + $0x38] sm:$0x1]
      %v1419 = vld [vmem:[%s244 + $0x3c] sm:$0xe]
      %v1420 = vld [vmem:[%s244 + $0x40] sm:$0xf]
      %v1421 = vld [vmem:[%s244 + $0x44] sm:$0x1]
      %v1422 = vld [vmem:[%s244 + $0x48] sm:$0xe]
      %v1423 = vld [vmem:[%s244 + $0x4c] sm:$0xf]
      %v1424 = vld [vmem:[%s244 + $0x50] sm:$0x1]
      %v1425 = vld [vmem:[%s244 + $0x54] sm:$0xe]
      %v1426 = vld [vmem:[%s244 + $0x58] sm:$0xf]
      %v1427 = vld [vmem:[%s244 + $0x5c] sm:$0x1]
      %v1428 = vld [vmem:[%s244 + $0x60] sm:$0xe]
      %v1429 = vld [vmem:[%s244 + $0x64] sm:$0xf]
      %v1430 = vld [vmem:[%s244 + $0x68] sm:$0x1]
      %v1431 = vld [vmem:[%s244 + $0x6c] sm:$0xe]
      %v1432 = vld [vmem:[%s244 + $0x70] sm:$0xf]
      %v1433 = vld [vmem:[%s244 + $0x74] sm:$0x1]
      %v1434 = vld [vmem:[%s244 + $0x78] sm:$0xe]
      %v1435 = vld [vmem:[%s244 + $0x7c] sm:$0xf]
      %v1436 = vld [vmem:[%s244 + $0x80] sm:$0x1]
      %v1437 = vld [vmem:[%s244 + $0x84] sm:$0xe]
      %v1438 = vld [vmem:[%s244 + $0x88] sm:$0xf]
      %v1439 = vld [vmem:[%s244 + $0x8c] sm:$0x1]
      %v1440 = vld [vmem:[%s244 + $0x90] sm:$0xe]
      %v1441 = vld [vmem:[%s244 + $0x94] sm:$0xf]
      %v1442 = vld [vmem:[%s244 + $0x98] sm:$0x1]
      %v1443 = vld [vmem:[%s244 + $0x9c] sm:$0xe]
      %v1444 = vld [vmem:[%s244 + $0xa0] sm:$0xf]
      %v1445 = vld [vmem:[%s244 + $0xa4] sm:$0x1]
      %v1446 = vld [vmem:[%s244 + $0xa8] sm:$0xe]
      %v1447 = vld [vmem:[%s244 + $0xac] sm:$0xf]
      %v1448 = vld [vmem:[%s244 + $0xb0] sm:$0x1]
      %v1449 = vld [vmem:[%s244 + $0xb4] sm:$0xe]
      %v1450 = vld [vmem:[%s244 + $0xb8] sm:$0xf]
      %v1451 = vld [vmem:[%s244 + $0xbc] sm:$0x1]
      %vm1500 = vcmask 1042432
      %vm1501 = vcmask 1046532
      %vm1502 = vmor %vm1500, %vm1501
      %v1503 = vrot.slane %v1404, 5
      %v1504 = vrot.slane %v1503, 4
      %v1505 = vrot.slane %v1405, 5
      %v1506 = vsel %vm1502, %v1504, %v1505
      %v1507 = vrot.slane %v1505, 4
      %v1508 = vrot.slane %v1406, 5
      %v1509 = vsel %vm1502, %v1507, %v1508
      %v1510 = vrot.slane %v1407, 5
      %v1511 = vrot.slane %v1510, 4
      %v1512 = vrot.slane %v1408, 5
      %v1513 = vsel %vm1502, %v1511, %v1512
      %v1514 = vrot.slane %v1512, 4
      %v1515 = vrot.slane %v1409, 5
      %v1516 = vsel %vm1502, %v1514, %v1515
      %v1517 = vrot.slane %v1410, 5
      %v1518 = vrot.slane %v1517, 4
      %v1519 = vrot.slane %v1411, 5
      %v1520 = vsel %vm1502, %v1518, %v1519
      %v1521 = vrot.slane %v1519, 4
      %v1522 = vrot.slane %v1412, 5
      %v1523 = vsel %vm1502, %v1521, %v1522
      %v1524 = vrot.slane %v1413, 5
      %v1525 = vrot.slane %v1524, 4
      %v1526 = vrot.slane %v1414, 5
      %v1527 = vsel %vm1502, %v1525, %v1526
      %v1528 = vrot.slane %v1526, 4
      %v1529 = vrot.slane %v1415, 5
      %v1530 = vsel %vm1502, %v1528, %v1529
      %v1531 = vrot.slane %v1416, 5
      %v1532 = vrot.slane %v1531, 4
      %v1533 = vrot.slane %v1417, 5
      %v1534 = vsel %vm1502, %v1532, %v1533
      %v1535 = vrot.slane %v1533, 4
      %v1536 = vrot.slane %v1418, 5
      %v1537 = vsel %vm1502, %v1535, %v1536
      %v1538 = vrot.slane %v1419, 5
      %v1539 = vrot.slane %v1538, 4
      %v1540 = vrot.slane %v1420, 5
      %v1541 = vsel %vm1502, %v1539, %v1540
      %v1542 = vrot.slane %v1540, 4
      %v1543 = vrot.slane %v1421, 5
      %v1544 = vsel %vm1502, %v1542, %v1543
      %v1545 = vrot.slane %v1422, 5
      %v1546 = vrot.slane %v1545, 4
      %v1547 = vrot.slane %v1423, 5
      %v1548 = vsel %vm1502, %v1546, %v1547
      %v1549 = vrot.slane %v1547, 4
      %v1550 = vrot.slane %v1424, 5
      %v1551 = vsel %vm1502, %v1549, %v1550
      %v1552 = vrot.slane %v1425, 5
      %v1553 = vrot.slane %v1552, 4
      %v1554 = vrot.slane %v1426, 5
      %v1555 = vsel %vm1502, %v1553, %v1554
      %v1556 = vrot.slane %v1554, 4
      %v1557 = vrot.slane %v1427, 5
      %v1558 = vsel %vm1502, %v1556, %v1557
      %v1559 = vrot.slane %v1428, 5
      %v1560 = vrot.slane %v1559, 4
      %v1561 = vrot.slane %v1429, 5
      %v1562 = vsel %vm1502, %v1560, %v1561
      %v1563 = vrot.slane %v1561, 4
      %v1564 = vrot.slane %v1430, 5
      %v1565 = vsel %vm1502, %v1563, %v1564
      %v1566 = vrot.slane %v1431, 5
      %v1567 = vrot.slane %v1566, 4
      %v1568 = vrot.slane %v1432, 5
      %v1569 = vsel %vm1502, %v1567, %v1568
      %v1570 = vrot.slane %v1568, 4
      %v1571 = vrot.slane %v1433, 5
      %v1572 = vsel %vm1502, %v1570, %v1571
      %v1573 = vrot.slane %v1434, 5
      %v1574 = vrot.slane %v1573, 4
      %v1575 = vrot.slane %v1435, 5
      %v1576 = vsel %vm1502, %v1574, %v1575
      %v1577 = vrot.slane %v1575, 4
      %v1578 = vrot.slane %v1436, 5
      %v1579 = vsel %vm1502, %v1577, %v1578
      %v1580 = vrot.slane %v1437, 5
      %v1581 = vrot.slane %v1580, 4
      %v1582 = vrot.slane %v1438, 5
      %v1583 = vsel %vm1502, %v1581, %v1582
      %v1584 = vrot.slane %v1582, 4
      %v1585 = vrot.slane %v1439, 5
      %v1586 = vsel %vm1502, %v1584, %v1585
      %v1587 = vrot.slane %v1440, 5
      %v1588 = vrot.slane %v1587, 4
      %v1589 = vrot.slane %v1441, 5
      %v1590 = vsel %vm1502, %v1588, %v1589
      %v1591 = vrot.slane %v1589, 4
      %v1592 = vrot.slane %v1442, 5
      %v1593 = vsel %vm1502, %v1591, %v1592
      %v1594 = vrot.slane %v1443, 5
      %v1595 = vrot.slane %v1594, 4
      %v1596 = vrot.slane %v1444, 5
      %v1597 = vsel %vm1502, %v1595, %v1596
      %v1598 = vrot.slane %v1596, 4
      %v1599 = vrot.slane %v1445, 5
      %v1600 = vsel %vm1502, %v1598, %v1599
      %v1601 = vrot.slane %v1446, 5
      %v1602 = vrot.slane %v1601, 4
      %v1603 = vrot.slane %v1447, 5
      %v1604 = vsel %vm1502, %v1602, %v1603
      %v1605 = vrot.slane %v1603, 4
      %v1606 = vrot.slane %v1448, 5
      %v1607 = vsel %vm1502, %v1605, %v1606
      %v1608 = vrot.slane %v1449, 5
      %v1609 = vrot.slane %v1608, 4
      %v1610 = vrot.slane %v1450, 5
      %v1611 = vsel %vm1502, %v1609, %v1610
      %v1612 = vrot.slane %v1610, 4
      %v1613 = vrot.slane %v1451, 5
      %v1614 = vsel %vm1502, %v1612, %v1613
      %s1615 = scalar_lea.vmem %s223, 4
      %v1616 = vld [vmem:[%s1615] sm:$0x3]
      %v1617 = vunpack.c.l.b16 %v1506
      %v1618 = vunpack.c.l.b16 %v1509
      %v1619 = vunpack.c.l.b16 %v1513
      %v1620 = vunpack.c.l.b16 %v1516
      %v1621 = vunpack.c.l.b16 %v1520
      %v1622 = vunpack.c.l.b16 %v1523
      %v1623 = vunpack.c.l.b16 %v1527
      %v1624 = vunpack.c.l.b16 %v1530
      %v1625 = vunpack.c.l.b16 %v1534
      %v1626 = vunpack.c.l.b16 %v1537
      %v1627 = vunpack.c.l.b16 %v1541
      %v1628 = vunpack.c.l.b16 %v1544
      %v1629 = vunpack.c.l.b16 %v1548
      %v1630 = vunpack.c.l.b16 %v1551
      %v1631 = vunpack.c.l.b16 %v1555
      %v1632 = vunpack.c.l.b16 %v1558
      %v1633 = vunpack.c.l.b16 %v1562
      %v1634 = vunpack.c.l.b16 %v1565
      %v1635 = vunpack.c.l.b16 %v1569
      %v1636 = vunpack.c.l.b16 %v1572
      %v1637 = vunpack.c.l.b16 %v1576
      %v1638 = vunpack.c.l.b16 %v1579
      %v1639 = vunpack.c.l.b16 %v1583
      %v1640 = vunpack.c.l.b16 %v1586
      %v1641 = vunpack.c.l.b16 %v1590
      %v1642 = vunpack.c.l.b16 %v1593
      %v1643 = vunpack.c.l.b16 %v1597
      %v1644 = vunpack.c.l.b16 %v1600
      %v1645 = vunpack.c.l.b16 %v1604
      %v1646 = vunpack.c.l.b16 %v1607
      %v1647 = vunpack.c.l.b16 %v1611
      %v1648 = vunpack.c.l.b16 %v1614
      %v1649 = vpack.c.b16 %v1618, %v1617
      %v1650 = vpack.c.b16 %v1620, %v1619
      %v1651 = vpack.c.b16 %v1622, %v1621
      %v1652 = vpack.c.b16 %v1624, %v1623
      %v1653 = vpack.c.b16 %v1626, %v1625
      %v1654 = vpack.c.b16 %v1628, %v1627
      %v1655 = vpack.c.b16 %v1630, %v1629
      %v1656 = vpack.c.b16 %v1632, %v1631
      %v1657 = vpack.c.b16 %v1634, %v1633
      %v1658 = vpack.c.b16 %v1636, %v1635
      %v1659 = vpack.c.b16 %v1638, %v1637
      %v1660 = vpack.c.b16 %v1640, %v1639
      %v1661 = vpack.c.b16 %v1642, %v1641
      %v1662 = vpack.c.b16 %v1644, %v1643
      %v1663 = vpack.c.b16 %v1646, %v1645
      %v1664 = vpack.c.b16 %v1648, %v1647
      %v1666 = vsel %vm365, %v1649, 0
      %v1669 = vsel %vm365, %v1650, 0
      %v1672 = vsel %vm365, %v1651, 0
      %v1675 = vsel %vm365, %v1652, 0
      %v1678 = vsel %vm365, %v1653, 0
      %v1681 = vsel %vm365, %v1654, 0
      %v1684 = vsel %vm365, %v1655, 0
      %v1687 = vsel %vm365, %v1656, 0
      %v1690 = vsel %vm365, %v1657, 0
      %v1693 = vsel %vm365, %v1658, 0
      %v1696 = vsel %vm365, %v1659, 0
      %v1699 = vsel %vm365, %v1660, 0
      %v1702 = vsel %vm365, %v1661, 0
      %v1705 = vsel %vm365, %v1662, 0
      %v1708 = vsel %vm365, %v1663, 0
      %v1711 = vsel %vm365, %v1664, 0
      %v1714 = vsel %vm414, %v1616, 0
      %1716 = vmatprep.subr.bf16.mxu0 0
      %1717 = vmatpush1.bf16.msra.mxu0 0
      %1718 = vmatprep.subr.bf16.mxu0 0
      %1719 = vmatpush1.bf16.msra.mxu0 0
      %1720 = vmatprep.subr.bf16.mxu0 0
      %1721 = vmatpush1.bf16.msra.mxu0 0
      %1722 = vmatprep.subr.bf16.mxu0 0
      %1723 = vmatpush1.bf16.msra.mxu0 0
      %1724 = vmatprep.subr.bf16.mxu0 0
      %1725 = vmatpush1.bf16.msra.mxu0 0
      %1726 = vmatprep.subr.bf16.mxu0 0
      %1727 = vmatpush1.bf16.msra.mxu0 0
      %1728 = vmatprep.subr.bf16.mxu0 0
      %1729 = vmatpush1.bf16.msra.mxu0 0
      %1730 = vmatprep.subr.bf16.mxu0 0
      %1731 = vmatpush1.bf16.msra.mxu0 %v1714
      %1732 = vmatprep.subr.bf16.mxu0 0
      %1733 = vmatpush2.bf16.msra.mxu0 0
      %1734 = vmatprep.subr.bf16.mxu0 0
      %1735 = vmatpush2.bf16.msra.mxu0 0
      %1736 = vmatprep.subr.bf16.mxu0 0
      %1737 = vmatpush2.bf16.msra.mxu0 0
      %1738 = vmatprep.subr.bf16.mxu0 0
      %1739 = vmatpush2.bf16.msra.mxu0 0
      %1740 = vmatprep.subr.bf16.mxu0 0
      %1741 = vmatpush2.bf16.msra.mxu0 0
      %1742 = vmatprep.subr.bf16.mxu0 0
      %1743 = vmatpush2.bf16.msra.mxu0 0
      %1744 = vmatprep.subr.bf16.mxu0 0
      %1745 = vmatpush2.bf16.msra.mxu0 0
      %1746 = vmatprep.subr.bf16.mxu0 0
      %1747 = vmatpush2.bf16.msra.mxu0 0
      %1748 = vmatprep.mubr.bf16.mxu0 0
      %1749 = vmatmul.mubr.bf16.gmra.mxu0 %v1666
      %v1750 = vpop.f32.mrf.mxu0
      %v1751 = vadd.f32 0.0, %v1750
      %v1752 = vpop.f32.mrf.mxu0
      %v1753 = vpop.f32.mrf.mxu0
      %v1754 = vadd.f32 0.0, %v1753
      %v1755 = vpop.f32.mrf.mxu0
      %1756 = vmatprep.mubr.bf16.mxu0 0
      %1757 = vmatmul.mubr.bf16.gmra.mxu0 %v1669
      %v1758 = vpop.f32.mrf.mxu0
      %v1759 = vadd.f32 0.0, %v1758
      %v1760 = vpop.f32.mrf.mxu0
      %v1761 = vpop.f32.mrf.mxu0
      %v1762 = vadd.f32 0.0, %v1761
      %v1763 = vpop.f32.mrf.mxu0
      %1764 = vmatprep.mubr.bf16.mxu0 0
      %1765 = vmatmul.mubr.bf16.gmra.mxu0 %v1672
      %v1766 = vpop.f32.mrf.mxu0
      %v1767 = vadd.f32 0.0, %v1766
      %v1768 = vpop.f32.mrf.mxu0
      %v1769 = vpop.f32.mrf.mxu0
      %v1770 = vadd.f32 0.0, %v1769
      %v1771 = vpop.f32.mrf.mxu0
      %1772 = vmatprep.mubr.bf16.mxu0 0
      %1773 = vmatmul.mubr.bf16.gmra.mxu0 %v1675
      %v1774 = vpop.f32.mrf.mxu0
      %v1775 = vadd.f32 0.0, %v1774
      %v1776 = vpop.f32.mrf.mxu0
      %v1777 = vpop.f32.mrf.mxu0
      %v1778 = vadd.f32 0.0, %v1777
      %v1779 = vpop.f32.mrf.mxu0
      %1780 = vmatprep.mubr.bf16.mxu0 0
      %1781 = vmatmul.mubr.bf16.gmra.mxu0 %v1678
      %v1782 = vpop.f32.mrf.mxu0
      %v1783 = vadd.f32 0.0, %v1782
      %v1784 = vpop.f32.mrf.mxu0
      %v1785 = vpop.f32.mrf.mxu0
      %v1786 = vadd.f32 0.0, %v1785
      %v1787 = vpop.f32.mrf.mxu0
      %1788 = vmatprep.mubr.bf16.mxu0 0
      %1789 = vmatmul.mubr.bf16.gmra.mxu0 %v1681
      %v1790 = vpop.f32.mrf.mxu0
      %v1791 = vadd.f32 0.0, %v1790
      %v1792 = vpop.f32.mrf.mxu0
      %v1793 = vpop.f32.mrf.mxu0
      %v1794 = vadd.f32 0.0, %v1793
      %v1795 = vpop.f32.mrf.mxu0
      %1796 = vmatprep.mubr.bf16.mxu0 0
      %1797 = vmatmul.mubr.bf16.gmra.mxu0 %v1684
      %v1798 = vpop.f32.mrf.mxu0
      %v1799 = vadd.f32 0.0, %v1798
      %v1800 = vpop.f32.mrf.mxu0
      %v1801 = vpop.f32.mrf.mxu0
      %v1802 = vadd.f32 0.0, %v1801
      %v1803 = vpop.f32.mrf.mxu0
      %1804 = vmatprep.mubr.bf16.mxu0 0
      %1805 = vmatmul.mubr.bf16.gmra.mxu0 %v1687
      %v1806 = vpop.f32.mrf.mxu0
      %v1807 = vadd.f32 0.0, %v1806
      %v1808 = vpop.f32.mrf.mxu0
      %v1809 = vpop.f32.mrf.mxu0
      %v1810 = vadd.f32 0.0, %v1809
      %v1811 = vpop.f32.mrf.mxu0
      %1812 = vmatprep.mubr.bf16.mxu0 0
      %1813 = vmatmul.mubr.bf16.gmra.mxu0 %v1690
      %v1814 = vpop.f32.mrf.mxu0
      %v1815 = vadd.f32 0.0, %v1814
      %v1816 = vpop.f32.mrf.mxu0
      %v1817 = vpop.f32.mrf.mxu0
      %v1818 = vadd.f32 0.0, %v1817
      %v1819 = vpop.f32.mrf.mxu0
      %1820 = vmatprep.mubr.bf16.mxu0 0
      %1821 = vmatmul.mubr.bf16.gmra.mxu0 %v1693
      %v1822 = vpop.f32.mrf.mxu0
      %v1823 = vadd.f32 0.0, %v1822
      %v1824 = vpop.f32.mrf.mxu0
      %v1825 = vpop.f32.mrf.mxu0
      %v1826 = vadd.f32 0.0, %v1825
      %v1827 = vpop.f32.mrf.mxu0
      %1828 = vmatprep.mubr.bf16.mxu0 0
      %1829 = vmatmul.mubr.bf16.gmra.mxu0 %v1696
      %v1830 = vpop.f32.mrf.mxu0
      %v1831 = vadd.f32 0.0, %v1830
      %v1832 = vpop.f32.mrf.mxu0
      %v1833 = vpop.f32.mrf.mxu0
      %v1834 = vadd.f32 0.0, %v1833
      %v1835 = vpop.f32.mrf.mxu0
      %1836 = vmatprep.mubr.bf16.mxu0 0
      %1837 = vmatmul.mubr.bf16.gmra.mxu0 %v1699
      %v1838 = vpop.f32.mrf.mxu0
      %v1839 = vadd.f32 0.0, %v1838
      %v1840 = vpop.f32.mrf.mxu0
      %v1841 = vpop.f32.mrf.mxu0
      %v1842 = vadd.f32 0.0, %v1841
      %v1843 = vpop.f32.mrf.mxu0
      %1844 = vmatprep.mubr.bf16.mxu0 0
      %1845 = vmatmul.mubr.bf16.gmra.mxu0 %v1702
      %v1846 = vpop.f32.mrf.mxu0
      %v1847 = vadd.f32 0.0, %v1846
      %v1848 = vpop.f32.mrf.mxu0
      %v1849 = vpop.f32.mrf.mxu0
      %v1850 = vadd.f32 0.0, %v1849
      %v1851 = vpop.f32.mrf.mxu0
      %1852 = vmatprep.mubr.bf16.mxu0 0
      %1853 = vmatmul.mubr.bf16.gmra.mxu0 %v1705
      %v1854 = vpop.f32.mrf.mxu0
      %v1855 = vadd.f32 0.0, %v1854
      %v1856 = vpop.f32.mrf.mxu0
      %v1857 = vpop.f32.mrf.mxu0
      %v1858 = vadd.f32 0.0, %v1857
      %v1859 = vpop.f32.mrf.mxu0
      %1860 = vmatprep.mubr.bf16.mxu0 0
      %1861 = vmatmul.mubr.bf16.gmra.mxu0 %v1708
      %v1862 = vpop.f32.mrf.mxu0
      %v1863 = vadd.f32 0.0, %v1862
      %v1864 = vpop.f32.mrf.mxu0
      %v1865 = vpop.f32.mrf.mxu0
      %v1866 = vadd.f32 0.0, %v1865
      %v1867 = vpop.f32.mrf.mxu0
      %1868 = vmatprep.mubr.bf16.mxu0 0
      %1869 = vmatmul.mubr.bf16.gmra.mxu0 %v1711
      %v1870 = vpop.f32.mrf.mxu0
      %v1871 = vadd.f32 0.0, %v1870
      %v1872 = vpop.f32.mrf.mxu0
      %v1873 = vpop.f32.mrf.mxu0
      %v1874 = vadd.f32 0.0, %v1873
      %v1875 = vpop.f32.mrf.mxu0
      %1876 = vdwg.mxu0
      %v1877 = vld [vmem:[%s238] sm:$0xff]
      %v1878 = vld [vmem:[%s238 + $0x8] sm:$0xff]
      %v1879 = vld [vmem:[%s238 + $0x10] sm:$0xff]
      %v1880 = vld [vmem:[%s238 + $0x18] sm:$0xff]
      %v1881 = vld [vmem:[%s238 + $0x20] sm:$0xff]
      %v1882 = vld [vmem:[%s238 + $0x28] sm:$0xff]
      %v1883 = vld [vmem:[%s238 + $0x30] sm:$0xff]
      %v1884 = vld [vmem:[%s238 + $0x38] sm:$0xff]
      %v1885 = vld [vmem:[%s238 + $0x40] sm:$0xff]
      %v1886 = vld [vmem:[%s238 + $0x48] sm:$0xff]
      %v1887 = vld [vmem:[%s238 + $0x50] sm:$0xff]
      %v1888 = vld [vmem:[%s238 + $0x58] sm:$0xff]
      %v1889 = vld [vmem:[%s238 + $0x60] sm:$0xff]
      %v1890 = vld [vmem:[%s238 + $0x68] sm:$0xff]
      %v1891 = vld [vmem:[%s238 + $0x70] sm:$0xff]
      %v1892 = vld [vmem:[%s238 + $0x78] sm:$0xff]
      %v1893 = vld [vmem:[%s238 + $0x80] sm:$0xff]
      %v1894 = vld [vmem:[%s238 + $0x88] sm:$0xff]
      %v1895 = vld [vmem:[%s238 + $0x90] sm:$0xff]
      %v1896 = vld [vmem:[%s238 + $0x98] sm:$0xff]
      %v1897 = vld [vmem:[%s238 + $0xa0] sm:$0xff]
      %v1898 = vld [vmem:[%s238 + $0xa8] sm:$0xff]
      %v1899 = vld [vmem:[%s238 + $0xb0] sm:$0xff]
      %v1900 = vld [vmem:[%s238 + $0xb8] sm:$0xff]
      %v1901 = vld [vmem:[%s238 + $0xc0] sm:$0xff]
      %v1902 = vld [vmem:[%s238 + $0xc8] sm:$0xff]
      %v1903 = vld [vmem:[%s238 + $0xd0] sm:$0xff]
      %v1904 = vld [vmem:[%s238 + $0xd8] sm:$0xff]
      %v1905 = vld [vmem:[%s238 + $0xe0] sm:$0xff]
      %v1906 = vld [vmem:[%s238 + $0xe8] sm:$0xff]
      %v1907 = vld [vmem:[%s238 + $0xf0] sm:$0xff]
      %v1908 = vld [vmem:[%s238 + $0xf8] sm:$0xff]
      %v1909 = vadd.f32 %v1877, %v1751
      %v1910 = vadd.f32 %v1878, %v1754
      %v1911 = vadd.f32 %v1879, %v1759
      %v1912 = vadd.f32 %v1880, %v1762
      %v1913 = vadd.f32 %v1881, %v1767
      %v1914 = vadd.f32 %v1882, %v1770
      %v1915 = vadd.f32 %v1883, %v1775
      %v1916 = vadd.f32 %v1884, %v1778
      %v1917 = vadd.f32 %v1885, %v1783
      %v1918 = vadd.f32 %v1886, %v1786
      %v1919 = vadd.f32 %v1887, %v1791
      %v1920 = vadd.f32 %v1888, %v1794
      %v1921 = vadd.f32 %v1889, %v1799
      %v1922 = vadd.f32 %v1890, %v1802
      %v1923 = vadd.f32 %v1891, %v1807
      %v1924 = vadd.f32 %v1892, %v1810
      %v1925 = vadd.f32 %v1893, %v1815
      %v1926 = vadd.f32 %v1894, %v1818
      %v1927 = vadd.f32 %v1895, %v1823
      %v1928 = vadd.f32 %v1896, %v1826
      %v1929 = vadd.f32 %v1897, %v1831
      %v1930 = vadd.f32 %v1898, %v1834
      %v1931 = vadd.f32 %v1899, %v1839
      %v1932 = vadd.f32 %v1900, %v1842
      %v1933 = vadd.f32 %v1901, %v1847
      %v1934 = vadd.f32 %v1902, %v1850
      %v1935 = vadd.f32 %v1903, %v1855
      %v1936 = vadd.f32 %v1904, %v1858
      %v1937 = vadd.f32 %v1905, %v1863
      %v1938 = vadd.f32 %v1906, %v1866
      %v1939 = vadd.f32 %v1907, %v1871
      %v1940 = vadd.f32 %v1908, %v1874
      %1941 = vst.msk [vmem:[%s238] sm:$0xff] %vm365, %v1909
      %1942 = vst.msk [vmem:[%s238 + $0x8] sm:$0xff] %vm365, %v1910
      %1943 = vst.msk [vmem:[%s238 + $0x10] sm:$0xff] %vm365, %v1911
      %1944 = vst.msk [vmem:[%s238 + $0x18] sm:$0xff] %vm365, %v1912
      %1945 = vst.msk [vmem:[%s238 + $0x20] sm:$0xff] %vm365, %v1913
      %1946 = vst.msk [vmem:[%s238 + $0x28] sm:$0xff] %vm365, %v1914
      %1947 = vst.msk [vmem:[%s238 + $0x30] sm:$0xff] %vm365, %v1915
      %1948 = vst.msk [vmem:[%s238 + $0x38] sm:$0xff] %vm365, %v1916
      %1949 = vst.msk [vmem:[%s238 + $0x40] sm:$0xff] %vm365, %v1917
      %1950 = vst.msk [vmem:[%s238 + $0x48] sm:$0xff] %vm365, %v1918
      %1951 = vst.msk [vmem:[%s238 + $0x50] sm:$0xff] %vm365, %v1919
      %1952 = vst.msk [vmem:[%s238 + $0x58] sm:$0xff] %vm365, %v1920
      %1953 = vst.msk [vmem:[%s238 + $0x60] sm:$0xff] %vm365, %v1921
      %1954 = vst.msk [vmem:[%s238 + $0x68] sm:$0xff] %vm365, %v1922
      %1955 = vst.msk [vmem:[%s238 + $0x70] sm:$0xff] %vm365, %v1923
      %1956 = vst.msk [vmem:[%s238 + $0x78] sm:$0xff] %vm365, %v1924
      %1957 = vst.msk [vmem:[%s238 + $0x80] sm:$0xff] %vm365, %v1925
      %1958 = vst.msk [vmem:[%s238 + $0x88] sm:$0xff] %vm365, %v1926
      %1959 = vst.msk [vmem:[%s238 + $0x90] sm:$0xff] %vm365, %v1927
      %1960 = vst.msk [vmem:[%s238 + $0x98] sm:$0xff] %vm365, %v1928
      %1961 = vst.msk [vmem:[%s238 + $0xa0] sm:$0xff] %vm365, %v1929
      %1962 = vst.msk [vmem:[%s238 + $0xa8] sm:$0xff] %vm365, %v1930
      %1963 = vst.msk [vmem:[%s238 + $0xb0] sm:$0xff] %vm365, %v1931
      %1964 = vst.msk [vmem:[%s238 + $0xb8] sm:$0xff] %vm365, %v1932
      %1965 = vst.msk [vmem:[%s238 + $0xc0] sm:$0xff] %vm365, %v1933
      %1966 = vst.msk [vmem:[%s238 + $0xc8] sm:$0xff] %vm365, %v1934
      %1967 = vst.msk [vmem:[%s238 + $0xd0] sm:$0xff] %vm365, %v1935
      %1968 = vst.msk [vmem:[%s238 + $0xd8] sm:$0xff] %vm365, %v1936
      %1969 = vst.msk [vmem:[%s238 + $0xe0] sm:$0xff] %vm365, %v1937
      %1970 = vst.msk [vmem:[%s238 + $0xe8] sm:$0xff] %vm365, %v1938
      %1971 = vst.msk [vmem:[%s238 + $0xf0] sm:$0xff] %vm365, %v1939
      %1972 = vst.msk [vmem:[%s238 + $0xf8] sm:$0xff] %vm365, %v1940
      %s1973 = sadd.s32 %s241, 1
      %s1974 = smul.u32 %s1973, 3
      %s1975 = smul.addr %s1974, 4
      %s1976 = scalar_lea.vmem %s219, %s1975
      %v1977 = vld [vmem:[%s1976] sm:$0xf]
      %v1978 = vld [vmem:[%s1976 + $0x4] sm:$0xf]
      %v1979 = vld [vmem:[%s1976 + $0xc] sm:$0xf]
      %v1980 = vld [vmem:[%s1976 + $0x10] sm:$0xf]
      %v1981 = vld [vmem:[%s1976 + $0x18] sm:$0xf]
      %v1982 = vld [vmem:[%s1976 + $0x1c] sm:$0xf]
      %v1983 = vld [vmem:[%s1976 + $0x24] sm:$0xf]
      %v1984 = vld [vmem:[%s1976 + $0x28] sm:$0xf]
      %v1985 = vld [vmem:[%s1976 + $0x30] sm:$0xf]
      %v1986 = vld [vmem:[%s1976 + $0x34] sm:$0xf]
      %v1987 = vld [vmem:[%s1976 + $0x3c] sm:$0xf]
      %v1988 = vld [vmem:[%s1976 + $0x40] sm:$0xf]
      %v1989 = vld [vmem:[%s1976 + $0x48] sm:$0xf]
      %v1990 = vld [vmem:[%s1976 + $0x4c] sm:$0xf]
      %v1991 = vld [vmem:[%s1976 + $0x54] sm:$0xf]
      %v1992 = vld [vmem:[%s1976 + $0x58] sm:$0xf]
      %v1993 = vld [vmem:[%s1976 + $0x60] sm:$0xf]
      %v1994 = vld [vmem:[%s1976 + $0x64] sm:$0xf]
      %v1995 = vld [vmem:[%s1976 + $0x6c] sm:$0xf]
      %v1996 = vld [vmem:[%s1976 + $0x70] sm:$0xf]
      %v1997 = vld [vmem:[%s1976 + $0x78] sm:$0xf]
      %v1998 = vld [vmem:[%s1976 + $0x7c] sm:$0xf]
      %v1999 = vld [vmem:[%s1976 + $0x84] sm:$0xf]
      %v2000 = vld [vmem:[%s1976 + $0x88] sm:$0xf]
      %v2001 = vld [vmem:[%s1976 + $0x90] sm:$0xf]
      %v2002 = vld [vmem:[%s1976 + $0x94] sm:$0xf]
      %v2003 = vld [vmem:[%s1976 + $0x9c] sm:$0xf]
      %v2004 = vld [vmem:[%s1976 + $0xa0] sm:$0xf]
      %v2005 = vld [vmem:[%s1976 + $0xa8] sm:$0xf]
      %v2006 = vld [vmem:[%s1976 + $0xac] sm:$0xf]
      %v2007 = vld [vmem:[%s1976 + $0xb4] sm:$0xf]
      %v2008 = vld [vmem:[%s1976 + $0xb8] sm:$0xf]
      %s2009 = scalar_lea.vmem %s223, 6
      %v2010 = vld [vmem:[%s2009] sm:$0x3]
      %v2043 = vunpack.c.l.b16 %v1977
      %v2044 = vunpack.c.l.b16 %v1978
      %v2045 = vunpack.c.l.b16 %v1979
      %v2046 = vunpack.c.l.b16 %v1980
      %v2047 = vunpack.c.l.b16 %v1981
      %v2048 = vunpack.c.l.b16 %v1982
      %v2049 = vunpack.c.l.b16 %v1983
      %v2050 = vunpack.c.l.b16 %v1984
      %v2051 = vunpack.c.l.b16 %v1985
      %v2052 = vunpack.c.l.b16 %v1986
      %v2053 = vunpack.c.l.b16 %v1987
      %v2054 = vunpack.c.l.b16 %v1988
      %v2055 = vunpack.c.l.b16 %v1989
      %v2056 = vunpack.c.l.b16 %v1990
      %v2057 = vunpack.c.l.b16 %v1991
      %v2058 = vunpack.c.l.b16 %v1992
      %v2059 = vunpack.c.l.b16 %v1993
      %v2060 = vunpack.c.l.b16 %v1994
      %v2061 = vunpack.c.l.b16 %v1995
      %v2062 = vunpack.c.l.b16 %v1996
      %v2063 = vunpack.c.l.b16 %v1997
      %v2064 = vunpack.c.l.b16 %v1998
      %v2065 = vunpack.c.l.b16 %v1999
      %v2066 = vunpack.c.l.b16 %v2000
      %v2067 = vunpack.c.l.b16 %v2001
      %v2068 = vunpack.c.l.b16 %v2002
      %v2069 = vunpack.c.l.b16 %v2003
      %v2070 = vunpack.c.l.b16 %v2004
      %v2071 = vunpack.c.l.b16 %v2005
      %v2072 = vunpack.c.l.b16 %v2006
      %v2073 = vunpack.c.l.b16 %v2007
      %v2074 = vunpack.c.l.b16 %v2008
      %v2075 = vpack.c.b16 %v2044, %v2043
      %v2076 = vpack.c.b16 %v2046, %v2045
      %v2077 = vpack.c.b16 %v2048, %v2047
      %v2078 = vpack.c.b16 %v2050, %v2049
      %v2079 = vpack.c.b16 %v2052, %v2051
      %v2080 = vpack.c.b16 %v2054, %v2053
      %v2081 = vpack.c.b16 %v2056, %v2055
      %v2082 = vpack.c.b16 %v2058, %v2057
      %v2083 = vpack.c.b16 %v2060, %v2059
      %v2084 = vpack.c.b16 %v2062, %v2061
      %v2085 = vpack.c.b16 %v2064, %v2063
      %v2086 = vpack.c.b16 %v2066, %v2065
      %v2087 = vpack.c.b16 %v2068, %v2067
      %v2088 = vpack.c.b16 %v2070, %v2069
      %v2089 = vpack.c.b16 %v2072, %v2071
      %v2090 = vpack.c.b16 %v2074, %v2073
      %v2092 = vsel %vm365, %v2075, 0
      %v2095 = vsel %vm365, %v2076, 0
      %v2098 = vsel %vm365, %v2077, 0
      %v2101 = vsel %vm365, %v2078, 0
      %v2104 = vsel %vm365, %v2079, 0
      %v2107 = vsel %vm365, %v2080, 0
      %v2110 = vsel %vm365, %v2081, 0
      %v2113 = vsel %vm365, %v2082, 0
      %v2116 = vsel %vm365, %v2083, 0
      %v2119 = vsel %vm365, %v2084, 0
      %v2122 = vsel %vm365, %v2085, 0
      %v2125 = vsel %vm365, %v2086, 0
      %v2128 = vsel %vm365, %v2087, 0
      %v2131 = vsel %vm365, %v2088, 0
      %v2134 = vsel %vm365, %v2089, 0
      %v2137 = vsel %vm365, %v2090, 0
      %v2140 = vsel %vm414, %v2010, 0
      %2142 = vmatprep.subr.bf16.mxu0 0
      %2143 = vmatpush1.bf16.msra.mxu0 0
      %2144 = vmatprep.subr.bf16.mxu0 0
      %2145 = vmatpush1.bf16.msra.mxu0 0
      %2146 = vmatprep.subr.bf16.mxu0 0
      %2147 = vmatpush1.bf16.msra.mxu0 0
      %2148 = vmatprep.subr.bf16.mxu0 0
      %2149 = vmatpush1.bf16.msra.mxu0 0
      %2150 = vmatprep.subr.bf16.mxu0 0
      %2151 = vmatpush1.bf16.msra.mxu0 0
      %2152 = vmatprep.subr.bf16.mxu0 0
      %2153 = vmatpush1.bf16.msra.mxu0 0
      %2154 = vmatprep.subr.bf16.mxu0 0
      %2155 = vmatpush1.bf16.msra.mxu0 0
      %2156 = vmatprep.subr.bf16.mxu0 0
      %2157 = vmatpush1.bf16.msra.mxu0 %v2140
      %2158 = vmatprep.subr.bf16.mxu0 0
      %2159 = vmatpush2.bf16.msra.mxu0 0
      %2160 = vmatprep.subr.bf16.mxu0 0
      %2161 = vmatpush2.bf16.msra.mxu0 0
      %2162 = vmatprep.subr.bf16.mxu0 0
      %2163 = vmatpush2.bf16.msra.mxu0 0
      %2164 = vmatprep.subr.bf16.mxu0 0
      %2165 = vmatpush2.bf16.msra.mxu0 0
      %2166 = vmatprep.subr.bf16.mxu0 0
      %2167 = vmatpush2.bf16.msra.mxu0 0
      %2168 = vmatprep.subr.bf16.mxu0 0
      %2169 = vmatpush2.bf16.msra.mxu0 0
      %2170 = vmatprep.subr.bf16.mxu0 0
      %2171 = vmatpush2.bf16.msra.mxu0 0
      %2172 = vmatprep.subr.bf16.mxu0 0
      %2173 = vmatpush2.bf16.msra.mxu0 0
      %2174 = vmatprep.mubr.bf16.mxu0 0
      %2175 = vmatmul.mubr.bf16.gmra.mxu0 %v2092
      %v2176 = vpop.f32.mrf.mxu0
      %v2177 = vadd.f32 0.0, %v2176
      %v2178 = vpop.f32.mrf.mxu0
      %v2179 = vpop.f32.mrf.mxu0
      %v2180 = vadd.f32 0.0, %v2179
      %v2181 = vpop.f32.mrf.mxu0
      %2182 = vmatprep.mubr.bf16.mxu0 0
      %2183 = vmatmul.mubr.bf16.gmra.mxu0 %v2095
      %v2184 = vpop.f32.mrf.mxu0
      %v2185 = vadd.f32 0.0, %v2184
      %v2186 = vpop.f32.mrf.mxu0
      %v2187 = vpop.f32.mrf.mxu0
      %v2188 = vadd.f32 0.0, %v2187
      %v2189 = vpop.f32.mrf.mxu0
      %2190 = vmatprep.mubr.bf16.mxu0 0
      %2191 = vmatmul.mubr.bf16.gmra.mxu0 %v2098
      %v2192 = vpop.f32.mrf.mxu0
      %v2193 = vadd.f32 0.0, %v2192
      %v2194 = vpop.f32.mrf.mxu0
      %v2195 = vpop.f32.mrf.mxu0
      %v2196 = vadd.f32 0.0, %v2195
      %v2197 = vpop.f32.mrf.mxu0
      %2198 = vmatprep.mubr.bf16.mxu0 0
      %2199 = vmatmul.mubr.bf16.gmra.mxu0 %v2101
      %v2200 = vpop.f32.mrf.mxu0
      %v2201 = vadd.f32 0.0, %v2200
      %v2202 = vpop.f32.mrf.mxu0
      %v2203 = vpop.f32.mrf.mxu0
      %v2204 = vadd.f32 0.0, %v2203
      %v2205 = vpop.f32.mrf.mxu0
      %2206 = vmatprep.mubr.bf16.mxu0 0
      %2207 = vmatmul.mubr.bf16.gmra.mxu0 %v2104
      %v2208 = vpop.f32.mrf.mxu0
      %v2209 = vadd.f32 0.0, %v2208
      %v2210 = vpop.f32.mrf.mxu0
      %v2211 = vpop.f32.mrf.mxu0
      %v2212 = vadd.f32 0.0, %v2211
      %v2213 = vpop.f32.mrf.mxu0
      %2214 = vmatprep.mubr.bf16.mxu0 0
      %2215 = vmatmul.mubr.bf16.gmra.mxu0 %v2107
      %v2216 = vpop.f32.mrf.mxu0
      %v2217 = vadd.f32 0.0, %v2216
      %v2218 = vpop.f32.mrf.mxu0
      %v2219 = vpop.f32.mrf.mxu0
      %v2220 = vadd.f32 0.0, %v2219
      %v2221 = vpop.f32.mrf.mxu0
      %2222 = vmatprep.mubr.bf16.mxu0 0
      %2223 = vmatmul.mubr.bf16.gmra.mxu0 %v2110
      %v2224 = vpop.f32.mrf.mxu0
      %v2225 = vadd.f32 0.0, %v2224
      %v2226 = vpop.f32.mrf.mxu0
      %v2227 = vpop.f32.mrf.mxu0
      %v2228 = vadd.f32 0.0, %v2227
      %v2229 = vpop.f32.mrf.mxu0
      %2230 = vmatprep.mubr.bf16.mxu0 0
      %2231 = vmatmul.mubr.bf16.gmra.mxu0 %v2113
      %v2232 = vpop.f32.mrf.mxu0
      %v2233 = vadd.f32 0.0, %v2232
      %v2234 = vpop.f32.mrf.mxu0
      %v2235 = vpop.f32.mrf.mxu0
      %v2236 = vadd.f32 0.0, %v2235
      %v2237 = vpop.f32.mrf.mxu0
      %2238 = vmatprep.mubr.bf16.mxu0 0
      %2239 = vmatmul.mubr.bf16.gmra.mxu0 %v2116
      %v2240 = vpop.f32.mrf.mxu0
      %v2241 = vadd.f32 0.0, %v2240
      %v2242 = vpop.f32.mrf.mxu0
      %v2243 = vpop.f32.mrf.mxu0
      %v2244 = vadd.f32 0.0, %v2243
      %v2245 = vpop.f32.mrf.mxu0
      %2246 = vmatprep.mubr.bf16.mxu0 0
      %2247 = vmatmul.mubr.bf16.gmra.mxu0 %v2119
      %v2248 = vpop.f32.mrf.mxu0
      %v2249 = vadd.f32 0.0, %v2248
      %v2250 = vpop.f32.mrf.mxu0
      %v2251 = vpop.f32.mrf.mxu0
      %v2252 = vadd.f32 0.0, %v2251
      %v2253 = vpop.f32.mrf.mxu0
      %2254 = vmatprep.mubr.bf16.mxu0 0
      %2255 = vmatmul.mubr.bf16.gmra.mxu0 %v2122
      %v2256 = vpop.f32.mrf.mxu0
      %v2257 = vadd.f32 0.0, %v2256
      %v2258 = vpop.f32.mrf.mxu0
      %v2259 = vpop.f32.mrf.mxu0
      %v2260 = vadd.f32 0.0, %v2259
      %v2261 = vpop.f32.mrf.mxu0
      %2262 = vmatprep.mubr.bf16.mxu0 0
      %2263 = vmatmul.mubr.bf16.gmra.mxu0 %v2125
      %v2264 = vpop.f32.mrf.mxu0
      %v2265 = vadd.f32 0.0, %v2264
      %v2266 = vpop.f32.mrf.mxu0
      %v2267 = vpop.f32.mrf.mxu0
      %v2268 = vadd.f32 0.0, %v2267
      %v2269 = vpop.f32.mrf.mxu0
      %2270 = vmatprep.mubr.bf16.mxu0 0
      %2271 = vmatmul.mubr.bf16.gmra.mxu0 %v2128
      %v2272 = vpop.f32.mrf.mxu0
      %v2273 = vadd.f32 0.0, %v2272
      %v2274 = vpop.f32.mrf.mxu0
      %v2275 = vpop.f32.mrf.mxu0
      %v2276 = vadd.f32 0.0, %v2275
      %v2277 = vpop.f32.mrf.mxu0
      %2278 = vmatprep.mubr.bf16.mxu0 0
      %2279 = vmatmul.mubr.bf16.gmra.mxu0 %v2131
      %v2280 = vpop.f32.mrf.mxu0
      %v2281 = vadd.f32 0.0, %v2280
      %v2282 = vpop.f32.mrf.mxu0
      %v2283 = vpop.f32.mrf.mxu0
      %v2284 = vadd.f32 0.0, %v2283
      %v2285 = vpop.f32.mrf.mxu0
      %2286 = vmatprep.mubr.bf16.mxu0 0
      %2287 = vmatmul.mubr.bf16.gmra.mxu0 %v2134
      %v2288 = vpop.f32.mrf.mxu0
      %v2289 = vadd.f32 0.0, %v2288
      %v2290 = vpop.f32.mrf.mxu0
      %v2291 = vpop.f32.mrf.mxu0
      %v2292 = vadd.f32 0.0, %v2291
      %v2293 = vpop.f32.mrf.mxu0
      %2294 = vmatprep.mubr.bf16.mxu0 0
      %2295 = vmatmul.mubr.bf16.gmra.mxu0 %v2137
      %v2296 = vpop.f32.mrf.mxu0
      %v2297 = vadd.f32 0.0, %v2296
      %v2298 = vpop.f32.mrf.mxu0
      %v2299 = vpop.f32.mrf.mxu0
      %v2300 = vadd.f32 0.0, %v2299
      %v2301 = vpop.f32.mrf.mxu0
      %2302 = vdwg.mxu0
      %v2303 = vld [vmem:[%s238] sm:$0xff]
      %v2304 = vld [vmem:[%s238 + $0x8] sm:$0xff]
      %v2305 = vld [vmem:[%s238 + $0x10] sm:$0xff]
      %v2306 = vld [vmem:[%s238 + $0x18] sm:$0xff]
      %v2307 = vld [vmem:[%s238 + $0x20] sm:$0xff]
      %v2308 = vld [vmem:[%s238 + $0x28] sm:$0xff]
      %v2309 = vld [vmem:[%s238 + $0x30] sm:$0xff]
      %v2310 = vld [vmem:[%s238 + $0x38] sm:$0xff]
      %v2311 = vld [vmem:[%s238 + $0x40] sm:$0xff]
      %v2312 = vld [vmem:[%s238 + $0x48] sm:$0xff]
      %v2313 = vld [vmem:[%s238 + $0x50] sm:$0xff]
      %v2314 = vld [vmem:[%s238 + $0x58] sm:$0xff]
      %v2315 = vld [vmem:[%s238 + $0x60] sm:$0xff]
      %v2316 = vld [vmem:[%s238 + $0x68] sm:$0xff]
      %v2317 = vld [vmem:[%s238 + $0x70] sm:$0xff]
      %v2318 = vld [vmem:[%s238 + $0x78] sm:$0xff]
      %v2319 = vld [vmem:[%s238 + $0x80] sm:$0xff]
      %v2320 = vld [vmem:[%s238 + $0x88] sm:$0xff]
      %v2321 = vld [vmem:[%s238 + $0x90] sm:$0xff]
      %v2322 = vld [vmem:[%s238 + $0x98] sm:$0xff]
      %v2323 = vld [vmem:[%s238 + $0xa0] sm:$0xff]
      %v2324 = vld [vmem:[%s238 + $0xa8] sm:$0xff]
      %v2325 = vld [vmem:[%s238 + $0xb0] sm:$0xff]
      %v2326 = vld [vmem:[%s238 + $0xb8] sm:$0xff]
      %v2327 = vld [vmem:[%s238 + $0xc0] sm:$0xff]
      %v2328 = vld [vmem:[%s238 + $0xc8] sm:$0xff]
      %v2329 = vld [vmem:[%s238 + $0xd0] sm:$0xff]
      %v2330 = vld [vmem:[%s238 + $0xd8] sm:$0xff]
      %v2331 = vld [vmem:[%s238 + $0xe0] sm:$0xff]
      %v2332 = vld [vmem:[%s238 + $0xe8] sm:$0xff]
      %v2333 = vld [vmem:[%s238 + $0xf0] sm:$0xff]
      %v2334 = vld [vmem:[%s238 + $0xf8] sm:$0xff]
      %v2335 = vadd.f32 %v2303, %v2177
      %v2336 = vadd.f32 %v2304, %v2180
      %v2337 = vadd.f32 %v2305, %v2185
      %v2338 = vadd.f32 %v2306, %v2188
      %v2339 = vadd.f32 %v2307, %v2193
      %v2340 = vadd.f32 %v2308, %v2196
      %v2341 = vadd.f32 %v2309, %v2201
      %v2342 = vadd.f32 %v2310, %v2204
      %v2343 = vadd.f32 %v2311, %v2209
      %v2344 = vadd.f32 %v2312, %v2212
      %v2345 = vadd.f32 %v2313, %v2217
      %v2346 = vadd.f32 %v2314, %v2220
      %v2347 = vadd.f32 %v2315, %v2225
      %v2348 = vadd.f32 %v2316, %v2228
      %v2349 = vadd.f32 %v2317, %v2233
      %v2350 = vadd.f32 %v2318, %v2236
      %v2351 = vadd.f32 %v2319, %v2241
      %v2352 = vadd.f32 %v2320, %v2244
      %v2353 = vadd.f32 %v2321, %v2249
      %v2354 = vadd.f32 %v2322, %v2252
      %v2355 = vadd.f32 %v2323, %v2257
      %v2356 = vadd.f32 %v2324, %v2260
      %v2357 = vadd.f32 %v2325, %v2265
      %v2358 = vadd.f32 %v2326, %v2268
      %v2359 = vadd.f32 %v2327, %v2273
      %v2360 = vadd.f32 %v2328, %v2276
      %v2361 = vadd.f32 %v2329, %v2281
      %v2362 = vadd.f32 %v2330, %v2284
      %v2363 = vadd.f32 %v2331, %v2289
      %v2364 = vadd.f32 %v2332, %v2292
      %v2365 = vadd.f32 %v2333, %v2297
      %v2366 = vadd.f32 %v2334, %v2300
      %2367 = vst.msk [vmem:[%s238] sm:$0xff] %vm365, %v2335
      %2368 = vst.msk [vmem:[%s238 + $0x8] sm:$0xff] %vm365, %v2336
      %2369 = vst.msk [vmem:[%s238 + $0x10] sm:$0xff] %vm365, %v2337
      %2370 = vst.msk [vmem:[%s238 + $0x18] sm:$0xff] %vm365, %v2338
      %2371 = vst.msk [vmem:[%s238 + $0x20] sm:$0xff] %vm365, %v2339
      %2372 = vst.msk [vmem:[%s238 + $0x28] sm:$0xff] %vm365, %v2340
      %2373 = vst.msk [vmem:[%s238 + $0x30] sm:$0xff] %vm365, %v2341
      %2374 = vst.msk [vmem:[%s238 + $0x38] sm:$0xff] %vm365, %v2342
      %2375 = vst.msk [vmem:[%s238 + $0x40] sm:$0xff] %vm365, %v2343
      %2376 = vst.msk [vmem:[%s238 + $0x48] sm:$0xff] %vm365, %v2344
      %2377 = vst.msk [vmem:[%s238 + $0x50] sm:$0xff] %vm365, %v2345
      %2378 = vst.msk [vmem:[%s238 + $0x58] sm:$0xff] %vm365, %v2346
      %2379 = vst.msk [vmem:[%s238 + $0x60] sm:$0xff] %vm365, %v2347
      %2380 = vst.msk [vmem:[%s238 + $0x68] sm:$0xff] %vm365, %v2348
      %2381 = vst.msk [vmem:[%s238 + $0x70] sm:$0xff] %vm365, %v2349
      %2382 = vst.msk [vmem:[%s238 + $0x78] sm:$0xff] %vm365, %v2350
      %2383 = vst.msk [vmem:[%s238 + $0x80] sm:$0xff] %vm365, %v2351
      %2384 = vst.msk [vmem:[%s238 + $0x88] sm:$0xff] %vm365, %v2352
      %2385 = vst.msk [vmem:[%s238 + $0x90] sm:$0xff] %vm365, %v2353
      %2386 = vst.msk [vmem:[%s238 + $0x98] sm:$0xff] %vm365, %v2354
      %2387 = vst.msk [vmem:[%s238 + $0xa0] sm:$0xff] %vm365, %v2355
      %2388 = vst.msk [vmem:[%s238 + $0xa8] sm:$0xff] %vm365, %v2356
      %2389 = vst.msk [vmem:[%s238 + $0xb0] sm:$0xff] %vm365, %v2357
      %2390 = vst.msk [vmem:[%s238 + $0xb8] sm:$0xff] %vm365, %v2358
      %2391 = vst.msk [vmem:[%s238 + $0xc0] sm:$0xff] %vm365, %v2359
      %2392 = vst.msk [vmem:[%s238 + $0xc8] sm:$0xff] %vm365, %v2360
      %2393 = vst.msk [vmem:[%s238 + $0xd0] sm:$0xff] %vm365, %v2361
      %2394 = vst.msk [vmem:[%s238 + $0xd8] sm:$0xff] %vm365, %v2362
      %2395 = vst.msk [vmem:[%s238 + $0xe0] sm:$0xff] %vm365, %v2363
      %2396 = vst.msk [vmem:[%s238 + $0xe8] sm:$0xff] %vm365, %v2364
      %2397 = vst.msk [vmem:[%s238 + $0xf0] sm:$0xff] %vm365, %v2365
      %2398 = vst.msk [vmem:[%s238 + $0xf8] sm:$0xff] %vm365, %v2366
      %v2399 = vld [vmem:[%s1976] sm:$0xf]
      %v2400 = vld [vmem:[%s1976 + $0x4] sm:$0xf]
      %v2401 = vld [vmem:[%s1976 + $0x8] sm:$0x1]
      %v2402 = vld [vmem:[%s1976 + $0xc] sm:$0xf]
      %v2403 = vld [vmem:[%s1976 + $0x10] sm:$0xf]
      %v2404 = vld [vmem:[%s1976 + $0x14] sm:$0x1]
      %v2405 = vld [vmem:[%s1976 + $0x18] sm:$0xf]
      %v2406 = vld [vmem:[%s1976 + $0x1c] sm:$0xf]
      %v2407 = vld [vmem:[%s1976 + $0x20] sm:$0x1]
      %v2408 = vld [vmem:[%s1976 + $0x24] sm:$0xf]
      %v2409 = vld [vmem:[%s1976 + $0x28] sm:$0xf]
      %v2410 = vld [vmem:[%s1976 + $0x2c] sm:$0x1]
      %v2411 = vld [vmem:[%s1976 + $0x30] sm:$0xf]
      %v2412 = vld [vmem:[%s1976 + $0x34] sm:$0xf]
      %v2413 = vld [vmem:[%s1976 + $0x38] sm:$0x1]
      %v2414 = vld [vmem:[%s1976 + $0x3c] sm:$0xf]
      %v2415 = vld [vmem:[%s1976 + $0x40] sm:$0xf]
      %v2416 = vld [vmem:[%s1976 + $0x44] sm:$0x1]
      %v2417 = vld [vmem:[%s1976 + $0x48] sm:$0xf]
      %v2418 = vld [vmem:[%s1976 + $0x4c] sm:$0xf]
      %v2419 = vld [vmem:[%s1976 + $0x50] sm:$0x1]
      %v2420 = vld [vmem:[%s1976 + $0x54] sm:$0xf]
      %v2421 = vld [vmem:[%s1976 + $0x58] sm:$0xf]
      %v2422 = vld [vmem:[%s1976 + $0x5c] sm:$0x1]
      %v2423 = vld [vmem:[%s1976 + $0x60] sm:$0xf]
      %v2424 = vld [vmem:[%s1976 + $0x64] sm:$0xf]
      %v2425 = vld [vmem:[%s1976 + $0x68] sm:$0x1]
      %v2426 = vld [vmem:[%s1976 + $0x6c] sm:$0xf]
      %v2427 = vld [vmem:[%s1976 + $0x70] sm:$0xf]
      %v2428 = vld [vmem:[%s1976 + $0x74] sm:$0x1]
      %v2429 = vld [vmem:[%s1976 + $0x78] sm:$0xf]
      %v2430 = vld [vmem:[%s1976 + $0x7c] sm:$0xf]
      %v2431 = vld [vmem:[%s1976 + $0x80] sm:$0x1]
      %v2432 = vld [vmem:[%s1976 + $0x84] sm:$0xf]
      %v2433 = vld [vmem:[%s1976 + $0x88] sm:$0xf]
      %v2434 = vld [vmem:[%s1976 + $0x8c] sm:$0x1]
      %v2435 = vld [vmem:[%s1976 + $0x90] sm:$0xf]
      %v2436 = vld [vmem:[%s1976 + $0x94] sm:$0xf]
      %v2437 = vld [vmem:[%s1976 + $0x98] sm:$0x1]
      %v2438 = vld [vmem:[%s1976 + $0x9c] sm:$0xf]
      %v2439 = vld [vmem:[%s1976 + $0xa0] sm:$0xf]
      %v2440 = vld [vmem:[%s1976 + $0xa4] sm:$0x1]
      %v2441 = vld [vmem:[%s1976 + $0xa8] sm:$0xf]
      %v2442 = vld [vmem:[%s1976 + $0xac] sm:$0xf]
      %v2443 = vld [vmem:[%s1976 + $0xb0] sm:$0x1]
      %v2444 = vld [vmem:[%s1976 + $0xb4] sm:$0xf]
      %v2445 = vld [vmem:[%s1976 + $0xb8] sm:$0xf]
      %v2446 = vld [vmem:[%s1976 + $0xbc] sm:$0x1]
      %v2448 = vshrl.u32 %v2399, 16
      %v2450 = vrot.slane %v2448, 4
      %v2451 = vshll.u32 %v2399, 16
      %v2453 = vrot.slane %v2451, 5
      %v2454 = vor.u32 %v2450, %v2453
      %v2455 = vrot.slane %v2454, 4
      %v2457 = vshll.u32 %v2400, 16
      %v2459 = vrot.slane %v2457, 5
      %v2460 = vsel %vm661, %v2455, %v2459
      %v2461 = vshrl.u32 %v2400, 16
      %v2463 = vrot.slane %v2461, 4
      %v2464 = vor.u32 %v2463, %v2459
      %v2465 = vrot.slane %v2464, 4
      %v2467 = vshll.u32 %v2401, 16
      %v2469 = vrot.slane %v2467, 5
      %v2470 = vsel %vm661, %v2465, %v2469
      %v2472 = vshrl.u32 %v2402, 16
      %v2474 = vrot.slane %v2472, 4
      %v2475 = vshll.u32 %v2402, 16
      %v2477 = vrot.slane %v2475, 5
      %v2478 = vor.u32 %v2474, %v2477
      %v2479 = vrot.slane %v2478, 4
      %v2481 = vshll.u32 %v2403, 16
      %v2483 = vrot.slane %v2481, 5
      %v2484 = vsel %vm661, %v2479, %v2483
      %v2485 = vshrl.u32 %v2403, 16
      %v2487 = vrot.slane %v2485, 4
      %v2488 = vor.u32 %v2487, %v2483
      %v2489 = vrot.slane %v2488, 4
      %v2491 = vshll.u32 %v2404, 16
      %v2493 = vrot.slane %v2491, 5
      %v2494 = vsel %vm661, %v2489, %v2493
      %v2496 = vshrl.u32 %v2405, 16
      %v2498 = vrot.slane %v2496, 4
      %v2499 = vshll.u32 %v2405, 16
      %v2501 = vrot.slane %v2499, 5
      %v2502 = vor.u32 %v2498, %v2501
      %v2503 = vrot.slane %v2502, 4
      %v2505 = vshll.u32 %v2406, 16
      %v2507 = vrot.slane %v2505, 5
      %v2508 = vsel %vm661, %v2503, %v2507
      %v2509 = vshrl.u32 %v2406, 16
      %v2511 = vrot.slane %v2509, 4
      %v2512 = vor.u32 %v2511, %v2507
      %v2513 = vrot.slane %v2512, 4
      %v2515 = vshll.u32 %v2407, 16
      %v2517 = vrot.slane %v2515, 5
      %v2518 = vsel %vm661, %v2513, %v2517
      %v2520 = vshrl.u32 %v2408, 16
      %v2522 = vrot.slane %v2520, 4
      %v2523 = vshll.u32 %v2408, 16
      %v2525 = vrot.slane %v2523, 5
      %v2526 = vor.u32 %v2522, %v2525
      %v2527 = vrot.slane %v2526, 4
      %v2529 = vshll.u32 %v2409, 16
      %v2531 = vrot.slane %v2529, 5
      %v2532 = vsel %vm661, %v2527, %v2531
      %v2533 = vshrl.u32 %v2409, 16
      %v2535 = vrot.slane %v2533, 4
      %v2536 = vor.u32 %v2535, %v2531
      %v2537 = vrot.slane %v2536, 4
      %v2539 = vshll.u32 %v2410, 16
      %v2541 = vrot.slane %v2539, 5
      %v2542 = vsel %vm661, %v2537, %v2541
      %v2544 = vshrl.u32 %v2411, 16
      %v2546 = vrot.slane %v2544, 4
      %v2547 = vshll.u32 %v2411, 16
      %v2549 = vrot.slane %v2547, 5
      %v2550 = vor.u32 %v2546, %v2549
      %v2551 = vrot.slane %v2550, 4
      %v2553 = vshll.u32 %v2412, 16
      %v2555 = vrot.slane %v2553, 5
      %v2556 = vsel %vm661, %v2551, %v2555
      %v2557 = vshrl.u32 %v2412, 16
      %v2559 = vrot.slane %v2557, 4
      %v2560 = vor.u32 %v2559, %v2555
      %v2561 = vrot.slane %v2560, 4
      %v2563 = vshll.u32 %v2413, 16
      %v2565 = vrot.slane %v2563, 5
      %v2566 = vsel %vm661, %v2561, %v2565
      %v2568 = vshrl.u32 %v2414, 16
      %v2570 = vrot.slane %v2568, 4
      %v2571 = vshll.u32 %v2414, 16
      %v2573 = vrot.slane %v2571, 5
      %v2574 = vor.u32 %v2570, %v2573
      %v2575 = vrot.slane %v2574, 4
      %v2577 = vshll.u32 %v2415, 16
      %v2579 = vrot.slane %v2577, 5
      %v2580 = vsel %vm661, %v2575, %v2579
      %v2581 = vshrl.u32 %v2415, 16
      %v2583 = vrot.slane %v2581, 4
      %v2584 = vor.u32 %v2583, %v2579
      %v2585 = vrot.slane %v2584, 4
      %v2587 = vshll.u32 %v2416, 16
      %v2589 = vrot.slane %v2587, 5
      %v2590 = vsel %vm661, %v2585, %v2589
      %v2592 = vshrl.u32 %v2417, 16
      %v2594 = vrot.slane %v2592, 4
      %v2595 = vshll.u32 %v2417, 16
      %v2597 = vrot.slane %v2595, 5
      %v2598 = vor.u32 %v2594, %v2597
      %v2599 = vrot.slane %v2598, 4
      %v2601 = vshll.u32 %v2418, 16
      %v2603 = vrot.slane %v2601, 5
      %v2604 = vsel %vm661, %v2599, %v2603
      %v2605 = vshrl.u32 %v2418, 16
      %v2607 = vrot.slane %v2605, 4
      %v2608 = vor.u32 %v2607, %v2603
      %v2609 = vrot.slane %v2608, 4
      %v2611 = vshll.u32 %v2419, 16
      %v2613 = vrot.slane %v2611, 5
      %v2614 = vsel %vm661, %v2609, %v2613
      %v2616 = vshrl.u32 %v2420, 16
      %v2618 = vrot.slane %v2616, 4
      %v2619 = vshll.u32 %v2420, 16
      %v2621 = vrot.slane %v2619, 5
      %v2622 = vor.u32 %v2618, %v2621
      %v2623 = vrot.slane %v2622, 4
      %v2625 = vshll.u32 %v2421, 16
      %v2627 = vrot.slane %v2625, 5
      %v2628 = vsel %vm661, %v2623, %v2627
      %v2629 = vshrl.u32 %v2421, 16
      %v2631 = vrot.slane %v2629, 4
      %v2632 = vor.u32 %v2631, %v2627
      %v2633 = vrot.slane %v2632, 4
      %v2635 = vshll.u32 %v2422, 16
      %v2637 = vrot.slane %v2635, 5
      %v2638 = vsel %vm661, %v2633, %v2637
      %v2640 = vshrl.u32 %v2423, 16
      %v2642 = vrot.slane %v2640, 4
      %v2643 = vshll.u32 %v2423, 16
      %v2645 = vrot.slane %v2643, 5
      %v2646 = vor.u32 %v2642, %v2645
      %v2647 = vrot.slane %v2646, 4
      %v2649 = vshll.u32 %v2424, 16
      %v2651 = vrot.slane %v2649, 5
      %v2652 = vsel %vm661, %v2647, %v2651
      %v2653 = vshrl.u32 %v2424, 16
      %v2655 = vrot.slane %v2653, 4
      %v2656 = vor.u32 %v2655, %v2651
      %v2657 = vrot.slane %v2656, 4
      %v2659 = vshll.u32 %v2425, 16
      %v2661 = vrot.slane %v2659, 5
      %v2662 = vsel %vm661, %v2657, %v2661
      %v2664 = vshrl.u32 %v2426, 16
      %v2666 = vrot.slane %v2664, 4
      %v2667 = vshll.u32 %v2426, 16
      %v2669 = vrot.slane %v2667, 5
      %v2670 = vor.u32 %v2666, %v2669
      %v2671 = vrot.slane %v2670, 4
      %v2673 = vshll.u32 %v2427, 16
      %v2675 = vrot.slane %v2673, 5
      %v2676 = vsel %vm661, %v2671, %v2675
      %v2677 = vshrl.u32 %v2427, 16
      %v2679 = vrot.slane %v2677, 4
      %v2680 = vor.u32 %v2679, %v2675
      %v2681 = vrot.slane %v2680, 4
      %v2683 = vshll.u32 %v2428, 16
      %v2685 = vrot.slane %v2683, 5
      %v2686 = vsel %vm661, %v2681, %v2685
      %v2688 = vshrl.u32 %v2429, 16
      %v2690 = vrot.slane %v2688, 4
      %v2691 = vshll.u32 %v2429, 16
      %v2693 = vrot.slane %v2691, 5
      %v2694 = vor.u32 %v2690, %v2693
      %v2695 = vrot.slane %v2694, 4
      %v2697 = vshll.u32 %v2430, 16
      %v2699 = vrot.slane %v2697, 5
      %v2700 = vsel %vm661, %v2695, %v2699
      %v2701 = vshrl.u32 %v2430, 16
      %v2703 = vrot.slane %v2701, 4
      %v2704 = vor.u32 %v2703, %v2699
      %v2705 = vrot.slane %v2704, 4
      %v2707 = vshll.u32 %v2431, 16
      %v2709 = vrot.slane %v2707, 5
      %v2710 = vsel %vm661, %v2705, %v2709
      %v2712 = vshrl.u32 %v2432, 16
      %v2714 = vrot.slane %v2712, 4
      %v2715 = vshll.u32 %v2432, 16
      %v2717 = vrot.slane %v2715, 5
      %v2718 = vor.u32 %v2714, %v2717
      %v2719 = vrot.slane %v2718, 4
      %v2721 = vshll.u32 %v2433, 16
      %v2723 = vrot.slane %v2721, 5
      %v2724 = vsel %vm661, %v2719, %v2723
      %v2725 = vshrl.u32 %v2433, 16
      %v2727 = vrot.slane %v2725, 4
      %v2728 = vor.u32 %v2727, %v2723
      %v2729 = vrot.slane %v2728, 4
      %v2731 = vshll.u32 %v2434, 16
      %v2733 = vrot.slane %v2731, 5
      %v2734 = vsel %vm661, %v2729, %v2733
      %v2736 = vshrl.u32 %v2435, 16
      %v2738 = vrot.slane %v2736, 4
      %v2739 = vshll.u32 %v2435, 16
      %v2741 = vrot.slane %v2739, 5
      %v2742 = vor.u32 %v2738, %v2741
      %v2743 = vrot.slane %v2742, 4
      %v2745 = vshll.u32 %v2436, 16
      %v2747 = vrot.slane %v2745, 5
      %v2748 = vsel %vm661, %v2743, %v2747
      %v2749 = vshrl.u32 %v2436, 16
      %v2751 = vrot.slane %v2749, 4
      %v2752 = vor.u32 %v2751, %v2747
      %v2753 = vrot.slane %v2752, 4
      %v2755 = vshll.u32 %v2437, 16
      %v2757 = vrot.slane %v2755, 5
      %v2758 = vsel %vm661, %v2753, %v2757
      %v2760 = vshrl.u32 %v2438, 16
      %v2762 = vrot.slane %v2760, 4
      %v2763 = vshll.u32 %v2438, 16
      %v2765 = vrot.slane %v2763, 5
      %v2766 = vor.u32 %v2762, %v2765
      %v2767 = vrot.slane %v2766, 4
      %v2769 = vshll.u32 %v2439, 16
      %v2771 = vrot.slane %v2769, 5
      %v2772 = vsel %vm661, %v2767, %v2771
      %v2773 = vshrl.u32 %v2439, 16
      %v2775 = vrot.slane %v2773, 4
      %v2776 = vor.u32 %v2775, %v2771
      %v2777 = vrot.slane %v2776, 4
      %v2779 = vshll.u32 %v2440, 16
      %v2781 = vrot.slane %v2779, 5
      %v2782 = vsel %vm661, %v2777, %v2781
      %v2784 = vshrl.u32 %v2441, 16
      %v2786 = vrot.slane %v2784, 4
      %v2787 = vshll.u32 %v2441, 16
      %v2789 = vrot.slane %v2787, 5
      %v2790 = vor.u32 %v2786, %v2789
      %v2791 = vrot.slane %v2790, 4
      %v2793 = vshll.u32 %v2442, 16
      %v2795 = vrot.slane %v2793, 5
      %v2796 = vsel %vm661, %v2791, %v2795
      %v2797 = vshrl.u32 %v2442, 16
      %v2799 = vrot.slane %v2797, 4
      %v2800 = vor.u32 %v2799, %v2795
      %v2801 = vrot.slane %v2800, 4
      %v2803 = vshll.u32 %v2443, 16
      %v2805 = vrot.slane %v2803, 5
      %v2806 = vsel %vm661, %v2801, %v2805
      %v2808 = vshrl.u32 %v2444, 16
      %v2810 = vrot.slane %v2808, 4
      %v2811 = vshll.u32 %v2444, 16
      %v2813 = vrot.slane %v2811, 5
      %v2814 = vor.u32 %v2810, %v2813
      %v2815 = vrot.slane %v2814, 4
      %v2817 = vshll.u32 %v2445, 16
      %v2819 = vrot.slane %v2817, 5
      %v2820 = vsel %vm661, %v2815, %v2819
      %v2821 = vshrl.u32 %v2445, 16
      %v2823 = vrot.slane %v2821, 4
      %v2824 = vor.u32 %v2823, %v2819
      %v2825 = vrot.slane %v2824, 4
      %v2827 = vshll.u32 %v2446, 16
      %v2829 = vrot.slane %v2827, 5
      %v2830 = vsel %vm661, %v2825, %v2829
      %s2831 = scalar_lea.vmem %s223, 8
      %v2832 = vld [vmem:[%s2831] sm:$0x3]
      %v2833 = vunpack.c.l.b16 %v2460
      %v2834 = vunpack.c.l.b16 %v2470
      %v2835 = vunpack.c.l.b16 %v2484
      %v2836 = vunpack.c.l.b16 %v2494
      %v2837 = vunpack.c.l.b16 %v2508
      %v2838 = vunpack.c.l.b16 %v2518
      %v2839 = vunpack.c.l.b16 %v2532
      %v2840 = vunpack.c.l.b16 %v2542
      %v2841 = vunpack.c.l.b16 %v2556
      %v2842 = vunpack.c.l.b16 %v2566
      %v2843 = vunpack.c.l.b16 %v2580
      %v2844 = vunpack.c.l.b16 %v2590
      %v2845 = vunpack.c.l.b16 %v2604
      %v2846 = vunpack.c.l.b16 %v2614
      %v2847 = vunpack.c.l.b16 %v2628
      %v2848 = vunpack.c.l.b16 %v2638
      %v2849 = vunpack.c.l.b16 %v2652
      %v2850 = vunpack.c.l.b16 %v2662
      %v2851 = vunpack.c.l.b16 %v2676
      %v2852 = vunpack.c.l.b16 %v2686
      %v2853 = vunpack.c.l.b16 %v2700
      %v2854 = vunpack.c.l.b16 %v2710
      %v2855 = vunpack.c.l.b16 %v2724
      %v2856 = vunpack.c.l.b16 %v2734
      %v2857 = vunpack.c.l.b16 %v2748
      %v2858 = vunpack.c.l.b16 %v2758
      %v2859 = vunpack.c.l.b16 %v2772
      %v2860 = vunpack.c.l.b16 %v2782
      %v2861 = vunpack.c.l.b16 %v2796
      %v2862 = vunpack.c.l.b16 %v2806
      %v2863 = vunpack.c.l.b16 %v2820
      %v2864 = vunpack.c.l.b16 %v2830
      %v2865 = vpack.c.b16 %v2834, %v2833
      %v2866 = vpack.c.b16 %v2836, %v2835
      %v2867 = vpack.c.b16 %v2838, %v2837
      %v2868 = vpack.c.b16 %v2840, %v2839
      %v2869 = vpack.c.b16 %v2842, %v2841
      %v2870 = vpack.c.b16 %v2844, %v2843
      %v2871 = vpack.c.b16 %v2846, %v2845
      %v2872 = vpack.c.b16 %v2848, %v2847
      %v2873 = vpack.c.b16 %v2850, %v2849
      %v2874 = vpack.c.b16 %v2852, %v2851
      %v2875 = vpack.c.b16 %v2854, %v2853
      %v2876 = vpack.c.b16 %v2856, %v2855
      %v2877 = vpack.c.b16 %v2858, %v2857
      %v2878 = vpack.c.b16 %v2860, %v2859
      %v2879 = vpack.c.b16 %v2862, %v2861
      %v2880 = vpack.c.b16 %v2864, %v2863
      %v2882 = vsel %vm365, %v2865, 0
      %v2885 = vsel %vm365, %v2866, 0
      %v2888 = vsel %vm365, %v2867, 0
      %v2891 = vsel %vm365, %v2868, 0
      %v2894 = vsel %vm365, %v2869, 0
      %v2897 = vsel %vm365, %v2870, 0
      %v2900 = vsel %vm365, %v2871, 0
      %v2903 = vsel %vm365, %v2872, 0
      %v2906 = vsel %vm365, %v2873, 0
      %v2909 = vsel %vm365, %v2874, 0
      %v2912 = vsel %vm365, %v2875, 0
      %v2915 = vsel %vm365, %v2876, 0
      %v2918 = vsel %vm365, %v2877, 0
      %v2921 = vsel %vm365, %v2878, 0
      %v2924 = vsel %vm365, %v2879, 0
      %v2927 = vsel %vm365, %v2880, 0
      %v2930 = vsel %vm414, %v2832, 0
      %2932 = vmatprep.subr.bf16.mxu0 0
      %2933 = vmatpush1.bf16.msra.mxu0 0
      %2934 = vmatprep.subr.bf16.mxu0 0
      %2935 = vmatpush1.bf16.msra.mxu0 0
      %2936 = vmatprep.subr.bf16.mxu0 0
      %2937 = vmatpush1.bf16.msra.mxu0 0
      %2938 = vmatprep.subr.bf16.mxu0 0
      %2939 = vmatpush1.bf16.msra.mxu0 0
      %2940 = vmatprep.subr.bf16.mxu0 0
      %2941 = vmatpush1.bf16.msra.mxu0 0
      %2942 = vmatprep.subr.bf16.mxu0 0
      %2943 = vmatpush1.bf16.msra.mxu0 0
      %2944 = vmatprep.subr.bf16.mxu0 0
      %2945 = vmatpush1.bf16.msra.mxu0 0
      %2946 = vmatprep.subr.bf16.mxu0 0
      %2947 = vmatpush1.bf16.msra.mxu0 %v2930
      %2948 = vmatprep.subr.bf16.mxu0 0
      %2949 = vmatpush2.bf16.msra.mxu0 0
      %2950 = vmatprep.subr.bf16.mxu0 0
      %2951 = vmatpush2.bf16.msra.mxu0 0
      %2952 = vmatprep.subr.bf16.mxu0 0
      %2953 = vmatpush2.bf16.msra.mxu0 0
      %2954 = vmatprep.subr.bf16.mxu0 0
      %2955 = vmatpush2.bf16.msra.mxu0 0
      %2956 = vmatprep.subr.bf16.mxu0 0
      %2957 = vmatpush2.bf16.msra.mxu0 0
      %2958 = vmatprep.subr.bf16.mxu0 0
      %2959 = vmatpush2.bf16.msra.mxu0 0
      %2960 = vmatprep.subr.bf16.mxu0 0
      %2961 = vmatpush2.bf16.msra.mxu0 0
      %2962 = vmatprep.subr.bf16.mxu0 0
      %2963 = vmatpush2.bf16.msra.mxu0 0
      %2964 = vmatprep.mubr.bf16.mxu0 0
      %2965 = vmatmul.mubr.bf16.gmra.mxu0 %v2882
      %v2966 = vpop.f32.mrf.mxu0
      %v2967 = vadd.f32 0.0, %v2966
      %v2968 = vpop.f32.mrf.mxu0
      %v2969 = vpop.f32.mrf.mxu0
      %v2970 = vadd.f32 0.0, %v2969
      %v2971 = vpop.f32.mrf.mxu0
      %2972 = vmatprep.mubr.bf16.mxu0 0
      %2973 = vmatmul.mubr.bf16.gmra.mxu0 %v2885
      %v2974 = vpop.f32.mrf.mxu0
      %v2975 = vadd.f32 0.0, %v2974
      %v2976 = vpop.f32.mrf.mxu0
      %v2977 = vpop.f32.mrf.mxu0
      %v2978 = vadd.f32 0.0, %v2977
      %v2979 = vpop.f32.mrf.mxu0
      %2980 = vmatprep.mubr.bf16.mxu0 0
      %2981 = vmatmul.mubr.bf16.gmra.mxu0 %v2888
      %v2982 = vpop.f32.mrf.mxu0
      %v2983 = vadd.f32 0.0, %v2982
      %v2984 = vpop.f32.mrf.mxu0
      %v2985 = vpop.f32.mrf.mxu0
      %v2986 = vadd.f32 0.0, %v2985
      %v2987 = vpop.f32.mrf.mxu0
      %2988 = vmatprep.mubr.bf16.mxu0 0
      %2989 = vmatmul.mubr.bf16.gmra.mxu0 %v2891
      %v2990 = vpop.f32.mrf.mxu0
      %v2991 = vadd.f32 0.0, %v2990
      %v2992 = vpop.f32.mrf.mxu0
      %v2993 = vpop.f32.mrf.mxu0
      %v2994 = vadd.f32 0.0, %v2993
      %v2995 = vpop.f32.mrf.mxu0
      %2996 = vmatprep.mubr.bf16.mxu0 0
      %2997 = vmatmul.mubr.bf16.gmra.mxu0 %v2894
      %v2998 = vpop.f32.mrf.mxu0
      %v2999 = vadd.f32 0.0, %v2998
      %v3000 = vpop.f32.mrf.mxu0
      %v3001 = vpop.f32.mrf.mxu0
      %v3002 = vadd.f32 0.0, %v3001
      %v3003 = vpop.f32.mrf.mxu0
      %3004 = vmatprep.mubr.bf16.mxu0 0
      %3005 = vmatmul.mubr.bf16.gmra.mxu0 %v2897
      %v3006 = vpop.f32.mrf.mxu0
      %v3007 = vadd.f32 0.0, %v3006
      %v3008 = vpop.f32.mrf.mxu0
      %v3009 = vpop.f32.mrf.mxu0
      %v3010 = vadd.f32 0.0, %v3009
      %v3011 = vpop.f32.mrf.mxu0
      %3012 = vmatprep.mubr.bf16.mxu0 0
      %3013 = vmatmul.mubr.bf16.gmra.mxu0 %v2900
      %v3014 = vpop.f32.mrf.mxu0
      %v3015 = vadd.f32 0.0, %v3014
      %v3016 = vpop.f32.mrf.mxu0
      %v3017 = vpop.f32.mrf.mxu0
      %v3018 = vadd.f32 0.0, %v3017
      %v3019 = vpop.f32.mrf.mxu0
      %3020 = vmatprep.mubr.bf16.mxu0 0
      %3021 = vmatmul.mubr.bf16.gmra.mxu0 %v2903
      %v3022 = vpop.f32.mrf.mxu0
      %v3023 = vadd.f32 0.0, %v3022
      %v3024 = vpop.f32.mrf.mxu0
      %v3025 = vpop.f32.mrf.mxu0
      %v3026 = vadd.f32 0.0, %v3025
      %v3027 = vpop.f32.mrf.mxu0
      %3028 = vmatprep.mubr.bf16.mxu0 0
      %3029 = vmatmul.mubr.bf16.gmra.mxu0 %v2906
      %v3030 = vpop.f32.mrf.mxu0
      %v3031 = vadd.f32 0.0, %v3030
      %v3032 = vpop.f32.mrf.mxu0
      %v3033 = vpop.f32.mrf.mxu0
      %v3034 = vadd.f32 0.0, %v3033
      %v3035 = vpop.f32.mrf.mxu0
      %3036 = vmatprep.mubr.bf16.mxu0 0
      %3037 = vmatmul.mubr.bf16.gmra.mxu0 %v2909
      %v3038 = vpop.f32.mrf.mxu0
      %v3039 = vadd.f32 0.0, %v3038
      %v3040 = vpop.f32.mrf.mxu0
      %v3041 = vpop.f32.mrf.mxu0
      %v3042 = vadd.f32 0.0, %v3041
      %v3043 = vpop.f32.mrf.mxu0
      %3044 = vmatprep.mubr.bf16.mxu0 0
      %3045 = vmatmul.mubr.bf16.gmra.mxu0 %v2912
      %v3046 = vpop.f32.mrf.mxu0
      %v3047 = vadd.f32 0.0, %v3046
      %v3048 = vpop.f32.mrf.mxu0
      %v3049 = vpop.f32.mrf.mxu0
      %v3050 = vadd.f32 0.0, %v3049
      %v3051 = vpop.f32.mrf.mxu0
      %3052 = vmatprep.mubr.bf16.mxu0 0
      %3053 = vmatmul.mubr.bf16.gmra.mxu0 %v2915
      %v3054 = vpop.f32.mrf.mxu0
      %v3055 = vadd.f32 0.0, %v3054
      %v3056 = vpop.f32.mrf.mxu0
      %v3057 = vpop.f32.mrf.mxu0
      %v3058 = vadd.f32 0.0, %v3057
      %v3059 = vpop.f32.mrf.mxu0
      %3060 = vmatprep.mubr.bf16.mxu0 0
      %3061 = vmatmul.mubr.bf16.gmra.mxu0 %v2918
      %v3062 = vpop.f32.mrf.mxu0
      %v3063 = vadd.f32 0.0, %v3062
      %v3064 = vpop.f32.mrf.mxu0
      %v3065 = vpop.f32.mrf.mxu0
      %v3066 = vadd.f32 0.0, %v3065
      %v3067 = vpop.f32.mrf.mxu0
      %3068 = vmatprep.mubr.bf16.mxu0 0
      %3069 = vmatmul.mubr.bf16.gmra.mxu0 %v2921
      %v3070 = vpop.f32.mrf.mxu0
      %v3071 = vadd.f32 0.0, %v3070
      %v3072 = vpop.f32.mrf.mxu0
      %v3073 = vpop.f32.mrf.mxu0
      %v3074 = vadd.f32 0.0, %v3073
      %v3075 = vpop.f32.mrf.mxu0
      %3076 = vmatprep.mubr.bf16.mxu0 0
      %3077 = vmatmul.mubr.bf16.gmra.mxu0 %v2924
      %v3078 = vpop.f32.mrf.mxu0
      %v3079 = vadd.f32 0.0, %v3078
      %v3080 = vpop.f32.mrf.mxu0
      %v3081 = vpop.f32.mrf.mxu0
      %v3082 = vadd.f32 0.0, %v3081
      %v3083 = vpop.f32.mrf.mxu0
      %3084 = vmatprep.mubr.bf16.mxu0 0
      %3085 = vmatmul.mubr.bf16.gmra.mxu0 %v2927
      %v3086 = vpop.f32.mrf.mxu0
      %v3087 = vadd.f32 0.0, %v3086
      %v3088 = vpop.f32.mrf.mxu0
      %v3089 = vpop.f32.mrf.mxu0
      %v3090 = vadd.f32 0.0, %v3089
      %v3091 = vpop.f32.mrf.mxu0
      %3092 = vdwg.mxu0
      %v3093 = vld [vmem:[%s238] sm:$0xff]
      %v3094 = vld [vmem:[%s238 + $0x8] sm:$0xff]
      %v3095 = vld [vmem:[%s238 + $0x10] sm:$0xff]
      %v3096 = vld [vmem:[%s238 + $0x18] sm:$0xff]
      %v3097 = vld [vmem:[%s238 + $0x20] sm:$0xff]
      %v3098 = vld [vmem:[%s238 + $0x28] sm:$0xff]
      %v3099 = vld [vmem:[%s238 + $0x30] sm:$0xff]
      %v3100 = vld [vmem:[%s238 + $0x38] sm:$0xff]
      %v3101 = vld [vmem:[%s238 + $0x40] sm:$0xff]
      %v3102 = vld [vmem:[%s238 + $0x48] sm:$0xff]
      %v3103 = vld [vmem:[%s238 + $0x50] sm:$0xff]
      %v3104 = vld [vmem:[%s238 + $0x58] sm:$0xff]
      %v3105 = vld [vmem:[%s238 + $0x60] sm:$0xff]
      %v3106 = vld [vmem:[%s238 + $0x68] sm:$0xff]
      %v3107 = vld [vmem:[%s238 + $0x70] sm:$0xff]
      %v3108 = vld [vmem:[%s238 + $0x78] sm:$0xff]
      %v3109 = vld [vmem:[%s238 + $0x80] sm:$0xff]
      %v3110 = vld [vmem:[%s238 + $0x88] sm:$0xff]
      %v3111 = vld [vmem:[%s238 + $0x90] sm:$0xff]
      %v3112 = vld [vmem:[%s238 + $0x98] sm:$0xff]
      %v3113 = vld [vmem:[%s238 + $0xa0] sm:$0xff]
      %v3114 = vld [vmem:[%s238 + $0xa8] sm:$0xff]
      %v3115 = vld [vmem:[%s238 + $0xb0] sm:$0xff]
      %v3116 = vld [vmem:[%s238 + $0xb8] sm:$0xff]
      %v3117 = vld [vmem:[%s238 + $0xc0] sm:$0xff]
      %v3118 = vld [vmem:[%s238 + $0xc8] sm:$0xff]
      %v3119 = vld [vmem:[%s238 + $0xd0] sm:$0xff]
      %v3120 = vld [vmem:[%s238 + $0xd8] sm:$0xff]
      %v3121 = vld [vmem:[%s238 + $0xe0] sm:$0xff]
      %v3122 = vld [vmem:[%s238 + $0xe8] sm:$0xff]
      %v3123 = vld [vmem:[%s238 + $0xf0] sm:$0xff]
      %v3124 = vld [vmem:[%s238 + $0xf8] sm:$0xff]
      %v3125 = vadd.f32 %v3093, %v2967
      %v3126 = vadd.f32 %v3094, %v2970
      %v3127 = vadd.f32 %v3095, %v2975
      %v3128 = vadd.f32 %v3096, %v2978
      %v3129 = vadd.f32 %v3097, %v2983
      %v3130 = vadd.f32 %v3098, %v2986
      %v3131 = vadd.f32 %v3099, %v2991
      %v3132 = vadd.f32 %v3100, %v2994
      %v3133 = vadd.f32 %v3101, %v2999
      %v3134 = vadd.f32 %v3102, %v3002
      %v3135 = vadd.f32 %v3103, %v3007
      %v3136 = vadd.f32 %v3104, %v3010
      %v3137 = vadd.f32 %v3105, %v3015
      %v3138 = vadd.f32 %v3106, %v3018
      %v3139 = vadd.f32 %v3107, %v3023
      %v3140 = vadd.f32 %v3108, %v3026
      %v3141 = vadd.f32 %v3109, %v3031
      %v3142 = vadd.f32 %v3110, %v3034
      %v3143 = vadd.f32 %v3111, %v3039
      %v3144 = vadd.f32 %v3112, %v3042
      %v3145 = vadd.f32 %v3113, %v3047
      %v3146 = vadd.f32 %v3114, %v3050
      %v3147 = vadd.f32 %v3115, %v3055
      %v3148 = vadd.f32 %v3116, %v3058
      %v3149 = vadd.f32 %v3117, %v3063
      %v3150 = vadd.f32 %v3118, %v3066
      %v3151 = vadd.f32 %v3119, %v3071
      %v3152 = vadd.f32 %v3120, %v3074
      %v3153 = vadd.f32 %v3121, %v3079
      %v3154 = vadd.f32 %v3122, %v3082
      %v3155 = vadd.f32 %v3123, %v3087
      %v3156 = vadd.f32 %v3124, %v3090
      %3157 = vst.msk [vmem:[%s238] sm:$0xff] %vm365, %v3125
      %3158 = vst.msk [vmem:[%s238 + $0x8] sm:$0xff] %vm365, %v3126
      %3159 = vst.msk [vmem:[%s238 + $0x10] sm:$0xff] %vm365, %v3127
      %3160 = vst.msk [vmem:[%s238 + $0x18] sm:$0xff] %vm365, %v3128
      %3161 = vst.msk [vmem:[%s238 + $0x20] sm:$0xff] %vm365, %v3129
      %3162 = vst.msk [vmem:[%s238 + $0x28] sm:$0xff] %vm365, %v3130
      %3163 = vst.msk [vmem:[%s238 + $0x30] sm:$0xff] %vm365, %v3131
      %3164 = vst.msk [vmem:[%s238 + $0x38] sm:$0xff] %vm365, %v3132
      %3165 = vst.msk [vmem:[%s238 + $0x40] sm:$0xff] %vm365, %v3133
      %3166 = vst.msk [vmem:[%s238 + $0x48] sm:$0xff] %vm365, %v3134
      %3167 = vst.msk [vmem:[%s238 + $0x50] sm:$0xff] %vm365, %v3135
      %3168 = vst.msk [vmem:[%s238 + $0x58] sm:$0xff] %vm365, %v3136
      %3169 = vst.msk [vmem:[%s238 + $0x60] sm:$0xff] %vm365, %v3137
      %3170 = vst.msk [vmem:[%s238 + $0x68] sm:$0xff] %vm365, %v3138
      %3171 = vst.msk [vmem:[%s238 + $0x70] sm:$0xff] %vm365, %v3139
      %3172 = vst.msk [vmem:[%s238 + $0x78] sm:$0xff] %vm365, %v3140
      %3173 = vst.msk [vmem:[%s238 + $0x80] sm:$0xff] %vm365, %v3141
      %3174 = vst.msk [vmem:[%s238 + $0x88] sm:$0xff] %vm365, %v3142
      %3175 = vst.msk [vmem:[%s238 + $0x90] sm:$0xff] %vm365, %v3143
      %3176 = vst.msk [vmem:[%s238 + $0x98] sm:$0xff] %vm365, %v3144
      %3177 = vst.msk [vmem:[%s238 + $0xa0] sm:$0xff] %vm365, %v3145
      %3178 = vst.msk [vmem:[%s238 + $0xa8] sm:$0xff] %vm365, %v3146
      %3179 = vst.msk [vmem:[%s238 + $0xb0] sm:$0xff] %vm365, %v3147
      %3180 = vst.msk [vmem:[%s238 + $0xb8] sm:$0xff] %vm365, %v3148
      %3181 = vst.msk [vmem:[%s238 + $0xc0] sm:$0xff] %vm365, %v3149
      %3182 = vst.msk [vmem:[%s238 + $0xc8] sm:$0xff] %vm365, %v3150
      %3183 = vst.msk [vmem:[%s238 + $0xd0] sm:$0xff] %vm365, %v3151
      %3184 = vst.msk [vmem:[%s238 + $0xd8] sm:$0xff] %vm365, %v3152
      %3185 = vst.msk [vmem:[%s238 + $0xe0] sm:$0xff] %vm365, %v3153
      %3186 = vst.msk [vmem:[%s238 + $0xe8] sm:$0xff] %vm365, %v3154
      %3187 = vst.msk [vmem:[%s238 + $0xf0] sm:$0xff] %vm365, %v3155
      %3188 = vst.msk [vmem:[%s238 + $0xf8] sm:$0xff] %vm365, %v3156
      %v3189 = vld [vmem:[%s1976] sm:$0xe]
      %v3190 = vld [vmem:[%s1976 + $0x4] sm:$0xf]
      %v3191 = vld [vmem:[%s1976 + $0x8] sm:$0x1]
      %v3192 = vld [vmem:[%s1976 + $0xc] sm:$0xe]
      %v3193 = vld [vmem:[%s1976 + $0x10] sm:$0xf]
      %v3194 = vld [vmem:[%s1976 + $0x14] sm:$0x1]
      %v3195 = vld [vmem:[%s1976 + $0x18] sm:$0xe]
      %v3196 = vld [vmem:[%s1976 + $0x1c] sm:$0xf]
      %v3197 = vld [vmem:[%s1976 + $0x20] sm:$0x1]
      %v3198 = vld [vmem:[%s1976 + $0x24] sm:$0xe]
      %v3199 = vld [vmem:[%s1976 + $0x28] sm:$0xf]
      %v3200 = vld [vmem:[%s1976 + $0x2c] sm:$0x1]
      %v3201 = vld [vmem:[%s1976 + $0x30] sm:$0xe]
      %v3202 = vld [vmem:[%s1976 + $0x34] sm:$0xf]
      %v3203 = vld [vmem:[%s1976 + $0x38] sm:$0x1]
      %v3204 = vld [vmem:[%s1976 + $0x3c] sm:$0xe]
      %v3205 = vld [vmem:[%s1976 + $0x40] sm:$0xf]
      %v3206 = vld [vmem:[%s1976 + $0x44] sm:$0x1]
      %v3207 = vld [vmem:[%s1976 + $0x48] sm:$0xe]
      %v3208 = vld [vmem:[%s1976 + $0x4c] sm:$0xf]
      %v3209 = vld [vmem:[%s1976 + $0x50] sm:$0x1]
      %v3210 = vld [vmem:[%s1976 + $0x54] sm:$0xe]
      %v3211 = vld [vmem:[%s1976 + $0x58] sm:$0xf]
      %v3212 = vld [vmem:[%s1976 + $0x5c] sm:$0x1]
      %v3213 = vld [vmem:[%s1976 + $0x60] sm:$0xe]
      %v3214 = vld [vmem:[%s1976 + $0x64] sm:$0xf]
      %v3215 = vld [vmem:[%s1976 + $0x68] sm:$0x1]
      %v3216 = vld [vmem:[%s1976 + $0x6c] sm:$0xe]
      %v3217 = vld [vmem:[%s1976 + $0x70] sm:$0xf]
      %v3218 = vld [vmem:[%s1976 + $0x74] sm:$0x1]
      %v3219 = vld [vmem:[%s1976 + $0x78] sm:$0xe]
      %v3220 = vld [vmem:[%s1976 + $0x7c] sm:$0xf]
      %v3221 = vld [vmem:[%s1976 + $0x80] sm:$0x1]
      %v3222 = vld [vmem:[%s1976 + $0x84] sm:$0xe]
      %v3223 = vld [vmem:[%s1976 + $0x88] sm:$0xf]
      %v3224 = vld [vmem:[%s1976 + $0x8c] sm:$0x1]
      %v3225 = vld [vmem:[%s1976 + $0x90] sm:$0xe]
      %v3226 = vld [vmem:[%s1976 + $0x94] sm:$0xf]
      %v3227 = vld [vmem:[%s1976 + $0x98] sm:$0x1]
      %v3228 = vld [vmem:[%s1976 + $0x9c] sm:$0xe]
      %v3229 = vld [vmem:[%s1976 + $0xa0] sm:$0xf]
      %v3230 = vld [vmem:[%s1976 + $0xa4] sm:$0x1]
      %v3231 = vld [vmem:[%s1976 + $0xa8] sm:$0xe]
      %v3232 = vld [vmem:[%s1976 + $0xac] sm:$0xf]
      %v3233 = vld [vmem:[%s1976 + $0xb0] sm:$0x1]
      %v3234 = vld [vmem:[%s1976 + $0xb4] sm:$0xe]
      %v3235 = vld [vmem:[%s1976 + $0xb8] sm:$0xf]
      %v3236 = vld [vmem:[%s1976 + $0xbc] sm:$0x1]
      %v3285 = vrot.slane %v3189, 5
      %v3286 = vrot.slane %v3285, 4
      %v3287 = vrot.slane %v3190, 5
      %v3288 = vsel %vm1502, %v3286, %v3287
      %v3289 = vrot.slane %v3287, 4
      %v3290 = vrot.slane %v3191, 5
      %v3291 = vsel %vm1502, %v3289, %v3290
      %v3292 = vrot.slane %v3192, 5
      %v3293 = vrot.slane %v3292, 4
      %v3294 = vrot.slane %v3193, 5
      %v3295 = vsel %vm1502, %v3293, %v3294
      %v3296 = vrot.slane %v3294, 4
      %v3297 = vrot.slane %v3194, 5
      %v3298 = vsel %vm1502, %v3296, %v3297
      %v3299 = vrot.slane %v3195, 5
      %v3300 = vrot.slane %v3299, 4
      %v3301 = vrot.slane %v3196, 5
      %v3302 = vsel %vm1502, %v3300, %v3301
      %v3303 = vrot.slane %v3301, 4
      %v3304 = vrot.slane %v3197, 5
      %v3305 = vsel %vm1502, %v3303, %v3304
      %v3306 = vrot.slane %v3198, 5
      %v3307 = vrot.slane %v3306, 4
      %v3308 = vrot.slane %v3199, 5
      %v3309 = vsel %vm1502, %v3307, %v3308
      %v3310 = vrot.slane %v3308, 4
      %v3311 = vrot.slane %v3200, 5
      %v3312 = vsel %vm1502, %v3310, %v3311
      %v3313 = vrot.slane %v3201, 5
      %v3314 = vrot.slane %v3313, 4
      %v3315 = vrot.slane %v3202, 5
      %v3316 = vsel %vm1502, %v3314, %v3315
      %v3317 = vrot.slane %v3315, 4
      %v3318 = vrot.slane %v3203, 5
      %v3319 = vsel %vm1502, %v3317, %v3318
      %v3320 = vrot.slane %v3204, 5
      %v3321 = vrot.slane %v3320, 4
      %v3322 = vrot.slane %v3205, 5
      %v3323 = vsel %vm1502, %v3321, %v3322
      %v3324 = vrot.slane %v3322, 4
      %v3325 = vrot.slane %v3206, 5
      %v3326 = vsel %vm1502, %v3324, %v3325
      %v3327 = vrot.slane %v3207, 5
      %v3328 = vrot.slane %v3327, 4
      %v3329 = vrot.slane %v3208, 5
      %v3330 = vsel %vm1502, %v3328, %v3329
      %v3331 = vrot.slane %v3329, 4
      %v3332 = vrot.slane %v3209, 5
      %v3333 = vsel %vm1502, %v3331, %v3332
      %v3334 = vrot.slane %v3210, 5
      %v3335 = vrot.slane %v3334, 4
      %v3336 = vrot.slane %v3211, 5
      %v3337 = vsel %vm1502, %v3335, %v3336
      %v3338 = vrot.slane %v3336, 4
      %v3339 = vrot.slane %v3212, 5
      %v3340 = vsel %vm1502, %v3338, %v3339
      %v3341 = vrot.slane %v3213, 5
      %v3342 = vrot.slane %v3341, 4
      %v3343 = vrot.slane %v3214, 5
      %v3344 = vsel %vm1502, %v3342, %v3343
      %v3345 = vrot.slane %v3343, 4
      %v3346 = vrot.slane %v3215, 5
      %v3347 = vsel %vm1502, %v3345, %v3346
      %v3348 = vrot.slane %v3216, 5
      %v3349 = vrot.slane %v3348, 4
      %v3350 = vrot.slane %v3217, 5
      %v3351 = vsel %vm1502, %v3349, %v3350
      %v3352 = vrot.slane %v3350, 4
      %v3353 = vrot.slane %v3218, 5
      %v3354 = vsel %vm1502, %v3352, %v3353
      %v3355 = vrot.slane %v3219, 5
      %v3356 = vrot.slane %v3355, 4
      %v3357 = vrot.slane %v3220, 5
      %v3358 = vsel %vm1502, %v3356, %v3357
      %v3359 = vrot.slane %v3357, 4
      %v3360 = vrot.slane %v3221, 5
      %v3361 = vsel %vm1502, %v3359, %v3360
      %v3362 = vrot.slane %v3222, 5
      %v3363 = vrot.slane %v3362, 4
      %v3364 = vrot.slane %v3223, 5
      %v3365 = vsel %vm1502, %v3363, %v3364
      %v3366 = vrot.slane %v3364, 4
      %v3367 = vrot.slane %v3224, 5
      %v3368 = vsel %vm1502, %v3366, %v3367
      %v3369 = vrot.slane %v3225, 5
      %v3370 = vrot.slane %v3369, 4
      %v3371 = vrot.slane %v3226, 5
      %v3372 = vsel %vm1502, %v3370, %v3371
      %v3373 = vrot.slane %v3371, 4
      %v3374 = vrot.slane %v3227, 5
      %v3375 = vsel %vm1502, %v3373, %v3374
      %v3376 = vrot.slane %v3228, 5
      %v3377 = vrot.slane %v3376, 4
      %v3378 = vrot.slane %v3229, 5
      %v3379 = vsel %vm1502, %v3377, %v3378
      %v3380 = vrot.slane %v3378, 4
      %v3381 = vrot.slane %v3230, 5
      %v3382 = vsel %vm1502, %v3380, %v3381
      %v3383 = vrot.slane %v3231, 5
      %v3384 = vrot.slane %v3383, 4
      %v3385 = vrot.slane %v3232, 5
      %v3386 = vsel %vm1502, %v3384, %v3385
      %v3387 = vrot.slane %v3385, 4
      %v3388 = vrot.slane %v3233, 5
      %v3389 = vsel %vm1502, %v3387, %v3388
      %v3390 = vrot.slane %v3234, 5
      %v3391 = vrot.slane %v3390, 4
      %v3392 = vrot.slane %v3235, 5
      %v3393 = vsel %vm1502, %v3391, %v3392
      %v3394 = vrot.slane %v3392, 4
      %v3395 = vrot.slane %v3236, 5
      %v3396 = vsel %vm1502, %v3394, %v3395
      %s3397 = scalar_lea.vmem %s223, 10
      %v3398 = vld [vmem:[%s3397] sm:$0x3]
      %v3399 = vunpack.c.l.b16 %v3288
      %v3400 = vunpack.c.l.b16 %v3291
      %v3401 = vunpack.c.l.b16 %v3295
      %v3402 = vunpack.c.l.b16 %v3298
      %v3403 = vunpack.c.l.b16 %v3302
      %v3404 = vunpack.c.l.b16 %v3305
      %v3405 = vunpack.c.l.b16 %v3309
      %v3406 = vunpack.c.l.b16 %v3312
      %v3407 = vunpack.c.l.b16 %v3316
      %v3408 = vunpack.c.l.b16 %v3319
      %v3409 = vunpack.c.l.b16 %v3323
      %v3410 = vunpack.c.l.b16 %v3326
      %v3411 = vunpack.c.l.b16 %v3330
      %v3412 = vunpack.c.l.b16 %v3333
      %v3413 = vunpack.c.l.b16 %v3337
      %v3414 = vunpack.c.l.b16 %v3340
      %v3415 = vunpack.c.l.b16 %v3344
      %v3416 = vunpack.c.l.b16 %v3347
      %v3417 = vunpack.c.l.b16 %v3351
      %v3418 = vunpack.c.l.b16 %v3354
      %v3419 = vunpack.c.l.b16 %v3358
      %v3420 = vunpack.c.l.b16 %v3361
      %v3421 = vunpack.c.l.b16 %v3365
      %v3422 = vunpack.c.l.b16 %v3368
      %v3423 = vunpack.c.l.b16 %v3372
      %v3424 = vunpack.c.l.b16 %v3375
      %v3425 = vunpack.c.l.b16 %v3379
      %v3426 = vunpack.c.l.b16 %v3382
      %v3427 = vunpack.c.l.b16 %v3386
      %v3428 = vunpack.c.l.b16 %v3389
      %v3429 = vunpack.c.l.b16 %v3393
      %v3430 = vunpack.c.l.b16 %v3396
      %v3431 = vpack.c.b16 %v3400, %v3399
      %v3432 = vpack.c.b16 %v3402, %v3401
      %v3433 = vpack.c.b16 %v3404, %v3403
      %v3434 = vpack.c.b16 %v3406, %v3405
      %v3435 = vpack.c.b16 %v3408, %v3407
      %v3436 = vpack.c.b16 %v3410, %v3409
      %v3437 = vpack.c.b16 %v3412, %v3411
      %v3438 = vpack.c.b16 %v3414, %v3413
      %v3439 = vpack.c.b16 %v3416, %v3415
      %v3440 = vpack.c.b16 %v3418, %v3417
      %v3441 = vpack.c.b16 %v3420, %v3419
      %v3442 = vpack.c.b16 %v3422, %v3421
      %v3443 = vpack.c.b16 %v3424, %v3423
      %v3444 = vpack.c.b16 %v3426, %v3425
      %v3445 = vpack.c.b16 %v3428, %v3427
      %v3446 = vpack.c.b16 %v3430, %v3429
      %v3448 = vsel %vm365, %v3431, 0
      %v3451 = vsel %vm365, %v3432, 0
      %v3454 = vsel %vm365, %v3433, 0
      %v3457 = vsel %vm365, %v3434, 0
      %v3460 = vsel %vm365, %v3435, 0
      %v3463 = vsel %vm365, %v3436, 0
      %v3466 = vsel %vm365, %v3437, 0
      %v3469 = vsel %vm365, %v3438, 0
      %v3472 = vsel %vm365, %v3439, 0
      %v3475 = vsel %vm365, %v3440, 0
      %v3478 = vsel %vm365, %v3441, 0
      %v3481 = vsel %vm365, %v3442, 0
      %v3484 = vsel %vm365, %v3443, 0
      %v3487 = vsel %vm365, %v3444, 0
      %v3490 = vsel %vm365, %v3445, 0
      %v3493 = vsel %vm365, %v3446, 0
      %v3496 = vsel %vm414, %v3398, 0
      %3498 = vmatprep.subr.bf16.mxu0 0
      %3499 = vmatpush1.bf16.msra.mxu0 0
      %3500 = vmatprep.subr.bf16.mxu0 0
      %3501 = vmatpush1.bf16.msra.mxu0 0
      %3502 = vmatprep.subr.bf16.mxu0 0
      %3503 = vmatpush1.bf16.msra.mxu0 0
      %3504 = vmatprep.subr.bf16.mxu0 0
      %3505 = vmatpush1.bf16.msra.mxu0 0
      %3506 = vmatprep.subr.bf16.mxu0 0
      %3507 = vmatpush1.bf16.msra.mxu0 0
      %3508 = vmatprep.subr.bf16.mxu0 0
      %3509 = vmatpush1.bf16.msra.mxu0 0
      %3510 = vmatprep.subr.bf16.mxu0 0
      %3511 = vmatpush1.bf16.msra.mxu0 0
      %3512 = vmatprep.subr.bf16.mxu0 0
      %3513 = vmatpush1.bf16.msra.mxu0 %v3496
      %3514 = vmatprep.subr.bf16.mxu0 0
      %3515 = vmatpush2.bf16.msra.mxu0 0
      %3516 = vmatprep.subr.bf16.mxu0 0
      %3517 = vmatpush2.bf16.msra.mxu0 0
      %3518 = vmatprep.subr.bf16.mxu0 0
      %3519 = vmatpush2.bf16.msra.mxu0 0
      %3520 = vmatprep.subr.bf16.mxu0 0
      %3521 = vmatpush2.bf16.msra.mxu0 0
      %3522 = vmatprep.subr.bf16.mxu0 0
      %3523 = vmatpush2.bf16.msra.mxu0 0
      %3524 = vmatprep.subr.bf16.mxu0 0
      %3525 = vmatpush2.bf16.msra.mxu0 0
      %3526 = vmatprep.subr.bf16.mxu0 0
      %3527 = vmatpush2.bf16.msra.mxu0 0
      %3528 = vmatprep.subr.bf16.mxu0 0
      %3529 = vmatpush2.bf16.msra.mxu0 0
      %3530 = vmatprep.mubr.bf16.mxu0 0
      %3531 = vmatmul.mubr.bf16.gmra.mxu0 %v3448
      %v3532 = vpop.f32.mrf.mxu0
      %v3533 = vadd.f32 0.0, %v3532
      %v3534 = vpop.f32.mrf.mxu0
      %v3535 = vpop.f32.mrf.mxu0
      %v3536 = vadd.f32 0.0, %v3535
      %v3537 = vpop.f32.mrf.mxu0
      %3538 = vmatprep.mubr.bf16.mxu0 0
      %3539 = vmatmul.mubr.bf16.gmra.mxu0 %v3451
      %v3540 = vpop.f32.mrf.mxu0
      %v3541 = vadd.f32 0.0, %v3540
      %v3542 = vpop.f32.mrf.mxu0
      %v3543 = vpop.f32.mrf.mxu0
      %v3544 = vadd.f32 0.0, %v3543
      %v3545 = vpop.f32.mrf.mxu0
      %3546 = vmatprep.mubr.bf16.mxu0 0
      %3547 = vmatmul.mubr.bf16.gmra.mxu0 %v3454
      %v3548 = vpop.f32.mrf.mxu0
      %v3549 = vadd.f32 0.0, %v3548
      %v3550 = vpop.f32.mrf.mxu0
      %v3551 = vpop.f32.mrf.mxu0
      %v3552 = vadd.f32 0.0, %v3551
      %v3553 = vpop.f32.mrf.mxu0
      %3554 = vmatprep.mubr.bf16.mxu0 0
      %3555 = vmatmul.mubr.bf16.gmra.mxu0 %v3457
      %v3556 = vpop.f32.mrf.mxu0
      %v3557 = vadd.f32 0.0, %v3556
      %v3558 = vpop.f32.mrf.mxu0
      %v3559 = vpop.f32.mrf.mxu0
      %v3560 = vadd.f32 0.0, %v3559
      %v3561 = vpop.f32.mrf.mxu0
      %3562 = vmatprep.mubr.bf16.mxu0 0
      %3563 = vmatmul.mubr.bf16.gmra.mxu0 %v3460
      %v3564 = vpop.f32.mrf.mxu0
      %v3565 = vadd.f32 0.0, %v3564
      %v3566 = vpop.f32.mrf.mxu0
      %v3567 = vpop.f32.mrf.mxu0
      %v3568 = vadd.f32 0.0, %v3567
      %v3569 = vpop.f32.mrf.mxu0
      %3570 = vmatprep.mubr.bf16.mxu0 0
      %3571 = vmatmul.mubr.bf16.gmra.mxu0 %v3463
      %v3572 = vpop.f32.mrf.mxu0
      %v3573 = vadd.f32 0.0, %v3572
      %v3574 = vpop.f32.mrf.mxu0
      %v3575 = vpop.f32.mrf.mxu0
      %v3576 = vadd.f32 0.0, %v3575
      %v3577 = vpop.f32.mrf.mxu0
      %3578 = vmatprep.mubr.bf16.mxu0 0
      %3579 = vmatmul.mubr.bf16.gmra.mxu0 %v3466
      %v3580 = vpop.f32.mrf.mxu0
      %v3581 = vadd.f32 0.0, %v3580
      %v3582 = vpop.f32.mrf.mxu0
      %v3583 = vpop.f32.mrf.mxu0
      %v3584 = vadd.f32 0.0, %v3583
      %v3585 = vpop.f32.mrf.mxu0
      %3586 = vmatprep.mubr.bf16.mxu0 0
      %3587 = vmatmul.mubr.bf16.gmra.mxu0 %v3469
      %v3588 = vpop.f32.mrf.mxu0
      %v3589 = vadd.f32 0.0, %v3588
      %v3590 = vpop.f32.mrf.mxu0
      %v3591 = vpop.f32.mrf.mxu0
      %v3592 = vadd.f32 0.0, %v3591
      %v3593 = vpop.f32.mrf.mxu0
      %3594 = vmatprep.mubr.bf16.mxu0 0
      %3595 = vmatmul.mubr.bf16.gmra.mxu0 %v3472
      %v3596 = vpop.f32.mrf.mxu0
      %v3597 = vadd.f32 0.0, %v3596
      %v3598 = vpop.f32.mrf.mxu0
      %v3599 = vpop.f32.mrf.mxu0
      %v3600 = vadd.f32 0.0, %v3599
      %v3601 = vpop.f32.mrf.mxu0
      %3602 = vmatprep.mubr.bf16.mxu0 0
      %3603 = vmatmul.mubr.bf16.gmra.mxu0 %v3475
      %v3604 = vpop.f32.mrf.mxu0
      %v3605 = vadd.f32 0.0, %v3604
      %v3606 = vpop.f32.mrf.mxu0
      %v3607 = vpop.f32.mrf.mxu0
      %v3608 = vadd.f32 0.0, %v3607
      %v3609 = vpop.f32.mrf.mxu0
      %3610 = vmatprep.mubr.bf16.mxu0 0
      %3611 = vmatmul.mubr.bf16.gmra.mxu0 %v3478
      %v3612 = vpop.f32.mrf.mxu0
      %v3613 = vadd.f32 0.0, %v3612
      %v3614 = vpop.f32.mrf.mxu0
      %v3615 = vpop.f32.mrf.mxu0
      %v3616 = vadd.f32 0.0, %v3615
      %v3617 = vpop.f32.mrf.mxu0
      %3618 = vmatprep.mubr.bf16.mxu0 0
      %3619 = vmatmul.mubr.bf16.gmra.mxu0 %v3481
      %v3620 = vpop.f32.mrf.mxu0
      %v3621 = vadd.f32 0.0, %v3620
      %v3622 = vpop.f32.mrf.mxu0
      %v3623 = vpop.f32.mrf.mxu0
      %v3624 = vadd.f32 0.0, %v3623
      %v3625 = vpop.f32.mrf.mxu0
      %3626 = vmatprep.mubr.bf16.mxu0 0
      %3627 = vmatmul.mubr.bf16.gmra.mxu0 %v3484
      %v3628 = vpop.f32.mrf.mxu0
      %v3629 = vadd.f32 0.0, %v3628
      %v3630 = vpop.f32.mrf.mxu0
      %v3631 = vpop.f32.mrf.mxu0
      %v3632 = vadd.f32 0.0, %v3631
      %v3633 = vpop.f32.mrf.mxu0
      %3634 = vmatprep.mubr.bf16.mxu0 0
      %3635 = vmatmul.mubr.bf16.gmra.mxu0 %v3487
      %v3636 = vpop.f32.mrf.mxu0
      %v3637 = vadd.f32 0.0, %v3636
      %v3638 = vpop.f32.mrf.mxu0
      %v3639 = vpop.f32.mrf.mxu0
      %v3640 = vadd.f32 0.0, %v3639
      %v3641 = vpop.f32.mrf.mxu0
      %3642 = vmatprep.mubr.bf16.mxu0 0
      %3643 = vmatmul.mubr.bf16.gmra.mxu0 %v3490
      %v3644 = vpop.f32.mrf.mxu0
      %v3645 = vadd.f32 0.0, %v3644
      %v3646 = vpop.f32.mrf.mxu0
      %v3647 = vpop.f32.mrf.mxu0
      %v3648 = vadd.f32 0.0, %v3647
      %v3649 = vpop.f32.mrf.mxu0
      %3650 = vmatprep.mubr.bf16.mxu0 0
      %3651 = vmatmul.mubr.bf16.gmra.mxu0 %v3493
      %v3652 = vpop.f32.mrf.mxu0
      %v3653 = vadd.f32 0.0, %v3652
      %v3654 = vpop.f32.mrf.mxu0
      %v3655 = vpop.f32.mrf.mxu0
      %v3656 = vadd.f32 0.0, %v3655
      %v3657 = vpop.f32.mrf.mxu0
      %3658 = vdwg.mxu0
      %v3659 = vld [vmem:[%s238] sm:$0xff]
      %v3660 = vld [vmem:[%s238 + $0x8] sm:$0xff]
      %v3661 = vld [vmem:[%s238 + $0x10] sm:$0xff]
      %v3662 = vld [vmem:[%s238 + $0x18] sm:$0xff]
      %v3663 = vld [vmem:[%s238 + $0x20] sm:$0xff]
      %v3664 = vld [vmem:[%s238 + $0x28] sm:$0xff]
      %v3665 = vld [vmem:[%s238 + $0x30] sm:$0xff]
      %v3666 = vld [vmem:[%s238 + $0x38] sm:$0xff]
      %v3667 = vld [vmem:[%s238 + $0x40] sm:$0xff]
      %v3668 = vld [vmem:[%s238 + $0x48] sm:$0xff]
      %v3669 = vld [vmem:[%s238 + $0x50] sm:$0xff]
      %v3670 = vld [vmem:[%s238 + $0x58] sm:$0xff]
      %v3671 = vld [vmem:[%s238 + $0x60] sm:$0xff]
      %v3672 = vld [vmem:[%s238 + $0x68] sm:$0xff]
      %v3673 = vld [vmem:[%s238 + $0x70] sm:$0xff]
      %v3674 = vld [vmem:[%s238 + $0x78] sm:$0xff]
      %v3675 = vld [vmem:[%s238 + $0x80] sm:$0xff]
      %v3676 = vld [vmem:[%s238 + $0x88] sm:$0xff]
      %v3677 = vld [vmem:[%s238 + $0x90] sm:$0xff]
      %v3678 = vld [vmem:[%s238 + $0x98] sm:$0xff]
      %v3679 = vld [vmem:[%s238 + $0xa0] sm:$0xff]
      %v3680 = vld [vmem:[%s238 + $0xa8] sm:$0xff]
      %v3681 = vld [vmem:[%s238 + $0xb0] sm:$0xff]
      %v3682 = vld [vmem:[%s238 + $0xb8] sm:$0xff]
      %v3683 = vld [vmem:[%s238 + $0xc0] sm:$0xff]
      %v3684 = vld [vmem:[%s238 + $0xc8] sm:$0xff]
      %v3685 = vld [vmem:[%s238 + $0xd0] sm:$0xff]
      %v3686 = vld [vmem:[%s238 + $0xd8] sm:$0xff]
      %v3687 = vld [vmem:[%s238 + $0xe0] sm:$0xff]
      %v3688 = vld [vmem:[%s238 + $0xe8] sm:$0xff]
      %v3689 = vld [vmem:[%s238 + $0xf0] sm:$0xff]
      %v3690 = vld [vmem:[%s238 + $0xf8] sm:$0xff]
      %v3691 = vadd.f32 %v3659, %v3533
      %v3692 = vadd.f32 %v3660, %v3536
      %v3693 = vadd.f32 %v3661, %v3541
      %v3694 = vadd.f32 %v3662, %v3544
      %v3695 = vadd.f32 %v3663, %v3549
      %v3696 = vadd.f32 %v3664, %v3552
      %v3697 = vadd.f32 %v3665, %v3557
      %v3698 = vadd.f32 %v3666, %v3560
      %v3699 = vadd.f32 %v3667, %v3565
      %v3700 = vadd.f32 %v3668, %v3568
      %v3701 = vadd.f32 %v3669, %v3573
      %v3702 = vadd.f32 %v3670, %v3576
      %v3703 = vadd.f32 %v3671, %v3581
      %v3704 = vadd.f32 %v3672, %v3584
      %v3705 = vadd.f32 %v3673, %v3589
      %v3706 = vadd.f32 %v3674, %v3592
      %v3707 = vadd.f32 %v3675, %v3597
      %v3708 = vadd.f32 %v3676, %v3600
      %v3709 = vadd.f32 %v3677, %v3605
      %v3710 = vadd.f32 %v3678, %v3608
      %v3711 = vadd.f32 %v3679, %v3613
      %v3712 = vadd.f32 %v3680, %v3616
      %v3713 = vadd.f32 %v3681, %v3621
      %v3714 = vadd.f32 %v3682, %v3624
      %v3715 = vadd.f32 %v3683, %v3629
      %v3716 = vadd.f32 %v3684, %v3632
      %v3717 = vadd.f32 %v3685, %v3637
      %v3718 = vadd.f32 %v3686, %v3640
      %v3719 = vadd.f32 %v3687, %v3645
      %v3720 = vadd.f32 %v3688, %v3648
      %v3721 = vadd.f32 %v3689, %v3653
      %v3722 = vadd.f32 %v3690, %v3656
      %3723 = vst.msk [vmem:[%s238] sm:$0xff] %vm365, %v3691
      %3724 = vst.msk [vmem:[%s238 + $0x8] sm:$0xff] %vm365, %v3692
      %3725 = vst.msk [vmem:[%s238 + $0x10] sm:$0xff] %vm365, %v3693
      %3726 = vst.msk [vmem:[%s238 + $0x18] sm:$0xff] %vm365, %v3694
      %3727 = vst.msk [vmem:[%s238 + $0x20] sm:$0xff] %vm365, %v3695
      %3728 = vst.msk [vmem:[%s238 + $0x28] sm:$0xff] %vm365, %v3696
      %3729 = vst.msk [vmem:[%s238 + $0x30] sm:$0xff] %vm365, %v3697
      %3730 = vst.msk [vmem:[%s238 + $0x38] sm:$0xff] %vm365, %v3698
      %3731 = vst.msk [vmem:[%s238 + $0x40] sm:$0xff] %vm365, %v3699
      %3732 = vst.msk [vmem:[%s238 + $0x48] sm:$0xff] %vm365, %v3700
      %3733 = vst.msk [vmem:[%s238 + $0x50] sm:$0xff] %vm365, %v3701
      %3734 = vst.msk [vmem:[%s238 + $0x58] sm:$0xff] %vm365, %v3702
      %3735 = vst.msk [vmem:[%s238 + $0x60] sm:$0xff] %vm365, %v3703
      %3736 = vst.msk [vmem:[%s238 + $0x68] sm:$0xff] %vm365, %v3704
      %3737 = vst.msk [vmem:[%s238 + $0x70] sm:$0xff] %vm365, %v3705
      %3738 = vst.msk [vmem:[%s238 + $0x78] sm:$0xff] %vm365, %v3706
      %3739 = vst.msk [vmem:[%s238 + $0x80] sm:$0xff] %vm365, %v3707
      %3740 = vst.msk [vmem:[%s238 + $0x88] sm:$0xff] %vm365, %v3708
      %3741 = vst.msk [vmem:[%s238 + $0x90] sm:$0xff] %vm365, %v3709
      %3742 = vst.msk [vmem:[%s238 + $0x98] sm:$0xff] %vm365, %v3710
      %3743 = vst.msk [vmem:[%s238 + $0xa0] sm:$0xff] %vm365, %v3711
      %3744 = vst.msk [vmem:[%s238 + $0xa8] sm:$0xff] %vm365, %v3712
      %3745 = vst.msk [vmem:[%s238 + $0xb0] sm:$0xff] %vm365, %v3713
      %3746 = vst.msk [vmem:[%s238 + $0xb8] sm:$0xff] %vm365, %v3714
      %3747 = vst.msk [vmem:[%s238 + $0xc0] sm:$0xff] %vm365, %v3715
      %3748 = vst.msk [vmem:[%s238 + $0xc8] sm:$0xff] %vm365, %v3716
      %3749 = vst.msk [vmem:[%s238 + $0xd0] sm:$0xff] %vm365, %v3717
      %3750 = vst.msk [vmem:[%s238 + $0xd8] sm:$0xff] %vm365, %v3718
      %3751 = vst.msk [vmem:[%s238 + $0xe0] sm:$0xff] %vm365, %v3719
      %3752 = vst.msk [vmem:[%s238 + $0xe8] sm:$0xff] %vm365, %v3720
      %3753 = vst.msk [vmem:[%s238 + $0xf0] sm:$0xff] %vm365, %v3721
      %3754 = vst.msk [vmem:[%s238 + $0xf8] sm:$0xff] %vm365, %v3722
      %s3755 = sadd.s32 %s241, 2
      %s3756 = smul.u32 %s3755, 3
      %s3757 = smul.addr %s3756, 4
      %s3758 = scalar_lea.vmem %s219, %s3757
      %v3759 = vld [vmem:[%s3758] sm:$0xf]
      %v3760 = vld [vmem:[%s3758 + $0x4] sm:$0xf]
      %v3761 = vld [vmem:[%s3758 + $0xc] sm:$0xf]
      %v3762 = vld [vmem:[%s3758 + $0x10] sm:$0xf]
      %v3763 = vld [vmem:[%s3758 + $0x18] sm:$0xf]
      %v3764 = vld [vmem:[%s3758 + $0x1c] sm:$0xf]
      %v3765 = vld [vmem:[%s3758 + $0x24] sm:$0xf]
      %v3766 = vld [vmem:[%s3758 + $0x28] sm:$0xf]
      %v3767 = vld [vmem:[%s3758 + $0x30] sm:$0xf]
      %v3768 = vld [vmem:[%s3758 + $0x34] sm:$0xf]
      %v3769 = vld [vmem:[%s3758 + $0x3c] sm:$0xf]
      %v3770 = vld [vmem:[%s3758 + $0x40] sm:$0xf]
      %v3771 = vld [vmem:[%s3758 + $0x48] sm:$0xf]
      %v3772 = vld [vmem:[%s3758 + $0x4c] sm:$0xf]
      %v3773 = vld [vmem:[%s3758 + $0x54] sm:$0xf]
      %v3774 = vld [vmem:[%s3758 + $0x58] sm:$0xf]
      %v3775 = vld [vmem:[%s3758 + $0x60] sm:$0xf]
      %v3776 = vld [vmem:[%s3758 + $0x64] sm:$0xf]
      %v3777 = vld [vmem:[%s3758 + $0x6c] sm:$0xf]
      %v3778 = vld [vmem:[%s3758 + $0x70] sm:$0xf]
      %v3779 = vld [vmem:[%s3758 + $0x78] sm:$0xf]
      %v3780 = vld [vmem:[%s3758 + $0x7c] sm:$0xf]
      %v3781 = vld [vmem:[%s3758 + $0x84] sm:$0xf]
      %v3782 = vld [vmem:[%s3758 + $0x88] sm:$0xf]
      %v3783 = vld [vmem:[%s3758 + $0x90] sm:$0xf]
      %v3784 = vld [vmem:[%s3758 + $0x94] sm:$0xf]
      %v3785 = vld [vmem:[%s3758 + $0x9c] sm:$0xf]
      %v3786 = vld [vmem:[%s3758 + $0xa0] sm:$0xf]
      %v3787 = vld [vmem:[%s3758 + $0xa8] sm:$0xf]
      %v3788 = vld [vmem:[%s3758 + $0xac] sm:$0xf]
      %v3789 = vld [vmem:[%s3758 + $0xb4] sm:$0xf]
      %v3790 = vld [vmem:[%s3758 + $0xb8] sm:$0xf]
      %s3791 = scalar_lea.vmem %s223, 12
      %v3792 = vld [vmem:[%s3791] sm:$0x3]
      %v3825 = vunpack.c.l.b16 %v3759
      %v3826 = vunpack.c.l.b16 %v3760
      %v3827 = vunpack.c.l.b16 %v3761
      %v3828 = vunpack.c.l.b16 %v3762
      %v3829 = vunpack.c.l.b16 %v3763
      %v3830 = vunpack.c.l.b16 %v3764
      %v3831 = vunpack.c.l.b16 %v3765
      %v3832 = vunpack.c.l.b16 %v3766
      %v3833 = vunpack.c.l.b16 %v3767
      %v3834 = vunpack.c.l.b16 %v3768
      %v3835 = vunpack.c.l.b16 %v3769
      %v3836 = vunpack.c.l.b16 %v3770
      %v3837 = vunpack.c.l.b16 %v3771
      %v3838 = vunpack.c.l.b16 %v3772
      %v3839 = vunpack.c.l.b16 %v3773
      %v3840 = vunpack.c.l.b16 %v3774
      %v3841 = vunpack.c.l.b16 %v3775
      %v3842 = vunpack.c.l.b16 %v3776
      %v3843 = vunpack.c.l.b16 %v3777
      %v3844 = vunpack.c.l.b16 %v3778
      %v3845 = vunpack.c.l.b16 %v3779
      %v3846 = vunpack.c.l.b16 %v3780
      %v3847 = vunpack.c.l.b16 %v3781
      %v3848 = vunpack.c.l.b16 %v3782
      %v3849 = vunpack.c.l.b16 %v3783
      %v3850 = vunpack.c.l.b16 %v3784
      %v3851 = vunpack.c.l.b16 %v3785
      %v3852 = vunpack.c.l.b16 %v3786
      %v3853 = vunpack.c.l.b16 %v3787
      %v3854 = vunpack.c.l.b16 %v3788
      %v3855 = vunpack.c.l.b16 %v3789
      %v3856 = vunpack.c.l.b16 %v3790
      %v3857 = vpack.c.b16 %v3826, %v3825
      %v3858 = vpack.c.b16 %v3828, %v3827
      %v3859 = vpack.c.b16 %v3830, %v3829
      %v3860 = vpack.c.b16 %v3832, %v3831
      %v3861 = vpack.c.b16 %v3834, %v3833
      %v3862 = vpack.c.b16 %v3836, %v3835
      %v3863 = vpack.c.b16 %v3838, %v3837
      %v3864 = vpack.c.b16 %v3840, %v3839
      %v3865 = vpack.c.b16 %v3842, %v3841
      %v3866 = vpack.c.b16 %v3844, %v3843
      %v3867 = vpack.c.b16 %v3846, %v3845
      %v3868 = vpack.c.b16 %v3848, %v3847
      %v3869 = vpack.c.b16 %v3850, %v3849
      %v3870 = vpack.c.b16 %v3852, %v3851
      %v3871 = vpack.c.b16 %v3854, %v3853
      %v3872 = vpack.c.b16 %v3856, %v3855
      %v3874 = vsel %vm365, %v3857, 0
      %v3877 = vsel %vm365, %v3858, 0
      %v3880 = vsel %vm365, %v3859, 0
      %v3883 = vsel %vm365, %v3860, 0
      %v3886 = vsel %vm365, %v3861, 0
      %v3889 = vsel %vm365, %v3862, 0
      %v3892 = vsel %vm365, %v3863, 0
      %v3895 = vsel %vm365, %v3864, 0
      %v3898 = vsel %vm365, %v3865, 0
      %v3901 = vsel %vm365, %v3866, 0
      %v3904 = vsel %vm365, %v3867, 0
      %v3907 = vsel %vm365, %v3868, 0
      %v3910 = vsel %vm365, %v3869, 0
      %v3913 = vsel %vm365, %v3870, 0
      %v3916 = vsel %vm365, %v3871, 0
      %v3919 = vsel %vm365, %v3872, 0
      %v3922 = vsel %vm414, %v3792, 0
      %3924 = vmatprep.subr.bf16.mxu0 0
      %3925 = vmatpush1.bf16.msra.mxu0 0
      %3926 = vmatprep.subr.bf16.mxu0 0
      %3927 = vmatpush1.bf16.msra.mxu0 0
      %3928 = vmatprep.subr.bf16.mxu0 0
      %3929 = vmatpush1.bf16.msra.mxu0 0
      %3930 = vmatprep.subr.bf16.mxu0 0
      %3931 = vmatpush1.bf16.msra.mxu0 0
      %3932 = vmatprep.subr.bf16.mxu0 0
      %3933 = vmatpush1.bf16.msra.mxu0 0
      %3934 = vmatprep.subr.bf16.mxu0 0
      %3935 = vmatpush1.bf16.msra.mxu0 0
      %3936 = vmatprep.subr.bf16.mxu0 0
      %3937 = vmatpush1.bf16.msra.mxu0 0
      %3938 = vmatprep.subr.bf16.mxu0 0
      %3939 = vmatpush1.bf16.msra.mxu0 %v3922
      %3940 = vmatprep.subr.bf16.mxu0 0
      %3941 = vmatpush2.bf16.msra.mxu0 0
      %3942 = vmatprep.subr.bf16.mxu0 0
      %3943 = vmatpush2.bf16.msra.mxu0 0
      %3944 = vmatprep.subr.bf16.mxu0 0
      %3945 = vmatpush2.bf16.msra.mxu0 0
      %3946 = vmatprep.subr.bf16.mxu0 0
      %3947 = vmatpush2.bf16.msra.mxu0 0
      %3948 = vmatprep.subr.bf16.mxu0 0
      %3949 = vmatpush2.bf16.msra.mxu0 0
      %3950 = vmatprep.subr.bf16.mxu0 0
      %3951 = vmatpush2.bf16.msra.mxu0 0
      %3952 = vmatprep.subr.bf16.mxu0 0
      %3953 = vmatpush2.bf16.msra.mxu0 0
      %3954 = vmatprep.subr.bf16.mxu0 0
      %3955 = vmatpush2.bf16.msra.mxu0 0
      %3956 = vmatprep.mubr.bf16.mxu0 0
      %3957 = vmatmul.mubr.bf16.gmra.mxu0 %v3874
      %v3958 = vpop.f32.mrf.mxu0
      %v3959 = vadd.f32 0.0, %v3958
      %v3960 = vpop.f32.mrf.mxu0
      %v3961 = vpop.f32.mrf.mxu0
      %v3962 = vadd.f32 0.0, %v3961
      %v3963 = vpop.f32.mrf.mxu0
      %3964 = vmatprep.mubr.bf16.mxu0 0
      %3965 = vmatmul.mubr.bf16.gmra.mxu0 %v3877
      %v3966 = vpop.f32.mrf.mxu0
      %v3967 = vadd.f32 0.0, %v3966
      %v3968 = vpop.f32.mrf.mxu0
      %v3969 = vpop.f32.mrf.mxu0
      %v3970 = vadd.f32 0.0, %v3969
      %v3971 = vpop.f32.mrf.mxu0
      %3972 = vmatprep.mubr.bf16.mxu0 0
      %3973 = vmatmul.mubr.bf16.gmra.mxu0 %v3880
      %v3974 = vpop.f32.mrf.mxu0
      %v3975 = vadd.f32 0.0, %v3974
      %v3976 = vpop.f32.mrf.mxu0
      %v3977 = vpop.f32.mrf.mxu0
      %v3978 = vadd.f32 0.0, %v3977
      %v3979 = vpop.f32.mrf.mxu0
      %3980 = vmatprep.mubr.bf16.mxu0 0
      %3981 = vmatmul.mubr.bf16.gmra.mxu0 %v3883
      %v3982 = vpop.f32.mrf.mxu0
      %v3983 = vadd.f32 0.0, %v3982
      %v3984 = vpop.f32.mrf.mxu0
      %v3985 = vpop.f32.mrf.mxu0
      %v3986 = vadd.f32 0.0, %v3985
      %v3987 = vpop.f32.mrf.mxu0
      %3988 = vmatprep.mubr.bf16.mxu0 0
      %3989 = vmatmul.mubr.bf16.gmra.mxu0 %v3886
      %v3990 = vpop.f32.mrf.mxu0
      %v3991 = vadd.f32 0.0, %v3990
      %v3992 = vpop.f32.mrf.mxu0
      %v3993 = vpop.f32.mrf.mxu0
      %v3994 = vadd.f32 0.0, %v3993
      %v3995 = vpop.f32.mrf.mxu0
      %3996 = vmatprep.mubr.bf16.mxu0 0
      %3997 = vmatmul.mubr.bf16.gmra.mxu0 %v3889
      %v3998 = vpop.f32.mrf.mxu0
      %v3999 = vadd.f32 0.0, %v3998
      %v4000 = vpop.f32.mrf.mxu0
      %v4001 = vpop.f32.mrf.mxu0
      %v4002 = vadd.f32 0.0, %v4001
      %v4003 = vpop.f32.mrf.mxu0
      %4004 = vmatprep.mubr.bf16.mxu0 0
      %4005 = vmatmul.mubr.bf16.gmra.mxu0 %v3892
      %v4006 = vpop.f32.mrf.mxu0
      %v4007 = vadd.f32 0.0, %v4006
      %v4008 = vpop.f32.mrf.mxu0
      %v4009 = vpop.f32.mrf.mxu0
      %v4010 = vadd.f32 0.0, %v4009
      %v4011 = vpop.f32.mrf.mxu0
      %4012 = vmatprep.mubr.bf16.mxu0 0
      %4013 = vmatmul.mubr.bf16.gmra.mxu0 %v3895
      %v4014 = vpop.f32.mrf.mxu0
      %v4015 = vadd.f32 0.0, %v4014
      %v4016 = vpop.f32.mrf.mxu0
      %v4017 = vpop.f32.mrf.mxu0
      %v4018 = vadd.f32 0.0, %v4017
      %v4019 = vpop.f32.mrf.mxu0
      %4020 = vmatprep.mubr.bf16.mxu0 0
      %4021 = vmatmul.mubr.bf16.gmra.mxu0 %v3898
      %v4022 = vpop.f32.mrf.mxu0
      %v4023 = vadd.f32 0.0, %v4022
      %v4024 = vpop.f32.mrf.mxu0
      %v4025 = vpop.f32.mrf.mxu0
      %v4026 = vadd.f32 0.0, %v4025
      %v4027 = vpop.f32.mrf.mxu0
      %4028 = vmatprep.mubr.bf16.mxu0 0
      %4029 = vmatmul.mubr.bf16.gmra.mxu0 %v3901
      %v4030 = vpop.f32.mrf.mxu0
      %v4031 = vadd.f32 0.0, %v4030
      %v4032 = vpop.f32.mrf.mxu0
      %v4033 = vpop.f32.mrf.mxu0
      %v4034 = vadd.f32 0.0, %v4033
      %v4035 = vpop.f32.mrf.mxu0
      %4036 = vmatprep.mubr.bf16.mxu0 0
      %4037 = vmatmul.mubr.bf16.gmra.mxu0 %v3904
      %v4038 = vpop.f32.mrf.mxu0
      %v4039 = vadd.f32 0.0, %v4038
      %v4040 = vpop.f32.mrf.mxu0
      %v4041 = vpop.f32.mrf.mxu0
      %v4042 = vadd.f32 0.0, %v4041
      %v4043 = vpop.f32.mrf.mxu0
      %4044 = vmatprep.mubr.bf16.mxu0 0
      %4045 = vmatmul.mubr.bf16.gmra.mxu0 %v3907
      %v4046 = vpop.f32.mrf.mxu0
      %v4047 = vadd.f32 0.0, %v4046
      %v4048 = vpop.f32.mrf.mxu0
      %v4049 = vpop.f32.mrf.mxu0
      %v4050 = vadd.f32 0.0, %v4049
      %v4051 = vpop.f32.mrf.mxu0
      %4052 = vmatprep.mubr.bf16.mxu0 0
      %4053 = vmatmul.mubr.bf16.gmra.mxu0 %v3910
      %v4054 = vpop.f32.mrf.mxu0
      %v4055 = vadd.f32 0.0, %v4054
      %v4056 = vpop.f32.mrf.mxu0
      %v4057 = vpop.f32.mrf.mxu0
      %v4058 = vadd.f32 0.0, %v4057
      %v4059 = vpop.f32.mrf.mxu0
      %4060 = vmatprep.mubr.bf16.mxu0 0
      %4061 = vmatmul.mubr.bf16.gmra.mxu0 %v3913
      %v4062 = vpop.f32.mrf.mxu0
      %v4063 = vadd.f32 0.0, %v4062
      %v4064 = vpop.f32.mrf.mxu0
      %v4065 = vpop.f32.mrf.mxu0
      %v4066 = vadd.f32 0.0, %v4065
      %v4067 = vpop.f32.mrf.mxu0
      %4068 = vmatprep.mubr.bf16.mxu0 0
      %4069 = vmatmul.mubr.bf16.gmra.mxu0 %v3916
      %v4070 = vpop.f32.mrf.mxu0
      %v4071 = vadd.f32 0.0, %v4070
      %v4072 = vpop.f32.mrf.mxu0
      %v4073 = vpop.f32.mrf.mxu0
      %v4074 = vadd.f32 0.0, %v4073
      %v4075 = vpop.f32.mrf.mxu0
      %4076 = vmatprep.mubr.bf16.mxu0 0
      %4077 = vmatmul.mubr.bf16.gmra.mxu0 %v3919
      %v4078 = vpop.f32.mrf.mxu0
      %v4079 = vadd.f32 0.0, %v4078
      %v4080 = vpop.f32.mrf.mxu0
      %v4081 = vpop.f32.mrf.mxu0
      %v4082 = vadd.f32 0.0, %v4081
      %v4083 = vpop.f32.mrf.mxu0
      %4084 = vdwg.mxu0
      %v4085 = vld [vmem:[%s238] sm:$0xff]
      %v4086 = vld [vmem:[%s238 + $0x8] sm:$0xff]
      %v4087 = vld [vmem:[%s238 + $0x10] sm:$0xff]
      %v4088 = vld [vmem:[%s238 + $0x18] sm:$0xff]
      %v4089 = vld [vmem:[%s238 + $0x20] sm:$0xff]
      %v4090 = vld [vmem:[%s238 + $0x28] sm:$0xff]
      %v4091 = vld [vmem:[%s238 + $0x30] sm:$0xff]
      %v4092 = vld [vmem:[%s238 + $0x38] sm:$0xff]
      %v4093 = vld [vmem:[%s238 + $0x40] sm:$0xff]
      %v4094 = vld [vmem:[%s238 + $0x48] sm:$0xff]
      %v4095 = vld [vmem:[%s238 + $0x50] sm:$0xff]
      %v4096 = vld [vmem:[%s238 + $0x58] sm:$0xff]
      %v4097 = vld [vmem:[%s238 + $0x60] sm:$0xff]
      %v4098 = vld [vmem:[%s238 + $0x68] sm:$0xff]
      %v4099 = vld [vmem:[%s238 + $0x70] sm:$0xff]
      %v4100 = vld [vmem:[%s238 + $0x78] sm:$0xff]
      %v4101 = vld [vmem:[%s238 + $0x80] sm:$0xff]
      %v4102 = vld [vmem:[%s238 + $0x88] sm:$0xff]
      %v4103 = vld [vmem:[%s238 + $0x90] sm:$0xff]
      %v4104 = vld [vmem:[%s238 + $0x98] sm:$0xff]
      %v4105 = vld [vmem:[%s238 + $0xa0] sm:$0xff]
      %v4106 = vld [vmem:[%s238 + $0xa8] sm:$0xff]
      %v4107 = vld [vmem:[%s238 + $0xb0] sm:$0xff]
      %v4108 = vld [vmem:[%s238 + $0xb8] sm:$0xff]
      %v4109 = vld [vmem:[%s238 + $0xc0] sm:$0xff]
      %v4110 = vld [vmem:[%s238 + $0xc8] sm:$0xff]
      %v4111 = vld [vmem:[%s238 + $0xd0] sm:$0xff]
      %v4112 = vld [vmem:[%s238 + $0xd8] sm:$0xff]
      %v4113 = vld [vmem:[%s238 + $0xe0] sm:$0xff]
      %v4114 = vld [vmem:[%s238 + $0xe8] sm:$0xff]
      %v4115 = vld [vmem:[%s238 + $0xf0] sm:$0xff]
      %v4116 = vld [vmem:[%s238 + $0xf8] sm:$0xff]
      %v4117 = vadd.f32 %v4085, %v3959
      %v4118 = vadd.f32 %v4086, %v3962
      %v4119 = vadd.f32 %v4087, %v3967
      %v4120 = vadd.f32 %v4088, %v3970
      %v4121 = vadd.f32 %v4089, %v3975
      %v4122 = vadd.f32 %v4090, %v3978
      %v4123 = vadd.f32 %v4091, %v3983
      %v4124 = vadd.f32 %v4092, %v3986
      %v4125 = vadd.f32 %v4093, %v3991
      %v4126 = vadd.f32 %v4094, %v3994
      %v4127 = vadd.f32 %v4095, %v3999
      %v4128 = vadd.f32 %v4096, %v4002
      %v4129 = vadd.f32 %v4097, %v4007
      %v4130 = vadd.f32 %v4098, %v4010
      %v4131 = vadd.f32 %v4099, %v4015
      %v4132 = vadd.f32 %v4100, %v4018
      %v4133 = vadd.f32 %v4101, %v4023
      %v4134 = vadd.f32 %v4102, %v4026
      %v4135 = vadd.f32 %v4103, %v4031
      %v4136 = vadd.f32 %v4104, %v4034
      %v4137 = vadd.f32 %v4105, %v4039
      %v4138 = vadd.f32 %v4106, %v4042
      %v4139 = vadd.f32 %v4107, %v4047
      %v4140 = vadd.f32 %v4108, %v4050
      %v4141 = vadd.f32 %v4109, %v4055
      %v4142 = vadd.f32 %v4110, %v4058
      %v4143 = vadd.f32 %v4111, %v4063
      %v4144 = vadd.f32 %v4112, %v4066
      %v4145 = vadd.f32 %v4113, %v4071
      %v4146 = vadd.f32 %v4114, %v4074
      %v4147 = vadd.f32 %v4115, %v4079
      %v4148 = vadd.f32 %v4116, %v4082
      %4149 = vst.msk [vmem:[%s238] sm:$0xff] %vm365, %v4117
      %4150 = vst.msk [vmem:[%s238 + $0x8] sm:$0xff] %vm365, %v4118
      %4151 = vst.msk [vmem:[%s238 + $0x10] sm:$0xff] %vm365, %v4119
      %4152 = vst.msk [vmem:[%s238 + $0x18] sm:$0xff] %vm365, %v4120
      %4153 = vst.msk [vmem:[%s238 + $0x20] sm:$0xff] %vm365, %v4121
      %4154 = vst.msk [vmem:[%s238 + $0x28] sm:$0xff] %vm365, %v4122
      %4155 = vst.msk [vmem:[%s238 + $0x30] sm:$0xff] %vm365, %v4123
      %4156 = vst.msk [vmem:[%s238 + $0x38] sm:$0xff] %vm365, %v4124
      %4157 = vst.msk [vmem:[%s238 + $0x40] sm:$0xff] %vm365, %v4125
      %4158 = vst.msk [vmem:[%s238 + $0x48] sm:$0xff] %vm365, %v4126
      %4159 = vst.msk [vmem:[%s238 + $0x50] sm:$0xff] %vm365, %v4127
      %4160 = vst.msk [vmem:[%s238 + $0x58] sm:$0xff] %vm365, %v4128
      %4161 = vst.msk [vmem:[%s238 + $0x60] sm:$0xff] %vm365, %v4129
      %4162 = vst.msk [vmem:[%s238 + $0x68] sm:$0xff] %vm365, %v4130
      %4163 = vst.msk [vmem:[%s238 + $0x70] sm:$0xff] %vm365, %v4131
      %4164 = vst.msk [vmem:[%s238 + $0x78] sm:$0xff] %vm365, %v4132
      %4165 = vst.msk [vmem:[%s238 + $0x80] sm:$0xff] %vm365, %v4133
      %4166 = vst.msk [vmem:[%s238 + $0x88] sm:$0xff] %vm365, %v4134
      %4167 = vst.msk [vmem:[%s238 + $0x90] sm:$0xff] %vm365, %v4135
      %4168 = vst.msk [vmem:[%s238 + $0x98] sm:$0xff] %vm365, %v4136
      %4169 = vst.msk [vmem:[%s238 + $0xa0] sm:$0xff] %vm365, %v4137
      %4170 = vst.msk [vmem:[%s238 + $0xa8] sm:$0xff] %vm365, %v4138
      %4171 = vst.msk [vmem:[%s238 + $0xb0] sm:$0xff] %vm365, %v4139
      %4172 = vst.msk [vmem:[%s238 + $0xb8] sm:$0xff] %vm365, %v4140
      %4173 = vst.msk [vmem:[%s238 + $0xc0] sm:$0xff] %vm365, %v4141
      %4174 = vst.msk [vmem:[%s238 + $0xc8] sm:$0xff] %vm365, %v4142
      %4175 = vst.msk [vmem:[%s238 + $0xd0] sm:$0xff] %vm365, %v4143
      %4176 = vst.msk [vmem:[%s238 + $0xd8] sm:$0xff] %vm365, %v4144
      %4177 = vst.msk [vmem:[%s238 + $0xe0] sm:$0xff] %vm365, %v4145
      %4178 = vst.msk [vmem:[%s238 + $0xe8] sm:$0xff] %vm365, %v4146
      %4179 = vst.msk [vmem:[%s238 + $0xf0] sm:$0xff] %vm365, %v4147
      %4180 = vst.msk [vmem:[%s238 + $0xf8] sm:$0xff] %vm365, %v4148
      %v4181 = vld [vmem:[%s3758] sm:$0xf]
      %v4182 = vld [vmem:[%s3758 + $0x4] sm:$0xf]
      %v4183 = vld [vmem:[%s3758 + $0x8] sm:$0x1]
      %v4184 = vld [vmem:[%s3758 + $0xc] sm:$0xf]
      %v4185 = vld [vmem:[%s3758 + $0x10] sm:$0xf]
      %v4186 = vld [vmem:[%s3758 + $0x14] sm:$0x1]
      %v4187 = vld [vmem:[%s3758 + $0x18] sm:$0xf]
      %v4188 = vld [vmem:[%s3758 + $0x1c] sm:$0xf]
      %v4189 = vld [vmem:[%s3758 + $0x20] sm:$0x1]
      %v4190 = vld [vmem:[%s3758 + $0x24] sm:$0xf]
      %v4191 = vld [vmem:[%s3758 + $0x28] sm:$0xf]
      %v4192 = vld [vmem:[%s3758 + $0x2c] sm:$0x1]
      %v4193 = vld [vmem:[%s3758 + $0x30] sm:$0xf]
      %v4194 = vld [vmem:[%s3758 + $0x34] sm:$0xf]
      %v4195 = vld [vmem:[%s3758 + $0x38] sm:$0x1]
      %v4196 = vld [vmem:[%s3758 + $0x3c] sm:$0xf]
      %v4197 = vld [vmem:[%s3758 + $0x40] sm:$0xf]
      %v4198 = vld [vmem:[%s3758 + $0x44] sm:$0x1]
      %v4199 = vld [vmem:[%s3758 + $0x48] sm:$0xf]
      %v4200 = vld [vmem:[%s3758 + $0x4c] sm:$0xf]
      %v4201 = vld [vmem:[%s3758 + $0x50] sm:$0x1]
      %v4202 = vld [vmem:[%s3758 + $0x54] sm:$0xf]
      %v4203 = vld [vmem:[%s3758 + $0x58] sm:$0xf]
      %v4204 = vld [vmem:[%s3758 + $0x5c] sm:$0x1]
      %v4205 = vld [vmem:[%s3758 + $0x60] sm:$0xf]
      %v4206 = vld [vmem:[%s3758 + $0x64] sm:$0xf]
      %v4207 = vld [vmem:[%s3758 + $0x68] sm:$0x1]
      %v4208 = vld [vmem:[%s3758 + $0x6c] sm:$0xf]
      %v4209 = vld [vmem:[%s3758 + $0x70] sm:$0xf]
      %v4210 = vld [vmem:[%s3758 + $0x74] sm:$0x1]
      %v4211 = vld [vmem:[%s3758 + $0x78] sm:$0xf]
      %v4212 = vld [vmem:[%s3758 + $0x7c] sm:$0xf]
      %v4213 = vld [vmem:[%s3758 + $0x80] sm:$0x1]
      %v4214 = vld [vmem:[%s3758 + $0x84] sm:$0xf]
      %v4215 = vld [vmem:[%s3758 + $0x88] sm:$0xf]
      %v4216 = vld [vmem:[%s3758 + $0x8c] sm:$0x1]
      %v4217 = vld [vmem:[%s3758 + $0x90] sm:$0xf]
      %v4218 = vld [vmem:[%s3758 + $0x94] sm:$0xf]
      %v4219 = vld [vmem:[%s3758 + $0x98] sm:$0x1]
      %v4220 = vld [vmem:[%s3758 + $0x9c] sm:$0xf]
      %v4221 = vld [vmem:[%s3758 + $0xa0] sm:$0xf]
      %v4222 = vld [vmem:[%s3758 + $0xa4] sm:$0x1]
      %v4223 = vld [vmem:[%s3758 + $0xa8] sm:$0xf]
      %v4224 = vld [vmem:[%s3758 + $0xac] sm:$0xf]
      %v4225 = vld [vmem:[%s3758 + $0xb0] sm:$0x1]
      %v4226 = vld [vmem:[%s3758 + $0xb4] sm:$0xf]
      %v4227 = vld [vmem:[%s3758 + $0xb8] sm:$0xf]
      %v4228 = vld [vmem:[%s3758 + $0xbc] sm:$0x1]
      %v4230 = vshrl.u32 %v4181, 16
      %v4232 = vrot.slane %v4230, 4
      %v4233 = vshll.u32 %v4181, 16
      %v4235 = vrot.slane %v4233, 5
      %v4236 = vor.u32 %v4232, %v4235
      %v4237 = vrot.slane %v4236, 4
      %v4239 = vshll.u32 %v4182, 16
      %v4241 = vrot.slane %v4239, 5
      %v4242 = vsel %vm661, %v4237, %v4241
      %v4243 = vshrl.u32 %v4182, 16
      %v4245 = vrot.slane %v4243, 4
      %v4246 = vor.u32 %v4245, %v4241
      %v4247 = vrot.slane %v4246, 4
      %v4249 = vshll.u32 %v4183, 16
      %v4251 = vrot.slane %v4249, 5
      %v4252 = vsel %vm661, %v4247, %v4251
      %v4254 = vshrl.u32 %v4184, 16
      %v4256 = vrot.slane %v4254, 4
      %v4257 = vshll.u32 %v4184, 16
      %v4259 = vrot.slane %v4257, 5
      %v4260 = vor.u32 %v4256, %v4259
      %v4261 = vrot.slane %v4260, 4
      %v4263 = vshll.u32 %v4185, 16
      %v4265 = vrot.slane %v4263, 5
      %v4266 = vsel %vm661, %v4261, %v4265
      %v4267 = vshrl.u32 %v4185, 16
      %v4269 = vrot.slane %v4267, 4
      %v4270 = vor.u32 %v4269, %v4265
      %v4271 = vrot.slane %v4270, 4
      %v4273 = vshll.u32 %v4186, 16
      %v4275 = vrot.slane %v4273, 5
      %v4276 = vsel %vm661, %v4271, %v4275
      %v4278 = vshrl.u32 %v4187, 16
      %v4280 = vrot.slane %v4278, 4
      %v4281 = vshll.u32 %v4187, 16
      %v4283 = vrot.slane %v4281, 5
      %v4284 = vor.u32 %v4280, %v4283
      %v4285 = vrot.slane %v4284, 4
      %v4287 = vshll.u32 %v4188, 16
      %v4289 = vrot.slane %v4287, 5
      %v4290 = vsel %vm661, %v4285, %v4289
      %v4291 = vshrl.u32 %v4188, 16
      %v4293 = vrot.slane %v4291, 4
      %v4294 = vor.u32 %v4293, %v4289
      %v4295 = vrot.slane %v4294, 4
      %v4297 = vshll.u32 %v4189, 16
      %v4299 = vrot.slane %v4297, 5
      %v4300 = vsel %vm661, %v4295, %v4299
      %v4302 = vshrl.u32 %v4190, 16
      %v4304 = vrot.slane %v4302, 4
      %v4305 = vshll.u32 %v4190, 16
      %v4307 = vrot.slane %v4305, 5
      %v4308 = vor.u32 %v4304, %v4307
      %v4309 = vrot.slane %v4308, 4
      %v4311 = vshll.u32 %v4191, 16
      %v4313 = vrot.slane %v4311, 5
      %v4314 = vsel %vm661, %v4309, %v4313
      %v4315 = vshrl.u32 %v4191, 16
      %v4317 = vrot.slane %v4315, 4
      %v4318 = vor.u32 %v4317, %v4313
      %v4319 = vrot.slane %v4318, 4
      %v4321 = vshll.u32 %v4192, 16
      %v4323 = vrot.slane %v4321, 5
      %v4324 = vsel %vm661, %v4319, %v4323
      %v4326 = vshrl.u32 %v4193, 16
      %v4328 = vrot.slane %v4326, 4
      %v4329 = vshll.u32 %v4193, 16
      %v4331 = vrot.slane %v4329, 5
      %v4332 = vor.u32 %v4328, %v4331
      %v4333 = vrot.slane %v4332, 4
      %v4335 = vshll.u32 %v4194, 16
      %v4337 = vrot.slane %v4335, 5
      %v4338 = vsel %vm661, %v4333, %v4337
      %v4339 = vshrl.u32 %v4194, 16
      %v4341 = vrot.slane %v4339, 4
      %v4342 = vor.u32 %v4341, %v4337
      %v4343 = vrot.slane %v4342, 4
      %v4345 = vshll.u32 %v4195, 16
      %v4347 = vrot.slane %v4345, 5
      %v4348 = vsel %vm661, %v4343, %v4347
      %v4350 = vshrl.u32 %v4196, 16
      %v4352 = vrot.slane %v4350, 4
      %v4353 = vshll.u32 %v4196, 16
      %v4355 = vrot.slane %v4353, 5
      %v4356 = vor.u32 %v4352, %v4355
      %v4357 = vrot.slane %v4356, 4
      %v4359 = vshll.u32 %v4197, 16
      %v4361 = vrot.slane %v4359, 5
      %v4362 = vsel %vm661, %v4357, %v4361
      %v4363 = vshrl.u32 %v4197, 16
      %v4365 = vrot.slane %v4363, 4
      %v4366 = vor.u32 %v4365, %v4361
      %v4367 = vrot.slane %v4366, 4
      %v4369 = vshll.u32 %v4198, 16
      %v4371 = vrot.slane %v4369, 5
      %v4372 = vsel %vm661, %v4367, %v4371
      %v4374 = vshrl.u32 %v4199, 16
      %v4376 = vrot.slane %v4374, 4
      %v4377 = vshll.u32 %v4199, 16
      %v4379 = vrot.slane %v4377, 5
      %v4380 = vor.u32 %v4376, %v4379
      %v4381 = vrot.slane %v4380, 4
      %v4383 = vshll.u32 %v4200, 16
      %v4385 = vrot.slane %v4383, 5
      %v4386 = vsel %vm661, %v4381, %v4385
      %v4387 = vshrl.u32 %v4200, 16
      %v4389 = vrot.slane %v4387, 4
      %v4390 = vor.u32 %v4389, %v4385
      %v4391 = vrot.slane %v4390, 4
      %v4393 = vshll.u32 %v4201, 16
      %v4395 = vrot.slane %v4393, 5
      %v4396 = vsel %vm661, %v4391, %v4395
      %v4398 = vshrl.u32 %v4202, 16
      %v4400 = vrot.slane %v4398, 4
      %v4401 = vshll.u32 %v4202, 16
      %v4403 = vrot.slane %v4401, 5
      %v4404 = vor.u32 %v4400, %v4403
      %v4405 = vrot.slane %v4404, 4
      %v4407 = vshll.u32 %v4203, 16
      %v4409 = vrot.slane %v4407, 5
      %v4410 = vsel %vm661, %v4405, %v4409
      %v4411 = vshrl.u32 %v4203, 16
      %v4413 = vrot.slane %v4411, 4
      %v4414 = vor.u32 %v4413, %v4409
      %v4415 = vrot.slane %v4414, 4
      %v4417 = vshll.u32 %v4204, 16
      %v4419 = vrot.slane %v4417, 5
      %v4420 = vsel %vm661, %v4415, %v4419
      %v4422 = vshrl.u32 %v4205, 16
      %v4424 = vrot.slane %v4422, 4
      %v4425 = vshll.u32 %v4205, 16
      %v4427 = vrot.slane %v4425, 5
      %v4428 = vor.u32 %v4424, %v4427
      %v4429 = vrot.slane %v4428, 4
      %v4431 = vshll.u32 %v4206, 16
      %v4433 = vrot.slane %v4431, 5
      %v4434 = vsel %vm661, %v4429, %v4433
      %v4435 = vshrl.u32 %v4206, 16
      %v4437 = vrot.slane %v4435, 4
      %v4438 = vor.u32 %v4437, %v4433
      %v4439 = vrot.slane %v4438, 4
      %v4441 = vshll.u32 %v4207, 16
      %v4443 = vrot.slane %v4441, 5
      %v4444 = vsel %vm661, %v4439, %v4443
      %v4446 = vshrl.u32 %v4208, 16
      %v4448 = vrot.slane %v4446, 4
      %v4449 = vshll.u32 %v4208, 16
      %v4451 = vrot.slane %v4449, 5
      %v4452 = vor.u32 %v4448, %v4451
      %v4453 = vrot.slane %v4452, 4
      %v4455 = vshll.u32 %v4209, 16
      %v4457 = vrot.slane %v4455, 5
      %v4458 = vsel %vm661, %v4453, %v4457
      %v4459 = vshrl.u32 %v4209, 16
      %v4461 = vrot.slane %v4459, 4
      %v4462 = vor.u32 %v4461, %v4457
      %v4463 = vrot.slane %v4462, 4
      %v4465 = vshll.u32 %v4210, 16
      %v4467 = vrot.slane %v4465, 5
      %v4468 = vsel %vm661, %v4463, %v4467
      %v4470 = vshrl.u32 %v4211, 16
      %v4472 = vrot.slane %v4470, 4
      %v4473 = vshll.u32 %v4211, 16
      %v4475 = vrot.slane %v4473, 5
      %v4476 = vor.u32 %v4472, %v4475
      %v4477 = vrot.slane %v4476, 4
      %v4479 = vshll.u32 %v4212, 16
      %v4481 = vrot.slane %v4479, 5
      %v4482 = vsel %vm661, %v4477, %v4481
      %v4483 = vshrl.u32 %v4212, 16
      %v4485 = vrot.slane %v4483, 4
      %v4486 = vor.u32 %v4485, %v4481
      %v4487 = vrot.slane %v4486, 4
      %v4489 = vshll.u32 %v4213, 16
      %v4491 = vrot.slane %v4489, 5
      %v4492 = vsel %vm661, %v4487, %v4491
      %v4494 = vshrl.u32 %v4214, 16
      %v4496 = vrot.slane %v4494, 4
      %v4497 = vshll.u32 %v4214, 16
      %v4499 = vrot.slane %v4497, 5
      %v4500 = vor.u32 %v4496, %v4499
      %v4501 = vrot.slane %v4500, 4
      %v4503 = vshll.u32 %v4215, 16
      %v4505 = vrot.slane %v4503, 5
      %v4506 = vsel %vm661, %v4501, %v4505
      %v4507 = vshrl.u32 %v4215, 16
      %v4509 = vrot.slane %v4507, 4
      %v4510 = vor.u32 %v4509, %v4505
      %v4511 = vrot.slane %v4510, 4
      %v4513 = vshll.u32 %v4216, 16
      %v4515 = vrot.slane %v4513, 5
      %v4516 = vsel %vm661, %v4511, %v4515
      %v4518 = vshrl.u32 %v4217, 16
      %v4520 = vrot.slane %v4518, 4
      %v4521 = vshll.u32 %v4217, 16
      %v4523 = vrot.slane %v4521, 5
      %v4524 = vor.u32 %v4520, %v4523
      %v4525 = vrot.slane %v4524, 4
      %v4527 = vshll.u32 %v4218, 16
      %v4529 = vrot.slane %v4527, 5
      %v4530 = vsel %vm661, %v4525, %v4529
      %v4531 = vshrl.u32 %v4218, 16
      %v4533 = vrot.slane %v4531, 4
      %v4534 = vor.u32 %v4533, %v4529
      %v4535 = vrot.slane %v4534, 4
      %v4537 = vshll.u32 %v4219, 16
      %v4539 = vrot.slane %v4537, 5
      %v4540 = vsel %vm661, %v4535, %v4539
      %v4542 = vshrl.u32 %v4220, 16
      %v4544 = vrot.slane %v4542, 4
      %v4545 = vshll.u32 %v4220, 16
      %v4547 = vrot.slane %v4545, 5
      %v4548 = vor.u32 %v4544, %v4547
      %v4549 = vrot.slane %v4548, 4
      %v4551 = vshll.u32 %v4221, 16
      %v4553 = vrot.slane %v4551, 5
      %v4554 = vsel %vm661, %v4549, %v4553
      %v4555 = vshrl.u32 %v4221, 16
      %v4557 = vrot.slane %v4555, 4
      %v4558 = vor.u32 %v4557, %v4553
      %v4559 = vrot.slane %v4558, 4
      %v4561 = vshll.u32 %v4222, 16
      %v4563 = vrot.slane %v4561, 5
      %v4564 = vsel %vm661, %v4559, %v4563
      %v4566 = vshrl.u32 %v4223, 16
      %v4568 = vrot.slane %v4566, 4
      %v4569 = vshll.u32 %v4223, 16
      %v4571 = vrot.slane %v4569, 5
      %v4572 = vor.u32 %v4568, %v4571
      %v4573 = vrot.slane %v4572, 4
      %v4575 = vshll.u32 %v4224, 16
      %v4577 = vrot.slane %v4575, 5
      %v4578 = vsel %vm661, %v4573, %v4577
      %v4579 = vshrl.u32 %v4224, 16
      %v4581 = vrot.slane %v4579, 4
      %v4582 = vor.u32 %v4581, %v4577
      %v4583 = vrot.slane %v4582, 4
      %v4585 = vshll.u32 %v4225, 16
      %v4587 = vrot.slane %v4585, 5
      %v4588 = vsel %vm661, %v4583, %v4587
      %v4590 = vshrl.u32 %v4226, 16
      %v4592 = vrot.slane %v4590, 4
      %v4593 = vshll.u32 %v4226, 16
      %v4595 = vrot.slane %v4593, 5
      %v4596 = vor.u32 %v4592, %v4595
      %v4597 = vrot.slane %v4596, 4
      %v4599 = vshll.u32 %v4227, 16
      %v4601 = vrot.slane %v4599, 5
      %v4602 = vsel %vm661, %v4597, %v4601
      %v4603 = vshrl.u32 %v4227, 16
      %v4605 = vrot.slane %v4603, 4
      %v4606 = vor.u32 %v4605, %v4601
      %v4607 = vrot.slane %v4606, 4
      %v4609 = vshll.u32 %v4228, 16
      %v4611 = vrot.slane %v4609, 5
      %v4612 = vsel %vm661, %v4607, %v4611
      %s4613 = scalar_lea.vmem %s223, 14
      %v4614 = vld [vmem:[%s4613] sm:$0x3]
      %v4615 = vunpack.c.l.b16 %v4242
      %v4616 = vunpack.c.l.b16 %v4252
      %v4617 = vunpack.c.l.b16 %v4266
      %v4618 = vunpack.c.l.b16 %v4276
      %v4619 = vunpack.c.l.b16 %v4290
      %v4620 = vunpack.c.l.b16 %v4300
      %v4621 = vunpack.c.l.b16 %v4314
      %v4622 = vunpack.c.l.b16 %v4324
      %v4623 = vunpack.c.l.b16 %v4338
      %v4624 = vunpack.c.l.b16 %v4348
      %v4625 = vunpack.c.l.b16 %v4362
      %v4626 = vunpack.c.l.b16 %v4372
      %v4627 = vunpack.c.l.b16 %v4386
      %v4628 = vunpack.c.l.b16 %v4396
      %v4629 = vunpack.c.l.b16 %v4410
      %v4630 = vunpack.c.l.b16 %v4420
      %v4631 = vunpack.c.l.b16 %v4434
      %v4632 = vunpack.c.l.b16 %v4444
      %v4633 = vunpack.c.l.b16 %v4458
      %v4634 = vunpack.c.l.b16 %v4468
      %v4635 = vunpack.c.l.b16 %v4482
      %v4636 = vunpack.c.l.b16 %v4492
      %v4637 = vunpack.c.l.b16 %v4506
      %v4638 = vunpack.c.l.b16 %v4516
      %v4639 = vunpack.c.l.b16 %v4530
      %v4640 = vunpack.c.l.b16 %v4540
      %v4641 = vunpack.c.l.b16 %v4554
      %v4642 = vunpack.c.l.b16 %v4564
      %v4643 = vunpack.c.l.b16 %v4578
      %v4644 = vunpack.c.l.b16 %v4588
      %v4645 = vunpack.c.l.b16 %v4602
      %v4646 = vunpack.c.l.b16 %v4612
      %v4647 = vpack.c.b16 %v4616, %v4615
      %v4648 = vpack.c.b16 %v4618, %v4617
      %v4649 = vpack.c.b16 %v4620, %v4619
      %v4650 = vpack.c.b16 %v4622, %v4621
      %v4651 = vpack.c.b16 %v4624, %v4623
      %v4652 = vpack.c.b16 %v4626, %v4625
      %v4653 = vpack.c.b16 %v4628, %v4627
      %v4654 = vpack.c.b16 %v4630, %v4629
      %v4655 = vpack.c.b16 %v4632, %v4631
      %v4656 = vpack.c.b16 %v4634, %v4633
      %v4657 = vpack.c.b16 %v4636, %v4635
      %v4658 = vpack.c.b16 %v4638, %v4637
      %v4659 = vpack.c.b16 %v4640, %v4639
      %v4660 = vpack.c.b16 %v4642, %v4641
      %v4661 = vpack.c.b16 %v4644, %v4643
      %v4662 = vpack.c.b16 %v4646, %v4645
      %v4664 = vsel %vm365, %v4647, 0
      %v4667 = vsel %vm365, %v4648, 0
      %v4670 = vsel %vm365, %v4649, 0
      %v4673 = vsel %vm365, %v4650, 0
      %v4676 = vsel %vm365, %v4651, 0
      %v4679 = vsel %vm365, %v4652, 0
      %v4682 = vsel %vm365, %v4653, 0
      %v4685 = vsel %vm365, %v4654, 0
      %v4688 = vsel %vm365, %v4655, 0
      %v4691 = vsel %vm365, %v4656, 0
      %v4694 = vsel %vm365, %v4657, 0
      %v4697 = vsel %vm365, %v4658, 0
      %v4700 = vsel %vm365, %v4659, 0
      %v4703 = vsel %vm365, %v4660, 0
      %v4706 = vsel %vm365, %v4661, 0
      %v4709 = vsel %vm365, %v4662, 0
      %v4712 = vsel %vm414, %v4614, 0
      %4714 = vmatprep.subr.bf16.mxu0 0
      %4715 = vmatpush1.bf16.msra.mxu0 0
      %4716 = vmatprep.subr.bf16.mxu0 0
      %4717 = vmatpush1.bf16.msra.mxu0 0
      %4718 = vmatprep.subr.bf16.mxu0 0
      %4719 = vmatpush1.bf16.msra.mxu0 0
      %4720 = vmatprep.subr.bf16.mxu0 0
      %4721 = vmatpush1.bf16.msra.mxu0 0
      %4722 = vmatprep.subr.bf16.mxu0 0
      %4723 = vmatpush1.bf16.msra.mxu0 0
      %4724 = vmatprep.subr.bf16.mxu0 0
      %4725 = vmatpush1.bf16.msra.mxu0 0
      %4726 = vmatprep.subr.bf16.mxu0 0
      %4727 = vmatpush1.bf16.msra.mxu0 0
      %4728 = vmatprep.subr.bf16.mxu0 0
      %4729 = vmatpush1.bf16.msra.mxu0 %v4712
      %4730 = vmatprep.subr.bf16.mxu0 0
      %4731 = vmatpush2.bf16.msra.mxu0 0
      %4732 = vmatprep.subr.bf16.mxu0 0
      %4733 = vmatpush2.bf16.msra.mxu0 0
      %4734 = vmatprep.subr.bf16.mxu0 0
      %4735 = vmatpush2.bf16.msra.mxu0 0
      %4736 = vmatprep.subr.bf16.mxu0 0
      %4737 = vmatpush2.bf16.msra.mxu0 0
      %4738 = vmatprep.subr.bf16.mxu0 0
      %4739 = vmatpush2.bf16.msra.mxu0 0
      %4740 = vmatprep.subr.bf16.mxu0 0
      %4741 = vmatpush2.bf16.msra.mxu0 0
      %4742 = vmatprep.subr.bf16.mxu0 0
      %4743 = vmatpush2.bf16.msra.mxu0 0
      %4744 = vmatprep.subr.bf16.mxu0 0
      %4745 = vmatpush2.bf16.msra.mxu0 0
      %4746 = vmatprep.mubr.bf16.mxu0 0
      %4747 = vmatmul.mubr.bf16.gmra.mxu0 %v4664
      %v4748 = vpop.f32.mrf.mxu0
      %v4749 = vadd.f32 0.0, %v4748
      %v4750 = vpop.f32.mrf.mxu0
      %v4751 = vpop.f32.mrf.mxu0
      %v4752 = vadd.f32 0.0, %v4751
      %v4753 = vpop.f32.mrf.mxu0
      %4754 = vmatprep.mubr.bf16.mxu0 0
      %4755 = vmatmul.mubr.bf16.gmra.mxu0 %v4667
      %v4756 = vpop.f32.mrf.mxu0
      %v4757 = vadd.f32 0.0, %v4756
      %v4758 = vpop.f32.mrf.mxu0
      %v4759 = vpop.f32.mrf.mxu0
      %v4760 = vadd.f32 0.0, %v4759
      %v4761 = vpop.f32.mrf.mxu0
      %4762 = vmatprep.mubr.bf16.mxu0 0
      %4763 = vmatmul.mubr.bf16.gmra.mxu0 %v4670
      %v4764 = vpop.f32.mrf.mxu0
      %v4765 = vadd.f32 0.0, %v4764
      %v4766 = vpop.f32.mrf.mxu0
      %v4767 = vpop.f32.mrf.mxu0
      %v4768 = vadd.f32 0.0, %v4767
      %v4769 = vpop.f32.mrf.mxu0
      %4770 = vmatprep.mubr.bf16.mxu0 0
      %4771 = vmatmul.mubr.bf16.gmra.mxu0 %v4673
      %v4772 = vpop.f32.mrf.mxu0
      %v4773 = vadd.f32 0.0, %v4772
      %v4774 = vpop.f32.mrf.mxu0
      %v4775 = vpop.f32.mrf.mxu0
      %v4776 = vadd.f32 0.0, %v4775
      %v4777 = vpop.f32.mrf.mxu0
      %4778 = vmatprep.mubr.bf16.mxu0 0
      %4779 = vmatmul.mubr.bf16.gmra.mxu0 %v4676
      %v4780 = vpop.f32.mrf.mxu0
      %v4781 = vadd.f32 0.0, %v4780
      %v4782 = vpop.f32.mrf.mxu0
      %v4783 = vpop.f32.mrf.mxu0
      %v4784 = vadd.f32 0.0, %v4783
      %v4785 = vpop.f32.mrf.mxu0
      %4786 = vmatprep.mubr.bf16.mxu0 0
      %4787 = vmatmul.mubr.bf16.gmra.mxu0 %v4679
      %v4788 = vpop.f32.mrf.mxu0
      %v4789 = vadd.f32 0.0, %v4788
      %v4790 = vpop.f32.mrf.mxu0
      %v4791 = vpop.f32.mrf.mxu0
      %v4792 = vadd.f32 0.0, %v4791
      %v4793 = vpop.f32.mrf.mxu0
      %4794 = vmatprep.mubr.bf16.mxu0 0
      %4795 = vmatmul.mubr.bf16.gmra.mxu0 %v4682
      %v4796 = vpop.f32.mrf.mxu0
      %v4797 = vadd.f32 0.0, %v4796
      %v4798 = vpop.f32.mrf.mxu0
      %v4799 = vpop.f32.mrf.mxu0
      %v4800 = vadd.f32 0.0, %v4799
      %v4801 = vpop.f32.mrf.mxu0
      %4802 = vmatprep.mubr.bf16.mxu0 0
      %4803 = vmatmul.mubr.bf16.gmra.mxu0 %v4685
      %v4804 = vpop.f32.mrf.mxu0
      %v4805 = vadd.f32 0.0, %v4804
      %v4806 = vpop.f32.mrf.mxu0
      %v4807 = vpop.f32.mrf.mxu0
      %v4808 = vadd.f32 0.0, %v4807
      %v4809 = vpop.f32.mrf.mxu0
      %4810 = vmatprep.mubr.bf16.mxu0 0
      %4811 = vmatmul.mubr.bf16.gmra.mxu0 %v4688
      %v4812 = vpop.f32.mrf.mxu0
      %v4813 = vadd.f32 0.0, %v4812
      %v4814 = vpop.f32.mrf.mxu0
      %v4815 = vpop.f32.mrf.mxu0
      %v4816 = vadd.f32 0.0, %v4815
      %v4817 = vpop.f32.mrf.mxu0
      %4818 = vmatprep.mubr.bf16.mxu0 0
      %4819 = vmatmul.mubr.bf16.gmra.mxu0 %v4691
      %v4820 = vpop.f32.mrf.mxu0
      %v4821 = vadd.f32 0.0, %v4820
      %v4822 = vpop.f32.mrf.mxu0
      %v4823 = vpop.f32.mrf.mxu0
      %v4824 = vadd.f32 0.0, %v4823
      %v4825 = vpop.f32.mrf.mxu0
      %4826 = vmatprep.mubr.bf16.mxu0 0
      %4827 = vmatmul.mubr.bf16.gmra.mxu0 %v4694
      %v4828 = vpop.f32.mrf.mxu0
      %v4829 = vadd.f32 0.0, %v4828
      %v4830 = vpop.f32.mrf.mxu0
      %v4831 = vpop.f32.mrf.mxu0
      %v4832 = vadd.f32 0.0, %v4831
      %v4833 = vpop.f32.mrf.mxu0
      %4834 = vmatprep.mubr.bf16.mxu0 0
      %4835 = vmatmul.mubr.bf16.gmra.mxu0 %v4697
      %v4836 = vpop.f32.mrf.mxu0
      %v4837 = vadd.f32 0.0, %v4836
      %v4838 = vpop.f32.mrf.mxu0
      %v4839 = vpop.f32.mrf.mxu0
      %v4840 = vadd.f32 0.0, %v4839
      %v4841 = vpop.f32.mrf.mxu0
      %4842 = vmatprep.mubr.bf16.mxu0 0
      %4843 = vmatmul.mubr.bf16.gmra.mxu0 %v4700
      %v4844 = vpop.f32.mrf.mxu0
      %v4845 = vadd.f32 0.0, %v4844
      %v4846 = vpop.f32.mrf.mxu0
      %v4847 = vpop.f32.mrf.mxu0
      %v4848 = vadd.f32 0.0, %v4847
      %v4849 = vpop.f32.mrf.mxu0
      %4850 = vmatprep.mubr.bf16.mxu0 0
      %4851 = vmatmul.mubr.bf16.gmra.mxu0 %v4703
      %v4852 = vpop.f32.mrf.mxu0
      %v4853 = vadd.f32 0.0, %v4852
      %v4854 = vpop.f32.mrf.mxu0
      %v4855 = vpop.f32.mrf.mxu0
      %v4856 = vadd.f32 0.0, %v4855
      %v4857 = vpop.f32.mrf.mxu0
      %4858 = vmatprep.mubr.bf16.mxu0 0
      %4859 = vmatmul.mubr.bf16.gmra.mxu0 %v4706
      %v4860 = vpop.f32.mrf.mxu0
      %v4861 = vadd.f32 0.0, %v4860
      %v4862 = vpop.f32.mrf.mxu0
      %v4863 = vpop.f32.mrf.mxu0
      %v4864 = vadd.f32 0.0, %v4863
      %v4865 = vpop.f32.mrf.mxu0
      %4866 = vmatprep.mubr.bf16.mxu0 0
      %4867 = vmatmul.mubr.bf16.gmra.mxu0 %v4709
      %v4868 = vpop.f32.mrf.mxu0
      %v4869 = vadd.f32 0.0, %v4868
      %v4870 = vpop.f32.mrf.mxu0
      %v4871 = vpop.f32.mrf.mxu0
      %v4872 = vadd.f32 0.0, %v4871
      %v4873 = vpop.f32.mrf.mxu0
      %4874 = vdwg.mxu0
      %v4875 = vld [vmem:[%s238] sm:$0xff]
      %v4876 = vld [vmem:[%s238 + $0x8] sm:$0xff]
      %v4877 = vld [vmem:[%s238 + $0x10] sm:$0xff]
      %v4878 = vld [vmem:[%s238 + $0x18] sm:$0xff]
      %v4879 = vld [vmem:[%s238 + $0x20] sm:$0xff]
      %v4880 = vld [vmem:[%s238 + $0x28] sm:$0xff]
      %v4881 = vld [vmem:[%s238 + $0x30] sm:$0xff]
      %v4882 = vld [vmem:[%s238 + $0x38] sm:$0xff]
      %v4883 = vld [vmem:[%s238 + $0x40] sm:$0xff]
      %v4884 = vld [vmem:[%s238 + $0x48] sm:$0xff]
      %v4885 = vld [vmem:[%s238 + $0x50] sm:$0xff]
      %v4886 = vld [vmem:[%s238 + $0x58] sm:$0xff]
      %v4887 = vld [vmem:[%s238 + $0x60] sm:$0xff]
      %v4888 = vld [vmem:[%s238 + $0x68] sm:$0xff]
      %v4889 = vld [vmem:[%s238 + $0x70] sm:$0xff]
      %v4890 = vld [vmem:[%s238 + $0x78] sm:$0xff]
      %v4891 = vld [vmem:[%s238 + $0x80] sm:$0xff]
      %v4892 = vld [vmem:[%s238 + $0x88] sm:$0xff]
      %v4893 = vld [vmem:[%s238 + $0x90] sm:$0xff]
      %v4894 = vld [vmem:[%s238 + $0x98] sm:$0xff]
      %v4895 = vld [vmem:[%s238 + $0xa0] sm:$0xff]
      %v4896 = vld [vmem:[%s238 + $0xa8] sm:$0xff]
      %v4897 = vld [vmem:[%s238 + $0xb0] sm:$0xff]
      %v4898 = vld [vmem:[%s238 + $0xb8] sm:$0xff]
      %v4899 = vld [vmem:[%s238 + $0xc0] sm:$0xff]
      %v4900 = vld [vmem:[%s238 + $0xc8] sm:$0xff]
      %v4901 = vld [vmem:[%s238 + $0xd0] sm:$0xff]
      %v4902 = vld [vmem:[%s238 + $0xd8] sm:$0xff]
      %v4903 = vld [vmem:[%s238 + $0xe0] sm:$0xff]
      %v4904 = vld [vmem:[%s238 + $0xe8] sm:$0xff]
      %v4905 = vld [vmem:[%s238 + $0xf0] sm:$0xff]
      %v4906 = vld [vmem:[%s238 + $0xf8] sm:$0xff]
      %v4907 = vadd.f32 %v4875, %v4749
      %v4908 = vadd.f32 %v4876, %v4752
      %v4909 = vadd.f32 %v4877, %v4757
      %v4910 = vadd.f32 %v4878, %v4760
      %v4911 = vadd.f32 %v4879, %v4765
      %v4912 = vadd.f32 %v4880, %v4768
      %v4913 = vadd.f32 %v4881, %v4773
      %v4914 = vadd.f32 %v4882, %v4776
      %v4915 = vadd.f32 %v4883, %v4781
      %v4916 = vadd.f32 %v4884, %v4784
      %v4917 = vadd.f32 %v4885, %v4789
      %v4918 = vadd.f32 %v4886, %v4792
      %v4919 = vadd.f32 %v4887, %v4797
      %v4920 = vadd.f32 %v4888, %v4800
      %v4921 = vadd.f32 %v4889, %v4805
      %v4922 = vadd.f32 %v4890, %v4808
      %v4923 = vadd.f32 %v4891, %v4813
      %v4924 = vadd.f32 %v4892, %v4816
      %v4925 = vadd.f32 %v4893, %v4821
      %v4926 = vadd.f32 %v4894, %v4824
      %v4927 = vadd.f32 %v4895, %v4829
      %v4928 = vadd.f32 %v4896, %v4832
      %v4929 = vadd.f32 %v4897, %v4837
      %v4930 = vadd.f32 %v4898, %v4840
      %v4931 = vadd.f32 %v4899, %v4845
      %v4932 = vadd.f32 %v4900, %v4848
      %v4933 = vadd.f32 %v4901, %v4853
      %v4934 = vadd.f32 %v4902, %v4856
      %v4935 = vadd.f32 %v4903, %v4861
      %v4936 = vadd.f32 %v4904, %v4864
      %v4937 = vadd.f32 %v4905, %v4869
      %v4938 = vadd.f32 %v4906, %v4872
      %4939 = vst.msk [vmem:[%s238] sm:$0xff] %vm365, %v4907
      %4940 = vst.msk [vmem:[%s238 + $0x8] sm:$0xff] %vm365, %v4908
      %4941 = vst.msk [vmem:[%s238 + $0x10] sm:$0xff] %vm365, %v4909
      %4942 = vst.msk [vmem:[%s238 + $0x18] sm:$0xff] %vm365, %v4910
      %4943 = vst.msk [vmem:[%s238 + $0x20] sm:$0xff] %vm365, %v4911
      %4944 = vst.msk [vmem:[%s238 + $0x28] sm:$0xff] %vm365, %v4912
      %4945 = vst.msk [vmem:[%s238 + $0x30] sm:$0xff] %vm365, %v4913
      %4946 = vst.msk [vmem:[%s238 + $0x38] sm:$0xff] %vm365, %v4914
      %4947 = vst.msk [vmem:[%s238 + $0x40] sm:$0xff] %vm365, %v4915
      %4948 = vst.msk [vmem:[%s238 + $0x48] sm:$0xff] %vm365, %v4916
      %4949 = vst.msk [vmem:[%s238 + $0x50] sm:$0xff] %vm365, %v4917
      %4950 = vst.msk [vmem:[%s238 + $0x58] sm:$0xff] %vm365, %v4918
      %4951 = vst.msk [vmem:[%s238 + $0x60] sm:$0xff] %vm365, %v4919
      %4952 = vst.msk [vmem:[%s238 + $0x68] sm:$0xff] %vm365, %v4920
      %4953 = vst.msk [vmem:[%s238 + $0x70] sm:$0xff] %vm365, %v4921
      %4954 = vst.msk [vmem:[%s238 + $0x78] sm:$0xff] %vm365, %v4922
      %4955 = vst.msk [vmem:[%s238 + $0x80] sm:$0xff] %vm365, %v4923
      %4956 = vst.msk [vmem:[%s238 + $0x88] sm:$0xff] %vm365, %v4924
      %4957 = vst.msk [vmem:[%s238 + $0x90] sm:$0xff] %vm365, %v4925
      %4958 = vst.msk [vmem:[%s238 + $0x98] sm:$0xff] %vm365, %v4926
      %4959 = vst.msk [vmem:[%s238 + $0xa0] sm:$0xff] %vm365, %v4927
      %4960 = vst.msk [vmem:[%s238 + $0xa8] sm:$0xff] %vm365, %v4928
      %4961 = vst.msk [vmem:[%s238 + $0xb0] sm:$0xff] %vm365, %v4929
      %4962 = vst.msk [vmem:[%s238 + $0xb8] sm:$0xff] %vm365, %v4930
      %4963 = vst.msk [vmem:[%s238 + $0xc0] sm:$0xff] %vm365, %v4931
      %4964 = vst.msk [vmem:[%s238 + $0xc8] sm:$0xff] %vm365, %v4932
      %4965 = vst.msk [vmem:[%s238 + $0xd0] sm:$0xff] %vm365, %v4933
      %4966 = vst.msk [vmem:[%s238 + $0xd8] sm:$0xff] %vm365, %v4934
      %4967 = vst.msk [vmem:[%s238 + $0xe0] sm:$0xff] %vm365, %v4935
      %4968 = vst.msk [vmem:[%s238 + $0xe8] sm:$0xff] %vm365, %v4936
      %4969 = vst.msk [vmem:[%s238 + $0xf0] sm:$0xff] %vm365, %v4937
      %4970 = vst.msk [vmem:[%s238 + $0xf8] sm:$0xff] %vm365, %v4938
      %v4971 = vld [vmem:[%s3758] sm:$0xe]
      %v4972 = vld [vmem:[%s3758 + $0x4] sm:$0xf]
      %v4973 = vld [vmem:[%s3758 + $0x8] sm:$0x1]
      %v4974 = vld [vmem:[%s3758 + $0xc] sm:$0xe]
      %v4975 = vld [vmem:[%s3758 + $0x10] sm:$0xf]
      %v4976 = vld [vmem:[%s3758 + $0x14] sm:$0x1]
      %v4977 = vld [vmem:[%s3758 + $0x18] sm:$0xe]
      %v4978 = vld [vmem:[%s3758 + $0x1c] sm:$0xf]
      %v4979 = vld [vmem:[%s3758 + $0x20] sm:$0x1]
      %v4980 = vld [vmem:[%s3758 + $0x24] sm:$0xe]
      %v4981 = vld [vmem:[%s3758 + $0x28] sm:$0xf]
      %v4982 = vld [vmem:[%s3758 + $0x2c] sm:$0x1]
      %v4983 = vld [vmem:[%s3758 + $0x30] sm:$0xe]
      %v4984 = vld [vmem:[%s3758 + $0x34] sm:$0xf]
      %v4985 = vld [vmem:[%s3758 + $0x38] sm:$0x1]
      %v4986 = vld [vmem:[%s3758 + $0x3c] sm:$0xe]
      %v4987 = vld [vmem:[%s3758 + $0x40] sm:$0xf]
      %v4988 = vld [vmem:[%s3758 + $0x44] sm:$0x1]
      %v4989 = vld [vmem:[%s3758 + $0x48] sm:$0xe]
      %v4990 = vld [vmem:[%s3758 + $0x4c] sm:$0xf]
      %v4991 = vld [vmem:[%s3758 + $0x50] sm:$0x1]
      %v4992 = vld [vmem:[%s3758 + $0x54] sm:$0xe]
      %v4993 = vld [vmem:[%s3758 + $0x58] sm:$0xf]
      %v4994 = vld [vmem:[%s3758 + $0x5c] sm:$0x1]
      %v4995 = vld [vmem:[%s3758 + $0x60] sm:$0xe]
      %v4996 = vld [vmem:[%s3758 + $0x64] sm:$0xf]
      %v4997 = vld [vmem:[%s3758 + $0x68] sm:$0x1]
      %v4998 = vld [vmem:[%s3758 + $0x6c] sm:$0xe]
      %v4999 = vld [vmem:[%s3758 + $0x70] sm:$0xf]
      %v5000 = vld [vmem:[%s3758 + $0x74] sm:$0x1]
      %v5001 = vld [vmem:[%s3758 + $0x78] sm:$0xe]
      %v5002 = vld [vmem:[%s3758 + $0x7c] sm:$0xf]
      %v5003 = vld [vmem:[%s3758 + $0x80] sm:$0x1]
      %v5004 = vld [vmem:[%s3758 + $0x84] sm:$0xe]
      %v5005 = vld [vmem:[%s3758 + $0x88] sm:$0xf]
      %v5006 = vld [vmem:[%s3758 + $0x8c] sm:$0x1]
      %v5007 = vld [vmem:[%s3758 + $0x90] sm:$0xe]
      %v5008 = vld [vmem:[%s3758 + $0x94] sm:$0xf]
      %v5009 = vld [vmem:[%s3758 + $0x98] sm:$0x1]
      %v5010 = vld [vmem:[%s3758 + $0x9c] sm:$0xe]
      %v5011 = vld [vmem:[%s3758 + $0xa0] sm:$0xf]
      %v5012 = vld [vmem:[%s3758 + $0xa4] sm:$0x1]
      %v5013 = vld [vmem:[%s3758 + $0xa8] sm:$0xe]
      %v5014 = vld [vmem:[%s3758 + $0xac] sm:$0xf]
      %v5015 = vld [vmem:[%s3758 + $0xb0] sm:$0x1]
      %v5016 = vld [vmem:[%s3758 + $0xb4] sm:$0xe]
      %v5017 = vld [vmem:[%s3758 + $0xb8] sm:$0xf]
      %v5018 = vld [vmem:[%s3758 + $0xbc] sm:$0x1]
      %v5067 = vrot.slane %v4971, 5
      %v5068 = vrot.slane %v5067, 4
      %v5069 = vrot.slane %v4972, 5
      %v5070 = vsel %vm1502, %v5068, %v5069
      %v5071 = vrot.slane %v5069, 4
      %v5072 = vrot.slane %v4973, 5
      %v5073 = vsel %vm1502, %v5071, %v5072
      %v5074 = vrot.slane %v4974, 5
      %v5075 = vrot.slane %v5074, 4
      %v5076 = vrot.slane %v4975, 5
      %v5077 = vsel %vm1502, %v5075, %v5076
      %v5078 = vrot.slane %v5076, 4
      %v5079 = vrot.slane %v4976, 5
      %v5080 = vsel %vm1502, %v5078, %v5079
      %v5081 = vrot.slane %v4977, 5
      %v5082 = vrot.slane %v5081, 4
      %v5083 = vrot.slane %v4978, 5
      %v5084 = vsel %vm1502, %v5082, %v5083
      %v5085 = vrot.slane %v5083, 4
      %v5086 = vrot.slane %v4979, 5
      %v5087 = vsel %vm1502, %v5085, %v5086
      %v5088 = vrot.slane %v4980, 5
      %v5089 = vrot.slane %v5088, 4
      %v5090 = vrot.slane %v4981, 5
      %v5091 = vsel %vm1502, %v5089, %v5090
      %v5092 = vrot.slane %v5090, 4
      %v5093 = vrot.slane %v4982, 5
      %v5094 = vsel %vm1502, %v5092, %v5093
      %v5095 = vrot.slane %v4983, 5
      %v5096 = vrot.slane %v5095, 4
      %v5097 = vrot.slane %v4984, 5
      %v5098 = vsel %vm1502, %v5096, %v5097
      %v5099 = vrot.slane %v5097, 4
      %v5100 = vrot.slane %v4985, 5
      %v5101 = vsel %vm1502, %v5099, %v5100
      %v5102 = vrot.slane %v4986, 5
      %v5103 = vrot.slane %v5102, 4
      %v5104 = vrot.slane %v4987, 5
      %v5105 = vsel %vm1502, %v5103, %v5104
      %v5106 = vrot.slane %v5104, 4
      %v5107 = vrot.slane %v4988, 5
      %v5108 = vsel %vm1502, %v5106, %v5107
      %v5109 = vrot.slane %v4989, 5
      %v5110 = vrot.slane %v5109, 4
      %v5111 = vrot.slane %v4990, 5
      %v5112 = vsel %vm1502, %v5110, %v5111
      %v5113 = vrot.slane %v5111, 4
      %v5114 = vrot.slane %v4991, 5
      %v5115 = vsel %vm1502, %v5113, %v5114
      %v5116 = vrot.slane %v4992, 5
      %v5117 = vrot.slane %v5116, 4
      %v5118 = vrot.slane %v4993, 5
      %v5119 = vsel %vm1502, %v5117, %v5118
      %v5120 = vrot.slane %v5118, 4
      %v5121 = vrot.slane %v4994, 5
      %v5122 = vsel %vm1502, %v5120, %v5121
      %v5123 = vrot.slane %v4995, 5
      %v5124 = vrot.slane %v5123, 4
      %v5125 = vrot.slane %v4996, 5
      %v5126 = vsel %vm1502, %v5124, %v5125
      %v5127 = vrot.slane %v5125, 4
      %v5128 = vrot.slane %v4997, 5
      %v5129 = vsel %vm1502, %v5127, %v5128
      %v5130 = vrot.slane %v4998, 5
      %v5131 = vrot.slane %v5130, 4
      %v5132 = vrot.slane %v4999, 5
      %v5133 = vsel %vm1502, %v5131, %v5132
      %v5134 = vrot.slane %v5132, 4
      %v5135 = vrot.slane %v5000, 5
      %v5136 = vsel %vm1502, %v5134, %v5135
      %v5137 = vrot.slane %v5001, 5
      %v5138 = vrot.slane %v5137, 4
      %v5139 = vrot.slane %v5002, 5
      %v5140 = vsel %vm1502, %v5138, %v5139
      %v5141 = vrot.slane %v5139, 4
      %v5142 = vrot.slane %v5003, 5
      %v5143 = vsel %vm1502, %v5141, %v5142
      %v5144 = vrot.slane %v5004, 5
      %v5145 = vrot.slane %v5144, 4
      %v5146 = vrot.slane %v5005, 5
      %v5147 = vsel %vm1502, %v5145, %v5146
      %v5148 = vrot.slane %v5146, 4
      %v5149 = vrot.slane %v5006, 5
      %v5150 = vsel %vm1502, %v5148, %v5149
      %v5151 = vrot.slane %v5007, 5
      %v5152 = vrot.slane %v5151, 4
      %v5153 = vrot.slane %v5008, 5
      %v5154 = vsel %vm1502, %v5152, %v5153
      %v5155 = vrot.slane %v5153, 4
      %v5156 = vrot.slane %v5009, 5
      %v5157 = vsel %vm1502, %v5155, %v5156
      %v5158 = vrot.slane %v5010, 5
      %v5159 = vrot.slane %v5158, 4
      %v5160 = vrot.slane %v5011, 5
      %v5161 = vsel %vm1502, %v5159, %v5160
      %v5162 = vrot.slane %v5160, 4
      %v5163 = vrot.slane %v5012, 5
      %v5164 = vsel %vm1502, %v5162, %v5163
      %v5165 = vrot.slane %v5013, 5
      %v5166 = vrot.slane %v5165, 4
      %v5167 = vrot.slane %v5014, 5
      %v5168 = vsel %vm1502, %v5166, %v5167
      %v5169 = vrot.slane %v5167, 4
      %v5170 = vrot.slane %v5015, 5
      %v5171 = vsel %vm1502, %v5169, %v5170
      %v5172 = vrot.slane %v5016, 5
      %v5173 = vrot.slane %v5172, 4
      %v5174 = vrot.slane %v5017, 5
      %v5175 = vsel %vm1502, %v5173, %v5174
      %v5176 = vrot.slane %v5174, 4
      %v5177 = vrot.slane %v5018, 5
      %v5178 = vsel %vm1502, %v5176, %v5177
      %s5179 = scalar_lea.vmem %s223, 16
      %v5180 = vld [vmem:[%s5179] sm:$0x3]
      %v5181 = vunpack.c.l.b16 %v5070
      %v5182 = vunpack.c.l.b16 %v5073
      %v5183 = vunpack.c.l.b16 %v5077
      %v5184 = vunpack.c.l.b16 %v5080
      %v5185 = vunpack.c.l.b16 %v5084
      %v5186 = vunpack.c.l.b16 %v5087
      %v5187 = vunpack.c.l.b16 %v5091
      %v5188 = vunpack.c.l.b16 %v5094
      %v5189 = vunpack.c.l.b16 %v5098
      %v5190 = vunpack.c.l.b16 %v5101
      %v5191 = vunpack.c.l.b16 %v5105
      %v5192 = vunpack.c.l.b16 %v5108
      %v5193 = vunpack.c.l.b16 %v5112
      %v5194 = vunpack.c.l.b16 %v5115
      %v5195 = vunpack.c.l.b16 %v5119
      %v5196 = vunpack.c.l.b16 %v5122
      %v5197 = vunpack.c.l.b16 %v5126
      %v5198 = vunpack.c.l.b16 %v5129
      %v5199 = vunpack.c.l.b16 %v5133
      %v5200 = vunpack.c.l.b16 %v5136
      %v5201 = vunpack.c.l.b16 %v5140
      %v5202 = vunpack.c.l.b16 %v5143
      %v5203 = vunpack.c.l.b16 %v5147
      %v5204 = vunpack.c.l.b16 %v5150
      %v5205 = vunpack.c.l.b16 %v5154
      %v5206 = vunpack.c.l.b16 %v5157
      %v5207 = vunpack.c.l.b16 %v5161
      %v5208 = vunpack.c.l.b16 %v5164
      %v5209 = vunpack.c.l.b16 %v5168
      %v5210 = vunpack.c.l.b16 %v5171
      %v5211 = vunpack.c.l.b16 %v5175
      %v5212 = vunpack.c.l.b16 %v5178
      %v5213 = vpack.c.b16 %v5182, %v5181
      %v5214 = vpack.c.b16 %v5184, %v5183
      %v5215 = vpack.c.b16 %v5186, %v5185
      %v5216 = vpack.c.b16 %v5188, %v5187
      %v5217 = vpack.c.b16 %v5190, %v5189
      %v5218 = vpack.c.b16 %v5192, %v5191
      %v5219 = vpack.c.b16 %v5194, %v5193
      %v5220 = vpack.c.b16 %v5196, %v5195
      %v5221 = vpack.c.b16 %v5198, %v5197
      %v5222 = vpack.c.b16 %v5200, %v5199
      %v5223 = vpack.c.b16 %v5202, %v5201
      %v5224 = vpack.c.b16 %v5204, %v5203
      %v5225 = vpack.c.b16 %v5206, %v5205
      %v5226 = vpack.c.b16 %v5208, %v5207
      %v5227 = vpack.c.b16 %v5210, %v5209
      %v5228 = vpack.c.b16 %v5212, %v5211
      %v5230 = vsel %vm365, %v5213, 0
      %v5233 = vsel %vm365, %v5214, 0
      %v5236 = vsel %vm365, %v5215, 0
      %v5239 = vsel %vm365, %v5216, 0
      %v5242 = vsel %vm365, %v5217, 0
      %v5245 = vsel %vm365, %v5218, 0
      %v5248 = vsel %vm365, %v5219, 0
      %v5251 = vsel %vm365, %v5220, 0
      %v5254 = vsel %vm365, %v5221, 0
      %v5257 = vsel %vm365, %v5222, 0
      %v5260 = vsel %vm365, %v5223, 0
      %v5263 = vsel %vm365, %v5224, 0
      %v5266 = vsel %vm365, %v5225, 0
      %v5269 = vsel %vm365, %v5226, 0
      %v5272 = vsel %vm365, %v5227, 0
      %v5275 = vsel %vm365, %v5228, 0
      %v5278 = vsel %vm414, %v5180, 0
      %5280 = vmatprep.subr.bf16.mxu0 0
      %5281 = vmatpush1.bf16.msra.mxu0 0
      %5282 = vmatprep.subr.bf16.mxu0 0
      %5283 = vmatpush1.bf16.msra.mxu0 0
      %5284 = vmatprep.subr.bf16.mxu0 0
      %5285 = vmatpush1.bf16.msra.mxu0 0
      %5286 = vmatprep.subr.bf16.mxu0 0
      %5287 = vmatpush1.bf16.msra.mxu0 0
      %5288 = vmatprep.subr.bf16.mxu0 0
      %5289 = vmatpush1.bf16.msra.mxu0 0
      %5290 = vmatprep.subr.bf16.mxu0 0
      %5291 = vmatpush1.bf16.msra.mxu0 0
      %5292 = vmatprep.subr.bf16.mxu0 0
      %5293 = vmatpush1.bf16.msra.mxu0 0
      %5294 = vmatprep.subr.bf16.mxu0 0
      %5295 = vmatpush1.bf16.msra.mxu0 %v5278
      %5296 = vmatprep.subr.bf16.mxu0 0
      %5297 = vmatpush2.bf16.msra.mxu0 0
      %5298 = vmatprep.subr.bf16.mxu0 0
      %5299 = vmatpush2.bf16.msra.mxu0 0
      %5300 = vmatprep.subr.bf16.mxu0 0
      %5301 = vmatpush2.bf16.msra.mxu0 0
      %5302 = vmatprep.subr.bf16.mxu0 0
      %5303 = vmatpush2.bf16.msra.mxu0 0
      %5304 = vmatprep.subr.bf16.mxu0 0
      %5305 = vmatpush2.bf16.msra.mxu0 0
      %5306 = vmatprep.subr.bf16.mxu0 0
      %5307 = vmatpush2.bf16.msra.mxu0 0
      %5308 = vmatprep.subr.bf16.mxu0 0
      %5309 = vmatpush2.bf16.msra.mxu0 0
      %5310 = vmatprep.subr.bf16.mxu0 0
      %5311 = vmatpush2.bf16.msra.mxu0 0
      %5312 = vmatprep.mubr.bf16.mxu0 0
      %5313 = vmatmul.mubr.bf16.gmra.mxu0 %v5230
      %v5314 = vpop.f32.mrf.mxu0
      %v5315 = vadd.f32 0.0, %v5314
      %v5316 = vpop.f32.mrf.mxu0
      %v5317 = vpop.f32.mrf.mxu0
      %v5318 = vadd.f32 0.0, %v5317
      %v5319 = vpop.f32.mrf.mxu0
      %5320 = vmatprep.mubr.bf16.mxu0 0
      %5321 = vmatmul.mubr.bf16.gmra.mxu0 %v5233
      %v5322 = vpop.f32.mrf.mxu0
      %v5323 = vadd.f32 0.0, %v5322
      %v5324 = vpop.f32.mrf.mxu0
      %v5325 = vpop.f32.mrf.mxu0
      %v5326 = vadd.f32 0.0, %v5325
      %v5327 = vpop.f32.mrf.mxu0
      %5328 = vmatprep.mubr.bf16.mxu0 0
      %5329 = vmatmul.mubr.bf16.gmra.mxu0 %v5236
      %v5330 = vpop.f32.mrf.mxu0
      %v5331 = vadd.f32 0.0, %v5330
      %v5332 = vpop.f32.mrf.mxu0
      %v5333 = vpop.f32.mrf.mxu0
      %v5334 = vadd.f32 0.0, %v5333
      %v5335 = vpop.f32.mrf.mxu0
      %5336 = vmatprep.mubr.bf16.mxu0 0
      %5337 = vmatmul.mubr.bf16.gmra.mxu0 %v5239
      %v5338 = vpop.f32.mrf.mxu0
      %v5339 = vadd.f32 0.0, %v5338
      %v5340 = vpop.f32.mrf.mxu0
      %v5341 = vpop.f32.mrf.mxu0
      %v5342 = vadd.f32 0.0, %v5341
      %v5343 = vpop.f32.mrf.mxu0
      %5344 = vmatprep.mubr.bf16.mxu0 0
      %5345 = vmatmul.mubr.bf16.gmra.mxu0 %v5242
      %v5346 = vpop.f32.mrf.mxu0
      %v5347 = vadd.f32 0.0, %v5346
      %v5348 = vpop.f32.mrf.mxu0
      %v5349 = vpop.f32.mrf.mxu0
      %v5350 = vadd.f32 0.0, %v5349
      %v5351 = vpop.f32.mrf.mxu0
      %5352 = vmatprep.mubr.bf16.mxu0 0
      %5353 = vmatmul.mubr.bf16.gmra.mxu0 %v5245
      %v5354 = vpop.f32.mrf.mxu0
      %v5355 = vadd.f32 0.0, %v5354
      %v5356 = vpop.f32.mrf.mxu0
      %v5357 = vpop.f32.mrf.mxu0
      %v5358 = vadd.f32 0.0, %v5357
      %v5359 = vpop.f32.mrf.mxu0
      %5360 = vmatprep.mubr.bf16.mxu0 0
      %5361 = vmatmul.mubr.bf16.gmra.mxu0 %v5248
      %v5362 = vpop.f32.mrf.mxu0
      %v5363 = vadd.f32 0.0, %v5362
      %v5364 = vpop.f32.mrf.mxu0
      %v5365 = vpop.f32.mrf.mxu0
      %v5366 = vadd.f32 0.0, %v5365
      %v5367 = vpop.f32.mrf.mxu0
      %5368 = vmatprep.mubr.bf16.mxu0 0
      %5369 = vmatmul.mubr.bf16.gmra.mxu0 %v5251
      %v5370 = vpop.f32.mrf.mxu0
      %v5371 = vadd.f32 0.0, %v5370
      %v5372 = vpop.f32.mrf.mxu0
      %v5373 = vpop.f32.mrf.mxu0
      %v5374 = vadd.f32 0.0, %v5373
      %v5375 = vpop.f32.mrf.mxu0
      %5376 = vmatprep.mubr.bf16.mxu0 0
      %5377 = vmatmul.mubr.bf16.gmra.mxu0 %v5254
      %v5378 = vpop.f32.mrf.mxu0
      %v5379 = vadd.f32 0.0, %v5378
      %v5380 = vpop.f32.mrf.mxu0
      %v5381 = vpop.f32.mrf.mxu0
      %v5382 = vadd.f32 0.0, %v5381
      %v5383 = vpop.f32.mrf.mxu0
      %5384 = vmatprep.mubr.bf16.mxu0 0
      %5385 = vmatmul.mubr.bf16.gmra.mxu0 %v5257
      %v5386 = vpop.f32.mrf.mxu0
      %v5387 = vadd.f32 0.0, %v5386
      %v5388 = vpop.f32.mrf.mxu0
      %v5389 = vpop.f32.mrf.mxu0
      %v5390 = vadd.f32 0.0, %v5389
      %v5391 = vpop.f32.mrf.mxu0
      %5392 = vmatprep.mubr.bf16.mxu0 0
      %5393 = vmatmul.mubr.bf16.gmra.mxu0 %v5260
      %v5394 = vpop.f32.mrf.mxu0
      %v5395 = vadd.f32 0.0, %v5394
      %v5396 = vpop.f32.mrf.mxu0
      %v5397 = vpop.f32.mrf.mxu0
      %v5398 = vadd.f32 0.0, %v5397
      %v5399 = vpop.f32.mrf.mxu0
      %5400 = vmatprep.mubr.bf16.mxu0 0
      %5401 = vmatmul.mubr.bf16.gmra.mxu0 %v5263
      %v5402 = vpop.f32.mrf.mxu0
      %v5403 = vadd.f32 0.0, %v5402
      %v5404 = vpop.f32.mrf.mxu0
      %v5405 = vpop.f32.mrf.mxu0
      %v5406 = vadd.f32 0.0, %v5405
      %v5407 = vpop.f32.mrf.mxu0
      %5408 = vmatprep.mubr.bf16.mxu0 0
      %5409 = vmatmul.mubr.bf16.gmra.mxu0 %v5266
      %v5410 = vpop.f32.mrf.mxu0
      %v5411 = vadd.f32 0.0, %v5410
      %v5412 = vpop.f32.mrf.mxu0
      %v5413 = vpop.f32.mrf.mxu0
      %v5414 = vadd.f32 0.0, %v5413
      %v5415 = vpop.f32.mrf.mxu0
      %5416 = vmatprep.mubr.bf16.mxu0 0
      %5417 = vmatmul.mubr.bf16.gmra.mxu0 %v5269
      %v5418 = vpop.f32.mrf.mxu0
      %v5419 = vadd.f32 0.0, %v5418
      %v5420 = vpop.f32.mrf.mxu0
      %v5421 = vpop.f32.mrf.mxu0
      %v5422 = vadd.f32 0.0, %v5421
      %v5423 = vpop.f32.mrf.mxu0
      %5424 = vmatprep.mubr.bf16.mxu0 0
      %5425 = vmatmul.mubr.bf16.gmra.mxu0 %v5272
      %v5426 = vpop.f32.mrf.mxu0
      %v5427 = vadd.f32 0.0, %v5426
      %v5428 = vpop.f32.mrf.mxu0
      %v5429 = vpop.f32.mrf.mxu0
      %v5430 = vadd.f32 0.0, %v5429
      %v5431 = vpop.f32.mrf.mxu0
      %5432 = vmatprep.mubr.bf16.mxu0 0
      %5433 = vmatmul.mubr.bf16.gmra.mxu0 %v5275
      %v5434 = vpop.f32.mrf.mxu0
      %v5435 = vadd.f32 0.0, %v5434
      %v5436 = vpop.f32.mrf.mxu0
      %v5437 = vpop.f32.mrf.mxu0
      %v5438 = vadd.f32 0.0, %v5437
      %v5439 = vpop.f32.mrf.mxu0
      %5440 = vdwg.mxu0
      %v5441 = vld [vmem:[%s238] sm:$0xff]
      %v5442 = vld [vmem:[%s238 + $0x8] sm:$0xff]
      %v5443 = vld [vmem:[%s238 + $0x10] sm:$0xff]
      %v5444 = vld [vmem:[%s238 + $0x18] sm:$0xff]
      %v5445 = vld [vmem:[%s238 + $0x20] sm:$0xff]
      %v5446 = vld [vmem:[%s238 + $0x28] sm:$0xff]
      %v5447 = vld [vmem:[%s238 + $0x30] sm:$0xff]
      %v5448 = vld [vmem:[%s238 + $0x38] sm:$0xff]
      %v5449 = vld [vmem:[%s238 + $0x40] sm:$0xff]
      %v5450 = vld [vmem:[%s238 + $0x48] sm:$0xff]
      %v5451 = vld [vmem:[%s238 + $0x50] sm:$0xff]
      %v5452 = vld [vmem:[%s238 + $0x58] sm:$0xff]
      %v5453 = vld [vmem:[%s238 + $0x60] sm:$0xff]
      %v5454 = vld [vmem:[%s238 + $0x68] sm:$0xff]
      %v5455 = vld [vmem:[%s238 + $0x70] sm:$0xff]
      %v5456 = vld [vmem:[%s238 + $0x78] sm:$0xff]
      %v5457 = vld [vmem:[%s238 + $0x80] sm:$0xff]
      %v5458 = vld [vmem:[%s238 + $0x88] sm:$0xff]
      %v5459 = vld [vmem:[%s238 + $0x90] sm:$0xff]
      %v5460 = vld [vmem:[%s238 + $0x98] sm:$0xff]
      %v5461 = vld [vmem:[%s238 + $0xa0] sm:$0xff]
      %v5462 = vld [vmem:[%s238 + $0xa8] sm:$0xff]
      %v5463 = vld [vmem:[%s238 + $0xb0] sm:$0xff]
      %v5464 = vld [vmem:[%s238 + $0xb8] sm:$0xff]
      %v5465 = vld [vmem:[%s238 + $0xc0] sm:$0xff]
      %v5466 = vld [vmem:[%s238 + $0xc8] sm:$0xff]
      %v5467 = vld [vmem:[%s238 + $0xd0] sm:$0xff]
      %v5468 = vld [vmem:[%s238 + $0xd8] sm:$0xff]
      %v5469 = vld [vmem:[%s238 + $0xe0] sm:$0xff]
      %v5470 = vld [vmem:[%s238 + $0xe8] sm:$0xff]
      %v5471 = vld [vmem:[%s238 + $0xf0] sm:$0xff]
      %v5472 = vld [vmem:[%s238 + $0xf8] sm:$0xff]
      %v5473 = vadd.f32 %v5441, %v5315
      %v5474 = vadd.f32 %v5442, %v5318
      %v5475 = vadd.f32 %v5443, %v5323
      %v5476 = vadd.f32 %v5444, %v5326
      %v5477 = vadd.f32 %v5445, %v5331
      %v5478 = vadd.f32 %v5446, %v5334
      %v5479 = vadd.f32 %v5447, %v5339
      %v5480 = vadd.f32 %v5448, %v5342
      %v5481 = vadd.f32 %v5449, %v5347
      %v5482 = vadd.f32 %v5450, %v5350
      %v5483 = vadd.f32 %v5451, %v5355
      %v5484 = vadd.f32 %v5452, %v5358
      %v5485 = vadd.f32 %v5453, %v5363
      %v5486 = vadd.f32 %v5454, %v5366
      %v5487 = vadd.f32 %v5455, %v5371
      %v5488 = vadd.f32 %v5456, %v5374
      %v5489 = vadd.f32 %v5457, %v5379
      %v5490 = vadd.f32 %v5458, %v5382
      %v5491 = vadd.f32 %v5459, %v5387
      %v5492 = vadd.f32 %v5460, %v5390
      %v5493 = vadd.f32 %v5461, %v5395
      %v5494 = vadd.f32 %v5462, %v5398
      %v5495 = vadd.f32 %v5463, %v5403
      %v5496 = vadd.f32 %v5464, %v5406
      %v5497 = vadd.f32 %v5465, %v5411
      %v5498 = vadd.f32 %v5466, %v5414
      %v5499 = vadd.f32 %v5467, %v5419
      %v5500 = vadd.f32 %v5468, %v5422
      %v5501 = vadd.f32 %v5469, %v5427
      %v5502 = vadd.f32 %v5470, %v5430
      %v5503 = vadd.f32 %v5471, %v5435
      %v5504 = vadd.f32 %v5472, %v5438
      %5505 = vst.msk [vmem:[%s238] sm:$0xff] %vm365, %v5473
      %5506 = vst.msk [vmem:[%s238 + $0x8] sm:$0xff] %vm365, %v5474
      %5507 = vst.msk [vmem:[%s238 + $0x10] sm:$0xff] %vm365, %v5475
      %5508 = vst.msk [vmem:[%s238 + $0x18] sm:$0xff] %vm365, %v5476
      %5509 = vst.msk [vmem:[%s238 + $0x20] sm:$0xff] %vm365, %v5477
      %5510 = vst.msk [vmem:[%s238 + $0x28] sm:$0xff] %vm365, %v5478
      %5511 = vst.msk [vmem:[%s238 + $0x30] sm:$0xff] %vm365, %v5479
      %5512 = vst.msk [vmem:[%s238 + $0x38] sm:$0xff] %vm365, %v5480
      %5513 = vst.msk [vmem:[%s238 + $0x40] sm:$0xff] %vm365, %v5481
      %5514 = vst.msk [vmem:[%s238 + $0x48] sm:$0xff] %vm365, %v5482
      %5515 = vst.msk [vmem:[%s238 + $0x50] sm:$0xff] %vm365, %v5483
      %5516 = vst.msk [vmem:[%s238 + $0x58] sm:$0xff] %vm365, %v5484
      %5517 = vst.msk [vmem:[%s238 + $0x60] sm:$0xff] %vm365, %v5485
      %5518 = vst.msk [vmem:[%s238 + $0x68] sm:$0xff] %vm365, %v5486
      %5519 = vst.msk [vmem:[%s238 + $0x70] sm:$0xff] %vm365, %v5487
      %5520 = vst.msk [vmem:[%s238 + $0x78] sm:$0xff] %vm365, %v5488
      %5521 = vst.msk [vmem:[%s238 + $0x80] sm:$0xff] %vm365, %v5489
      %5522 = vst.msk [vmem:[%s238 + $0x88] sm:$0xff] %vm365, %v5490
      %5523 = vst.msk [vmem:[%s238 + $0x90] sm:$0xff] %vm365, %v5491
      %5524 = vst.msk [vmem:[%s238 + $0x98] sm:$0xff] %vm365, %v5492
      %5525 = vst.msk [vmem:[%s238 + $0xa0] sm:$0xff] %vm365, %v5493
      %5526 = vst.msk [vmem:[%s238 + $0xa8] sm:$0xff] %vm365, %v5494
      %5527 = vst.msk [vmem:[%s238 + $0xb0] sm:$0xff] %vm365, %v5495
      %5528 = vst.msk [vmem:[%s238 + $0xb8] sm:$0xff] %vm365, %v5496
      %5529 = vst.msk [vmem:[%s238 + $0xc0] sm:$0xff] %vm365, %v5497
      %5530 = vst.msk [vmem:[%s238 + $0xc8] sm:$0xff] %vm365, %v5498
      %5531 = vst.msk [vmem:[%s238 + $0xd0] sm:$0xff] %vm365, %v5499
      %5532 = vst.msk [vmem:[%s238 + $0xd8] sm:$0xff] %vm365, %v5500
      %5533 = vst.msk [vmem:[%s238 + $0xe0] sm:$0xff] %vm365, %v5501
      %5534 = vst.msk [vmem:[%s238 + $0xe8] sm:$0xff] %vm365, %v5502
      %5535 = vst.msk [vmem:[%s238 + $0xf0] sm:$0xff] %vm365, %v5503
      %5536 = vst.msk [vmem:[%s238 + $0xf8] sm:$0xff] %vm365, %v5504
      %s5537 = smul.u32 32, %s21
      %p5538 = scmp.lt.s32.totalorder %s19, 1
      %s5539 = scalar_select %p5538, %s19, 1
      %p5540 = scmp.lt.s32.totalorder %s5537, 31
      %s5541 = scalar_select %p5540, %s5537, 31
      %p5542 = scmp.lt.s32.totalorder %s20, 0
      %s5543 = scalar_select %p5542, %s20, 0
      %s5544 = sadd.s32 %s5543, %s5541
      %s5545 = smul.addr %s5539, 32
      %s5546 = sadd.s32 %s5544, %s5545
      %s5547 = smul.addr %s5546, 8
      %s5548 = scalar_lea.vmem %s3, %s5547
      // Predicated region
      $region33: #{asff_forward.3} parent=31 // pred_check
        %p5549 = pneg %p133
      $region34: #{asff_forward.3} parent=31 // pred_check_branch
        %5551 = sbr.rel (%p5549) target = $region36
      $region35: #{asff_forward.3} parent=31 // pred_region
        %s5552 = smul.u32 32, %s21
      $region36: #{asff_forward.3} parent=31 // pred_fallthru
        _
    $region32: #{asff_forward.3} parent=5 // pred_fallthru
      _
    %p5553 = scmp.le.s32.totalorder 2, %s9
    // Predicated region
    $region37: #{asff_forward.3} parent=5 // pred_check
      %p5554 = pneg %p5553
    $region38: #{asff_forward.3} parent=5 // pred_check_branch
      %5556 = sbr.rel (%p5554) target = $region40
    $region39: #{asff_forward.3} parent=5 // pred_region
      %s5557 = ssub.s32 %s9, 2
      // Predicated region
      $region41: #{asff_forward.3} parent=39 // pred_check
        %p5558 = pneg %p139
      $region42: #{asff_forward.3} parent=39 // pred_check_branch
        %5560 = sbr.rel (%p5558) target = $region44
      $region43: #{asff_forward.3} parent=39 // pred_region
        %s5561 = smul.u32 32, %s24
        %p5562 = scmp.lt.s32.totalorder %s22, 1
        %s5563 = scalar_select %p5562, %s22, 1
        %p5564 = scmp.lt.s32.totalorder %s5561, 31
        %s5565 = scalar_select %p5564, %s5561, 31
        %p5566 = scmp.lt.s32.totalorder %s23, 0
        %s5567 = scalar_select %p5566, %s23, 0
        %s5568 = sadd.s32 %s5567, %s5565
        %s5569 = smul.addr %s5563, 32
        %s5570 = sadd.s32 %s5568, %s5569
        %s5571 = smul.addr %s5570, 8
        %s5572 = scalar_lea.vmem %s3, %s5571
      $region44: #{asff_forward.3} parent=39 // pred_fallthru
        _
    $region40: #{asff_forward.3} parent=5 // pred_fallthru
      _
  $region6: #{asff_forward.3} parent=0 // loop_footer
    %s13 = sadd.s32 1, %s9
  $region7: #{asff_forward.3} parent=0 // loop_footer_branch
    %8 = sbr.rel target = $region3
  $region8: #{asff_forward.3} parent=0 // loop_exit
    _

</llo_original>
